<compile_context>
chip_gen: v7x
topology: tpu7x:2x2x1
jax: 0.10.0
libtpu: 0.0.40
codegen_flags: <defaults>
</compile_context>

<pallas_src>
import functools
import math

import jax
import jax.numpy as jnp
from jax.experimental import pallas as pl
from jax.experimental.pallas import tpu as pltpu


# ----------------------------- in-kernel helpers -----------------------------

def _pad_hw(x, p):
    """Zero-pad the two spatial dims of a (bb, H, W, C) value by p on each side.

    Register-level fallback path only (used when the VMEM-scratch halo variant
    does not lower on the current toolchain).
    """
    if p == 0:
        return x
    bb, H, W, C = x.shape
    zw = jnp.zeros((bb, H, p, C), x.dtype)
    x = jnp.concatenate([zw, x, zw], axis=2)          # pad W
    zh = jnp.zeros((bb, p, W + 2 * p, C), x.dtype)
    return jnp.concatenate([zh, x, zh], axis=1)       # pad H


def _im2col(src, H, W, k):
    """src: zero-padded (bb, H+k-1, W+k-1, C) Ref or value -> (bb*H*W, k*k*C).

    When `src` is a VMEM scratch Ref the k*k taps are windowed loads (vld
    slots, bounded live ranges); when it is a value they are register slices.
    Column order is (ky, kx) tap-major, channel-minor, matching
    w.reshape(k*k*C, Cout) for HWIO conv weights.
    """
    taps = [src[:, ky:ky + H, kx:kx + W, :]
            for ky in range(k) for kx in range(k)]
    pat = jnp.concatenate(taps, axis=-1)              # (bb, H, W, k*k*C)
    return pat.reshape(-1, pat.shape[-1])             # minor dim unchanged


# --------------------------------- kernel ------------------------------------

def _convgru_cell_kernel(x_ref, h_ref, wbig_ref, wch_ref, b3_ref, out_ref,
                         *scratch, k, lane_dense_out):
    p = k // 2
    bb, H, W, Cx = x_ref.shape
    Ch = h_ref.shape[3]
    R = bb * H * W
    use_scratch = len(scratch) == 2

    x4 = x_ref[...]                                   # f32 (bb, H, W, Cx)
    h4 = h_ref[...]                                   # f32 (bb, H, W, Ch)
    h_flat = h4.reshape(R, Ch)                        # leading-dim merge only

    # bf16 MXU operands (halves patch vreg footprint + concat bytes); f32
    # accumulation via preferred_element_type; gate elementwise math stays f32.
    xh_bf = jnp.concatenate([x4.astype(jnp.bfloat16),
                             h4.astype(jnp.bfloat16)], axis=-1)

    if use_scratch:
        xh_pad, g_pad = scratch
        xh_pad[...] = jnp.zeros_like(xh_pad)          # halo stays zero
        xh_pad[:, p:p + H, p:p + W, :] = xh_bf
        pat_xh = _im2col(xh_pad, H, W, k)             # (R, k*k*(Cx+Ch)) bf16
    else:
        pat_xh = _im2col(_pad_hw(xh_bf, p), H, W, k)

    # One fused dot: [reset | update | candidate-x-part] (+ folded biases).
    xg = jnp.dot(pat_xh, wbig_ref[...], preferred_element_type=jnp.float32)
    xg = xg + b3_ref[...]                             # (R, 3*Ch) f32

    reset = jax.nn.sigmoid(xg[:, :Ch])
    update = jax.nn.sigmoid(xg[:, Ch:2 * Ch])
    # TODO(synk): nn.Dropout(p=0.5) on sigmoid(c1) is stochastic in training
    # mode; it is applied here in eval mode, i.e. identity.

    gated = (reset * h_flat).reshape(bb, H, W, Ch)    # reset_gate * hidden

    if use_scratch:
        g_pad[...] = jnp.zeros_like(g_pad)
        g_pad[:, p:p + H, p:p + W, :] = gated.astype(jnp.bfloat16)
        pat_g = _im2col(g_pad, H, W, k)               # (R, k*k*Ch) bf16
    else:
        pat_g = _im2col(_pad_hw(gated.astype(jnp.bfloat16), p), H, W, k)

    cand = jnp.tanh(xg[:, 2 * Ch:]
                    + jnp.dot(pat_g, wch_ref[...],
                              preferred_element_type=jnp.float32))

    next_h = h_flat + update * (cand - h_flat)        # == u*ct + (1-u)*h
    if lane_dense_out:
        # Lane-dense store: last dim W*Ch (=128 at W=16, Ch=8) -> unmasked vst.
        out_ref[...] = next_h.reshape(bb, H, W * Ch)
    else:
        out_ref[...] = next_h.reshape(bb, H, W, Ch)


# --------------------------------- wrapper -----------------------------------

def _num_tensorcores_per_device():
    """Best-effort TensorCore count per JAX device (v7x / megacore: 2)."""
    try:
        d = jax.devices()[0]
        nc = getattr(d, "num_cores", None)
        if isinstance(nc, int) and nc > 0:
            return nc
        kind = str(getattr(d, "device_kind", "")).lower()
    except Exception:
        return 1
    return 2 if any(t in kind for t in ("v7", "v5p", "v4")) else 1


def _pick_batch_block(n):
    """Batch elements folded into one grid step (generation-aware).

    Single-TC chips (v5e/v6e): grid=(1,) — fold the whole batch into the
    matmul M dim (no ~0.35us/step overhead).  Multi-TC chips: >=2 'parallel'
    steps, preferably an even count so neither core idles on a tail step.
    """
    if n <= 1:
        return max(n, 1)
    if _num_tensorcores_per_device() <= 1:
        return n
    best = None
    for bb in range(n, 0, -1):
        if n % bb:
            continue
        steps = n // bb
        if steps >= 2:
            if steps % 2 == 0:
                return bb
            if best is None:
                best = bb
    return best if best is not None else n


# Preference order: (use_scratch_halo, lane_dense_out).  The last entry is the
# previously-validated structure and is used without probing (guaranteed path).
_VARIANTS = ((True, True), (False, True), (True, False), (False, False))


@functools.lru_cache(maxsize=None)
def _build_cell_fn(N, H, W, Cx, Ch, k, bb):
    p = k // 2
    Cin = Cx + Ch
    x_sds = jax.ShapeDtypeStruct((N, H, W, Cx), jnp.float32)
    h_sds = jax.ShapeDtypeStruct((N, H, W, Ch), jnp.float32)
    wbig_sds = jax.ShapeDtypeStruct((k * k * Cin, 3 * Ch), jnp.bfloat16)
    wch_sds = jax.ShapeDtypeStruct((k * k * Ch, Ch), jnp.bfloat16)
    b3_sds = jax.ShapeDtypeStruct((1, 3 * Ch), jnp.float32)

    def build(use_scratch, lane_dense):
        kern = functools.partial(_convgru_cell_kernel, k=k,
                                 lane_dense_out=lane_dense)
        if lane_dense:
            out_shape = jax.ShapeDtypeStruct((N, H, W * Ch), jnp.float32)
            out_spec = pl.BlockSpec((bb, H, W * Ch), lambda b: (b, 0, 0))
        else:
            out_shape = jax.ShapeDtypeStruct((N, H, W, Ch), jnp.float32)
            out_spec = pl.BlockSpec((bb, H, W, Ch), lambda b: (b, 0, 0, 0))
        scratch = []
        if use_scratch:
            scratch = [pltpu.VMEM((bb, H + 2 * p, W + 2 * p, Cin), jnp.bfloat16),
                       pltpu.VMEM((bb, H + 2 * p, W + 2 * p, Ch), jnp.bfloat16)]
        f = pl.pallas_call(
            kern,
            out_shape=out_shape,
            grid_spec=pltpu.PrefetchScalarGridSpec(
                num_scalar_prefetch=0,
                grid=(N // bb,),
                in_specs=[
                    pl.BlockSpec((bb, H, W, Cx), lambda b: (b, 0, 0, 0)),
                    pl.BlockSpec((bb, H, W, Ch), lambda b: (b, 0, 0, 0)),
                    pl.BlockSpec((k * k * Cin, 3 * Ch), lambda b: (0, 0)),
                    pl.BlockSpec((k * k * Ch, Ch), lambda b: (0, 0)),
                    pl.BlockSpec((1, 3 * Ch), lambda b: (0, 0)),
                ],
                out_specs=out_spec,
                scratch_shapes=scratch),
            compiler_params=pltpu.CompilerParams(
                dimension_semantics=("parallel",)),
        )
        return jax.jit(f)

    for idx, (use_scratch, lane_dense) in enumerate(_VARIANTS):
        last = idx == len(_VARIANTS) - 1
        try:
            fn = build(use_scratch, lane_dense)
            if not last:
                # Probe-compile so an unsupported layout/reshape falls back
                # instead of failing the run (per perf-review request).
                fn.lower(x_sds, h_sds, wbig_sds, wch_sds, b3_sds).compile()
            return fn, lane_dense
        except Exception:
            if last:
                raise
    raise RuntimeError("unreachable")


def convgru_cell(x, h, packed, kernel_size):
    """One ConvGRUCell step.  x: (N,H,W,Cx)  h: (N,H,W,Ch)  -> (N,H,W,Ch)."""
    assert kernel_size % 2 == 1, (
        "only odd kernel_size matches PyTorch Conv2d(padding=k//2) 'same' conv")
    N, H, W, Cx = x.shape
    Ch = h.shape[3]
    wbig, wch, b3 = packed
    bb = _pick_batch_block(N)
    fn, lane_dense = _build_cell_fn(N, H, W, Cx, Ch, kernel_size, bb)
    out = fn(x, h, wbig, wch, b3)
    if lane_dense:
        out = out.reshape(N, H, W, Ch)   # wrapper-side relayout is plain XLA
    return out


def convgru_forward(x_nchw, packed_params, kernel_sizes, hiddens_nhwc):
    """ConvGRU.forward: returns list of per-layer next hidden states (NCHW)."""
    inp = jnp.transpose(x_nchw, (0, 2, 3, 1))         # NCHW -> NHWC
    outs = []
    for packed, k, h0 in zip(packed_params, kernel_sizes, hiddens_nhwc):
        nh = convgru_cell(inp, h0, packed, k)
        outs.append(nh)
        inp = nh                                      # output feeds next layer
    return [jnp.transpose(o, (0, 3, 1, 2)) for o in outs]


# ---------------- deterministic parameter / state initialization -------------

def init_cell_params(key, input_dim, hidden_size, kernel_size):
    """PyTorch Conv2d-default-style uniform init, in HWIO layout (raw f32)."""
    k = kernel_size
    cin = input_dim + hidden_size
    bound = 1.0 / math.sqrt(cin * k * k)
    kg_w, kg_b, kc_w, kc_b = jax.random.split(key, 4)
    wg = jax.random.uniform(kg_w, (k, k, cin, 2 * hidden_size), jnp.float32,
                            -bound, bound)
    bg = jax.random.uniform(kg_b, (2 * hidden_size,), jnp.float32, -bound, bound)
    wc = jax.random.uniform(kc_w, (k, k, cin, hidden_size), jnp.float32,
                            -bound, bound)
    bc = jax.random.uniform(kc_b, (hidden_size,), jnp.float32, -bound, bound)
    return (wg, bg, wc, bc)


def pack_cell_params(raw, input_dim, hidden_size, kernel_size):
    """Pre-pack (and pre-cast to bf16) weights for the fused im2col kernel:
       wbig: (k*k*(Cx+Ch), 3*Ch) = [Wrx|Wux|Wcx] over x rows stacked on
                                   [Wrh|Wuh| 0 ] over h rows
       wch : (k*k*Ch, Ch)        = candidate weight applied to reset*h patches
       b3  : (1, 3*Ch) f32       = [br | bu | bc]
    """
    wg, bg, wc, bc = raw
    k = kernel_size
    Cx, Ch = input_dim, hidden_size
    wcx = wc[:, :, :Cx, :]                            # candidate, x channels
    wch = wc[:, :, Cx:, :]                            # candidate, h channels
    wcx_pad = jnp.concatenate(
        [wcx, jnp.zeros((k, k, Ch, Ch), wc.dtype)], axis=2)
    wbig = jnp.concatenate([wg, wcx_pad], axis=3)     # (k, k, Cx+Ch, 3*Ch)
    wbig = wbig.reshape(k * k * (Cx + Ch), 3 * Ch).astype(jnp.bfloat16)
    wch2 = wch.reshape(k * k * Ch, Ch).astype(jnp.bfloat16)
    b3 = jnp.concatenate([bg, bc]).reshape(1, 3 * Ch).astype(jnp.float32)
    return (wbig, wch2, b3)


def init_hidden(key, batch, hidden_size, H, W):
    """Mimics nn.init.kaiming_uniform_(hidden, mode='fan_in', nonlinearity='relu')
    on a (N, Ch, H, W) tensor (fan_in = Ch*H*W).  Returned in NHWC."""
    fan_in = hidden_size * H * W
    bound = math.sqrt(2.0) * math.sqrt(3.0 / fan_in)
    return jax.random.uniform(key, (batch, H, W, hidden_size), jnp.float32,
                              -bound, bound)


# ------------------------------ pure-JAX reference ---------------------------

def _ref_cell(x, h, raw, k):
    wg, bg, wc, bc = raw
    Ch = h.shape[-1]

    def conv(a, w):
        return jax.lax.conv_general_dilated(
            a, w, (1, 1), 'SAME',
            dimension_numbers=('NHWC', 'HWIO', 'NHWC'),
            precision=jax.lax.Precision.HIGHEST)

    c1 = conv(jnp.concatenate([x, h], axis=-1), wg) + bg.reshape(1, 1, 1, -1)
    r = jax.nn.sigmoid(c1[..., :Ch])
    u = jax.nn.sigmoid(c1[..., Ch:])
    ct = jnp.tanh(conv(jnp.concatenate([x, r * h], axis=-1), wc)
                  + bc.reshape(1, 1, 1, -1))
    return u * ct + (1.0 - u) * h


if __name__ == "__main__":
    # ConvGRU(input_size=4, hidden_size=8, kernel_size=3, layers_num=2)
    B, C_IN, H, W = 2, 4, 16, 16
    HIDDEN, KSIZE, LAYERS = 8, 3, 2

    root = jax.random.PRNGKey(0)
    kx, kh, kp = jax.random.split(root, 3)
    x_nchw = jax.random.normal(kx, (B, C_IN, H, W), jnp.float32)

    raw_params, packed_params, hiddens, kernel_sizes = [], [], [], []
    pkeys = jax.random.split(kp, LAYERS)
    hkeys = jax.random.split(kh, LAYERS)
    for i in range(LAYERS):
        in_dim = C_IN if i == 0 else HIDDEN
        raw = init_cell_params(pkeys[i], in_dim, HIDDEN, KSIZE)
        raw_params.append(raw)
        packed_params.append(pack_cell_params(raw, in_dim, HIDDEN, KSIZE))
        hiddens.append(init_hidden(hkeys[i], B, HIDDEN, H, W))  # hidden=None path
        kernel_sizes.append(KSIZE)

    outs = convgru_forward(x_nchw, packed_params, kernel_sizes, hiddens)
    outs = [jax.block_until_ready(o) for o in outs]

    # Per-layer parity vs. a pure-JAX f32 reference, with the reference fed the
    # SAME input the kernel layer received (strict per-layer comparison).
    # Tolerance is 1e-2 because the kernel intentionally uses bf16 MXU operands
    # with f32 accumulation while the reference is full-f32 HIGHEST.
    kin = jnp.transpose(x_nchw, (0, 2, 3, 1))
    for i in range(LAYERS):
        got = jnp.transpose(outs[i], (0, 2, 3, 1))
        ref = _ref_cell(kin, hiddens[i], raw_params[i], kernel_sizes[i])
        assert outs[i].shape == (B, HIDDEN, H, W)
        assert bool(jnp.allclose(got, ref, atol=1e-2, rtol=1e-2)), \
            f"layer {i} mismatch: max diff {float(jnp.max(jnp.abs(got - ref)))}"
        kin = got                                      # kernel output feeds next layer

    print("KERNEL_OK")
</pallas_src>

<mosaic_0001>
module attributes {stable_mosaic.version = 11 : i64} {
  func.func @_convgru_cell_kernel(%arg0: i32, %arg1: memref<2x16x16x4xf32, #tpu.memory_space<vmem>>, %arg2: memref<2x16x16x8xf32, #tpu.memory_space<vmem>>, %arg3: memref<108x24xbf16, #tpu.memory_space<vmem>>, %arg4: memref<72x8xbf16, #tpu.memory_space<vmem>>, %arg5: memref<1x24xf32, #tpu.memory_space<vmem>>, %arg6: memref<2x16x16x8xf32, #tpu.memory_space<vmem>>) attributes {dimension_semantics = [#tpu.dimension_semantics<parallel>], iteration_bounds = array<i64: 1>, scalar_prefetch = 0 : i64, scratch_operands = 0 : i64, tpu.core_type = #tpu.core_type<tc>, window_params = [{transform_indices = @transform_0, window_bounds = array<i64: 2, 16, 16, 4>}, {transform_indices = @transform_1, window_bounds = array<i64: 2, 16, 16, 8>}, {pipeline_mode = #tpu.pipeline_mode<synchronous>, transform_indices = @transform_2, window_bounds = array<i64: 108, 24>}, {pipeline_mode = #tpu.pipeline_mode<synchronous>, transform_indices = @transform_3, window_bounds = array<i64: 72, 8>}, {pipeline_mode = #tpu.pipeline_mode<synchronous>, transform_indices = @transform_4, window_bounds = array<i64: 1, 24>}, {transform_indices = @transform_5, window_bounds = array<i64: 2, 16, 16, 8>}]} {
    %c0 = arith.constant 0 : index
    %c0_0 = arith.constant 0 : index
    %c0_1 = arith.constant 0 : index
    %c0_2 = arith.constant 0 : index
    %0 = vector.load %arg1[%c0, %c0_0, %c0_1, %c0_2] : memref<2x16x16x4xf32, #tpu.memory_space<vmem>>, vector<2x16x16x4xf32>
    %c0_3 = arith.constant 0 : index
    %c0_4 = arith.constant 0 : index
    %c0_5 = arith.constant 0 : index
    %c0_6 = arith.constant 0 : index
    %1 = vector.load %arg2[%c0_3, %c0_4, %c0_5, %c0_6] : memref<2x16x16x8xf32, #tpu.memory_space<vmem>>, vector<2x16x16x8xf32>
    %2 = vector.shape_cast %1 : vector<2x16x16x8xf32> to vector<512x8xf32>
    %3 = arith.truncf %0 : vector<2x16x16x4xf32> to vector<2x16x16x4xbf16>
    %4 = arith.truncf %1 : vector<2x16x16x8xf32> to vector<2x16x16x8xbf16>
    %5 = tpu.concatenate %3, %4 in 3 : vector<2x16x16x4xbf16>, vector<2x16x16x8xbf16> -> vector<2x16x16x12xbf16>
    %cst = arith.constant 0.000000e+00 : bf16
    %6 = vector.broadcast %cst : bf16 to vector<2x16x1x12xbf16>
    %7 = tpu.concatenate %6, %5, %6 in 2 : vector<2x16x1x12xbf16>, vector<2x16x16x12xbf16>, vector<2x16x1x12xbf16> -> vector<2x16x18x12xbf16>
    %cst_7 = arith.constant 0.000000e+00 : bf16
    %8 = vector.broadcast %cst_7 : bf16 to vector<2x1x18x12xbf16>
    %9 = tpu.concatenate %8, %7, %8 in 1 : vector<2x1x18x12xbf16>, vector<2x16x18x12xbf16>, vector<2x1x18x12xbf16> -> vector<2x18x18x12xbf16>
    %10 = vector.extract_strided_slice %9 {offsets = [0, 0, 0, 0], sizes = [2, 16, 16, 12], strides = [1, 1, 1, 1]} : vector<2x18x18x12xbf16> to vector<2x16x16x12xbf16>
    %11 = vector.extract_strided_slice %9 {offsets = [0, 0, 1, 0], sizes = [2, 16, 16, 12], strides = [1, 1, 1, 1]} : vector<2x18x18x12xbf16> to vector<2x16x16x12xbf16>
    %12 = vector.extract_strided_slice %9 {offsets = [0, 0, 2, 0], sizes = [2, 16, 16, 12], strides = [1, 1, 1, 1]} : vector<2x18x18x12xbf16> to vector<2x16x16x12xbf16>
    %13 = vector.extract_strided_slice %9 {offsets = [0, 1, 0, 0], sizes = [2, 16, 16, 12], strides = [1, 1, 1, 1]} : vector<2x18x18x12xbf16> to vector<2x16x16x12xbf16>
    %14 = vector.extract_strided_slice %9 {offsets = [0, 1, 1, 0], sizes = [2, 16, 16, 12], strides = [1, 1, 1, 1]} : vector<2x18x18x12xbf16> to vector<2x16x16x12xbf16>
    %15 = vector.extract_strided_slice %9 {offsets = [0, 1, 2, 0], sizes = [2, 16, 16, 12], strides = [1, 1, 1, 1]} : vector<2x18x18x12xbf16> to vector<2x16x16x12xbf16>
    %16 = vector.extract_strided_slice %9 {offsets = [0, 2, 0, 0], sizes = [2, 16, 16, 12], strides = [1, 1, 1, 1]} : vector<2x18x18x12xbf16> to vector<2x16x16x12xbf16>
    %17 = vector.extract_strided_slice %9 {offsets = [0, 2, 1, 0], sizes = [2, 16, 16, 12], strides = [1, 1, 1, 1]} : vector<2x18x18x12xbf16> to vector<2x16x16x12xbf16>
    %18 = vector.extract_strided_slice %9 {offsets = [0, 2, 2, 0], sizes = [2, 16, 16, 12], strides = [1, 1, 1, 1]} : vector<2x18x18x12xbf16> to vector<2x16x16x12xbf16>
    %19 = tpu.concatenate %10, %11, %12, %13, %14, %15, %16, %17, %18 in 3 : vector<2x16x16x12xbf16>, vector<2x16x16x12xbf16>, vector<2x16x16x12xbf16>, vector<2x16x16x12xbf16>, vector<2x16x16x12xbf16>, vector<2x16x16x12xbf16>, vector<2x16x16x12xbf16>, vector<2x16x16x12xbf16>, vector<2x16x16x12xbf16> -> vector<2x16x16x108xbf16>
    %20 = vector.shape_cast %19 : vector<2x16x16x108xbf16> to vector<512x108xbf16>
    %c0_8 = arith.constant 0 : index
    %c0_9 = arith.constant 0 : index
    %21 = vector.load %arg3[%c0_8, %c0_9] : memref<108x24xbf16, #tpu.memory_space<vmem>>, vector<108x24xbf16>
    %cst_10 = arith.constant dense<0.000000e+00> : vector<512x24xf32>
    %22 = tpu.matmul %20, %21, %cst_10 {dimension_numbers = #tpu.dot_dimension_numbers<[1], [0], [0], [1], [0, 0, 1, 1], [], []>} : vector<512x108xbf16>, vector<108x24xbf16>, vector<512x24xf32> -> vector<512x24xf32>
    %c0_11 = arith.constant 0 : index
    %c0_12 = arith.constant 0 : index
    %23 = vector.load %arg5[%c0_11, %c0_12] : memref<1x24xf32, #tpu.memory_space<vmem>>, vector<1x24xf32>
    %24 = vector.broadcast %23 : vector<1x24xf32> to vector<512x24xf32>
    %25 = arith.addf %22, %24 : vector<512x24xf32>
    %26 = vector.extract_strided_slice %25 {offsets = [0, 0], sizes = [512, 8], strides = [1, 1]} : vector<512x24xf32> to vector<512x8xf32>
    %27 = arith.negf %26 : vector<512x8xf32>
    %28 = math.exp %27 : vector<512x8xf32>
    %cst_13 = arith.constant 1.000000e+00 : f32
    %29 = vector.broadcast %cst_13 : f32 to vector<512x8xf32>
    %30 = arith.addf %29, %28 : vector<512x8xf32>
    %31 = arith.divf %29, %30 : vector<512x8xf32>
    %32 = vector.extract_strided_slice %25 {offsets = [0, 8], sizes = [512, 8], strides = [1, 1]} : vector<512x24xf32> to vector<512x8xf32>
    %33 = arith.negf %32 : vector<512x8xf32>
    %34 = math.exp %33 : vector<512x8xf32>
    %cst_14 = arith.constant 1.000000e+00 : f32
    %35 = vector.broadcast %cst_14 : f32 to vector<512x8xf32>
    %36 = arith.addf %35, %34 : vector<512x8xf32>
    %37 = arith.divf %35, %36 : vector<512x8xf32>
    %38 = arith.mulf %31, %2 : vector<512x8xf32>
    %39 = vector.shape_cast %38 : vector<512x8xf32> to vector<2x16x16x8xf32>
    %40 = arith.truncf %39 : vector<2x16x16x8xf32> to vector<2x16x16x8xbf16>
    %cst_15 = arith.constant 0.000000e+00 : bf16
    %41 = vector.broadcast %cst_15 : bf16 to vector<2x16x1x8xbf16>
    %42 = tpu.concatenate %41, %40, %41 in 2 : vector<2x16x1x8xbf16>, vector<2x16x16x8xbf16>, vector<2x16x1x8xbf16> -> vector<2x16x18x8xbf16>
    %cst_16 = arith.constant 0.000000e+00 : bf16
    %43 = vector.broadcast %cst_16 : bf16 to vector<2x1x18x8xbf16>
    %44 = tpu.concatenate %43, %42, %43 in 1 : vector<2x1x18x8xbf16>, vector<2x16x18x8xbf16>, vector<2x1x18x8xbf16> -> vector<2x18x18x8xbf16>
    %45 = vector.extract_strided_slice %44 {offsets = [0, 0, 0, 0], sizes = [2, 16, 16, 8], strides = [1, 1, 1, 1]} : vector<2x18x18x8xbf16> to vector<2x16x16x8xbf16>
    %46 = vector.extract_strided_slice %44 {offsets = [0, 0, 1, 0], sizes = [2, 16, 16, 8], strides = [1, 1, 1, 1]} : vector<2x18x18x8xbf16> to vector<2x16x16x8xbf16>
    %47 = vector.extract_strided_slice %44 {offsets = [0, 0, 2, 0], sizes = [2, 16, 16, 8], strides = [1, 1, 1, 1]} : vector<2x18x18x8xbf16> to vector<2x16x16x8xbf16>
    %48 = vector.extract_strided_slice %44 {offsets = [0, 1, 0, 0], sizes = [2, 16, 16, 8], strides = [1, 1, 1, 1]} : vector<2x18x18x8xbf16> to vector<2x16x16x8xbf16>
    %49 = vector.extract_strided_slice %44 {offsets = [0, 1, 1, 0], sizes = [2, 16, 16, 8], strides = [1, 1, 1, 1]} : vector<2x18x18x8xbf16> to vector<2x16x16x8xbf16>
    %50 = vector.extract_strided_slice %44 {offsets = [0, 1, 2, 0], sizes = [2, 16, 16, 8], strides = [1, 1, 1, 1]} : vector<2x18x18x8xbf16> to vector<2x16x16x8xbf16>
    %51 = vector.extract_strided_slice %44 {offsets = [0, 2, 0, 0], sizes = [2, 16, 16, 8], strides = [1, 1, 1, 1]} : vector<2x18x18x8xbf16> to vector<2x16x16x8xbf16>
    %52 = vector.extract_strided_slice %44 {offsets = [0, 2, 1, 0], sizes = [2, 16, 16, 8], strides = [1, 1, 1, 1]} : vector<2x18x18x8xbf16> to vector<2x16x16x8xbf16>
    %53 = vector.extract_strided_slice %44 {offsets = [0, 2, 2, 0], sizes = [2, 16, 16, 8], strides = [1, 1, 1, 1]} : vector<2x18x18x8xbf16> to vector<2x16x16x8xbf16>
    %54 = tpu.concatenate %45, %46, %47, %48, %49, %50, %51, %52, %53 in 3 : vector<2x16x16x8xbf16>, vector<2x16x16x8xbf16>, vector<2x16x16x8xbf16>, vector<2x16x16x8xbf16>, vector<2x16x16x8xbf16>, vector<2x16x16x8xbf16>, vector<2x16x16x8xbf16>, vector<2x16x16x8xbf16>, vector<2x16x16x8xbf16> -> vector<2x16x16x72xbf16>
    %55 = vector.shape_cast %54 : vector<2x16x16x72xbf16> to vector<512x72xbf16>
    %56 = vector.extract_strided_slice %25 {offsets = [0, 16], sizes = [512, 8], strides = [1, 1]} : vector<512x24xf32> to vector<512x8xf32>
    %c0_17 = arith.constant 0 : index
    %c0_18 = arith.constant 0 : index
    %57 = vector.load %arg4[%c0_17, %c0_18] : memref<72x8xbf16, #tpu.memory_space<vmem>>, vector<72x8xbf16>
    %cst_19 = arith.constant dense<0.000000e+00> : vector<512x8xf32>
    %58 = tpu.matmul %55, %57, %cst_19 {dimension_numbers = #tpu.dot_dimension_numbers<[1], [0], [0], [1], [0, 0, 1, 1], [], []>} : vector<512x72xbf16>, vector<72x8xbf16>, vector<512x8xf32> -> vector<512x8xf32>
    %59 = arith.addf %56, %58 : vector<512x8xf32>
    %60 = math.tanh %59 : vector<512x8xf32>
    %61 = arith.subf %60, %2 : vector<512x8xf32>
    %62 = arith.mulf %37, %61 : vector<512x8xf32>
    %63 = arith.addf %2, %62 : vector<512x8xf32>
    %64 = vector.shape_cast %63 : vector<512x8xf32> to vector<2x16x16x8xf32>
    %c0_20 = arith.constant 0 : index
    %c0_21 = arith.constant 0 : index
    %c0_22 = arith.constant 0 : index
    %c0_23 = arith.constant 0 : index
    %65 = vector.load %arg6[%c0_20, %c0_21, %c0_22, %c0_23] : memref<2x16x16x8xf32, #tpu.memory_space<vmem>>, vector<2x16x16x8xf32>
    tpu.vector_store %arg6[%c0_20, %c0_21, %c0_22, %c0_23], %64 {strides = array<i32>} : memref<2x16x16x8xf32, #tpu.memory_space<vmem>>, vector<2x16x16x8xf32>,
    return
  }
  func.func @transform_0(%arg0: i32) -> (i32, i32, i32, i32) {
    %c0_i32 = arith.constant 0 : i32
    %c0_i32_0 = arith.constant 0 : i32
    %c0_i32_1 = arith.constant 0 : i32
    %c0_i32_2 = arith.constant 0 : i32
    return %arg0, %c0_i32, %c0_i32_0, %c0_i32_1 : i32, i32, i32, i32
  }
  func.func @transform_1(%arg0: i32) -> (i32, i32, i32, i32) {
    %c0_i32 = arith.constant 0 : i32
    %c0_i32_0 = arith.constant 0 : i32
    %c0_i32_1 = arith.constant 0 : i32
    %c0_i32_2 = arith.constant 0 : i32
    return %arg0, %c0_i32, %c0_i32_0, %c0_i32_1 : i32, i32, i32, i32
  }
  func.func @transform_2(%arg0: i32) -> (i32, i32) {
    %c0_i32 = arith.constant 0 : i32
    %c0_i32_0 = arith.constant 0 : i32
    %c0_i32_1 = arith.constant 0 : i32
    return %c0_i32, %c0_i32_0 : i32, i32
  }
  func.func @transform_3(%arg0: i32) -> (i32, i32) {
    %c0_i32 = arith.constant 0 : i32
    %c0_i32_0 = arith.constant 0 : i32
    %c0_i32_1 = arith.constant 0 : i32
    return %c0_i32, %c0_i32_0 : i32, i32
  }
  func.func @transform_4(%arg0: i32) -> (i32, i32) {
    %c0_i32 = arith.constant 0 : i32
    %c0_i32_0 = arith.constant 0 : i32
    %c0_i32_1 = arith.constant 0 : i32
    return %c0_i32, %c0_i32_0 : i32, i32
  }
  func.func @transform_5(%arg0: i32) -> (i32, i32, i32, i32) {
    %c0_i32 = arith.constant 0 : i32
    %c0_i32_0 = arith.constant 0 : i32
    %c0_i32_1 = arith.constant 0 : i32
    %c0_i32_2 = arith.constant 0 : i32
    return %arg0, %c0_i32, %c0_i32_0, %c0_i32_1 : i32, i32, i32, i32
  }
}

</mosaic_0001>

<llo_original>
// kernel: tpu_custom_call.1
$region0: #{tpu_custom_call.1}
  #allocation0 [shape = 'u32[]', space=smem, size = 0x4, offset = 0x4, fixed_abs, tag = 'smem constant byte address 0x4 - core index']
  #allocation1 [shape = 'u32[144,128]{1,0:T(1,128)}', space=vmem, size = 0x12000, scoped, tag = 'internal scratch']
  %s0 = inlined_call_operand.vmem [shape: f32[2,16,16,4], index: 0, kind: input, shape index: {}]
  %s1 = inlined_call_operand.vmem [shape: f32[2,16,16,8], index: 1, kind: input, shape index: {}]
  %s2 = inlined_call_operand.vmem [shape: bf16[108,24], index: 2, kind: input, shape index: {}]
  %s3 = inlined_call_operand.vmem [shape: bf16[72,8], index: 3, kind: input, shape index: {}]
  %s4 = inlined_call_operand.vmem [shape: f32[1,24], index: 4, kind: input, shape index: {}]
  %s5 = inlined_call_operand.vmem [shape: f32[2,16,16,8], index: 5, kind: output, shape index: {}]
  %s6 = sld [smem:[#allocation0]]
  $region30: #{tpu_custom_call.1} parent=0
    _
  %s8 = ssub.s32 1, %s6
  %s9 = scalar_select 0, %s8, %s6
  // Predicated region
  $region2: #{tpu_custom_call.1} parent=0 // pred_check
    _
  $region3: #{tpu_custom_call.1} parent=0 // pred_check_branch
    %11 = sbr.rel (0) target = $region5
  $region4: #{tpu_custom_call.1} parent=0 // pred_region
    _
  $region5: #{tpu_custom_call.1} parent=0 // pred_fallthru
    _
  // Predicated region
  $region6: #{tpu_custom_call.1} parent=0 // pred_check
    _
  $region7: #{tpu_custom_call.1} parent=0 // pred_check_branch
    %13 = sbr.rel (0) target = $region9
  $region8: #{tpu_custom_call.1} parent=0 // pred_region
    _
  $region9: #{tpu_custom_call.1} parent=0 // pred_fallthru
    _
  // Predicated region
  $region10: #{tpu_custom_call.1} parent=0 // pred_check
    _
  $region11: #{tpu_custom_call.1} parent=0 // pred_check_branch
    %15 = sbr.rel (0) target = $region13
  $region12: #{tpu_custom_call.1} parent=0 // pred_region
    _
  $region13: #{tpu_custom_call.1} parent=0 // pred_fallthru
    _
  // Predicated region
  $region14: #{tpu_custom_call.1} parent=0 // pred_check
    _
  $region15: #{tpu_custom_call.1} parent=0 // pred_check_branch
    %17 = sbr.rel (0) target = $region17
  $region16: #{tpu_custom_call.1} parent=0 // pred_region
    _
  $region17: #{tpu_custom_call.1} parent=0 // pred_fallthru
    _
  // Predicated region
  $region18: #{tpu_custom_call.1} parent=0 // pred_check
    _
  $region19: #{tpu_custom_call.1} parent=0 // pred_check_branch
    %19 = sbr.rel (0) target = $region21
  $region20: #{tpu_custom_call.1} parent=0 // pred_region
    _
  $region21: #{tpu_custom_call.1} parent=0 // pred_fallthru
    _
  %v21 = vld [vmem:[%s0] sm:$0xff]
  %v22 = vld [vmem:[%s0 + $0x8] sm:$0xff]
  %v23 = vld [vmem:[%s0 + $0x10] sm:$0xff]
  %v24 = vld [vmem:[%s0 + $0x18] sm:$0xff]
  %v25 = vld [vmem:[%s0 + $0x20] sm:$0xff]
  %v26 = vld [vmem:[%s0 + $0x28] sm:$0xff]
  %v27 = vld [vmem:[%s0 + $0x30] sm:$0xff]
  %v28 = vld [vmem:[%s0 + $0x38] sm:$0xff]
  %v29 = vld [vmem:[%s0 + $0x40] sm:$0xff]
  %v30 = vld [vmem:[%s0 + $0x48] sm:$0xff]
  %v31 = vld [vmem:[%s0 + $0x50] sm:$0xff]
  %v32 = vld [vmem:[%s0 + $0x58] sm:$0xff]
  %v33 = vld [vmem:[%s0 + $0x60] sm:$0xff]
  %v34 = vld [vmem:[%s0 + $0x68] sm:$0xff]
  %v35 = vld [vmem:[%s0 + $0x70] sm:$0xff]
  %v36 = vld [vmem:[%s0 + $0x78] sm:$0xff]
  %v37 = vld [vmem:[%s0 + $0x80] sm:$0xff]
  %v38 = vld [vmem:[%s0 + $0x88] sm:$0xff]
  %v39 = vld [vmem:[%s0 + $0x90] sm:$0xff]
  %v40 = vld [vmem:[%s0 + $0x98] sm:$0xff]
  %v41 = vld [vmem:[%s0 + $0xa0] sm:$0xff]
  %v42 = vld [vmem:[%s0 + $0xa8] sm:$0xff]
  %v43 = vld [vmem:[%s0 + $0xb0] sm:$0xff]
  %v44 = vld [vmem:[%s0 + $0xb8] sm:$0xff]
  %v45 = vld [vmem:[%s0 + $0xc0] sm:$0xff]
  %v46 = vld [vmem:[%s0 + $0xc8] sm:$0xff]
  %v47 = vld [vmem:[%s0 + $0xd0] sm:$0xff]
  %v48 = vld [vmem:[%s0 + $0xd8] sm:$0xff]
  %v49 = vld [vmem:[%s0 + $0xe0] sm:$0xff]
  %v50 = vld [vmem:[%s0 + $0xe8] sm:$0xff]
  %v51 = vld [vmem:[%s0 + $0xf0] sm:$0xff]
  %v52 = vld [vmem:[%s0 + $0xf8] sm:$0xff]
  %v53 = vld [vmem:[%s0 + $0x100] sm:$0xff]
  %v54 = vld [vmem:[%s0 + $0x108] sm:$0xff]
  %v55 = vld [vmem:[%s0 + $0x110] sm:$0xff]
  %v56 = vld [vmem:[%s0 + $0x118] sm:$0xff]
  %v57 = vld [vmem:[%s0 + $0x120] sm:$0xff]
  %v58 = vld [vmem:[%s0 + $0x128] sm:$0xff]
  %v59 = vld [vmem:[%s0 + $0x130] sm:$0xff]
  %v60 = vld [vmem:[%s0 + $0x138] sm:$0xff]
  %v61 = vld [vmem:[%s0 + $0x140] sm:$0xff]
  %v62 = vld [vmem:[%s0 + $0x148] sm:$0xff]
  %v63 = vld [vmem:[%s0 + $0x150] sm:$0xff]
  %v64 = vld [vmem:[%s0 + $0x158] sm:$0xff]
  %v65 = vld [vmem:[%s0 + $0x160] sm:$0xff]
  %v66 = vld [vmem:[%s0 + $0x168] sm:$0xff]
  %v67 = vld [vmem:[%s0 + $0x170] sm:$0xff]
  %v68 = vld [vmem:[%s0 + $0x178] sm:$0xff]
  %v69 = vld [vmem:[%s0 + $0x180] sm:$0xff]
  %v70 = vld [vmem:[%s0 + $0x188] sm:$0xff]
  %v71 = vld [vmem:[%s0 + $0x190] sm:$0xff]
  %v72 = vld [vmem:[%s0 + $0x198] sm:$0xff]
  %v73 = vld [vmem:[%s0 + $0x1a0] sm:$0xff]
  %v74 = vld [vmem:[%s0 + $0x1a8] sm:$0xff]
  %v75 = vld [vmem:[%s0 + $0x1b0] sm:$0xff]
  %v76 = vld [vmem:[%s0 + $0x1b8] sm:$0xff]
  %v77 = vld [vmem:[%s0 + $0x1c0] sm:$0xff]
  %v78 = vld [vmem:[%s0 + $0x1c8] sm:$0xff]
  %v79 = vld [vmem:[%s0 + $0x1d0] sm:$0xff]
  %v80 = vld [vmem:[%s0 + $0x1d8] sm:$0xff]
  %v81 = vld [vmem:[%s0 + $0x1e0] sm:$0xff]
  %v82 = vld [vmem:[%s0 + $0x1e8] sm:$0xff]
  %v83 = vld [vmem:[%s0 + $0x1f0] sm:$0xff]
  %v84 = vld [vmem:[%s0 + $0x1f8] sm:$0xff]
  %v85 = vld [vmem:[%s1] sm:$0xff]
  %v86 = vld [vmem:[%s1 + $0x8] sm:$0xff]
  %v87 = vld [vmem:[%s1 + $0x10] sm:$0xff]
  %v88 = vld [vmem:[%s1 + $0x18] sm:$0xff]
  %v89 = vld [vmem:[%s1 + $0x20] sm:$0xff]
  %v90 = vld [vmem:[%s1 + $0x28] sm:$0xff]
  %v91 = vld [vmem:[%s1 + $0x30] sm:$0xff]
  %v92 = vld [vmem:[%s1 + $0x38] sm:$0xff]
  %v93 = vld [vmem:[%s1 + $0x40] sm:$0xff]
  %v94 = vld [vmem:[%s1 + $0x48] sm:$0xff]
  %v95 = vld [vmem:[%s1 + $0x50] sm:$0xff]
  %v96 = vld [vmem:[%s1 + $0x58] sm:$0xff]
  %v97 = vld [vmem:[%s1 + $0x60] sm:$0xff]
  %v98 = vld [vmem:[%s1 + $0x68] sm:$0xff]
  %v99 = vld [vmem:[%s1 + $0x70] sm:$0xff]
  %v100 = vld [vmem:[%s1 + $0x78] sm:$0xff]
  %v101 = vld [vmem:[%s1 + $0x80] sm:$0xff]
  %v102 = vld [vmem:[%s1 + $0x88] sm:$0xff]
  %v103 = vld [vmem:[%s1 + $0x90] sm:$0xff]
  %v104 = vld [vmem:[%s1 + $0x98] sm:$0xff]
  %v105 = vld [vmem:[%s1 + $0xa0] sm:$0xff]
  %v106 = vld [vmem:[%s1 + $0xa8] sm:$0xff]
  %v107 = vld [vmem:[%s1 + $0xb0] sm:$0xff]
  %v108 = vld [vmem:[%s1 + $0xb8] sm:$0xff]
  %v109 = vld [vmem:[%s1 + $0xc0] sm:$0xff]
  %v110 = vld [vmem:[%s1 + $0xc8] sm:$0xff]
  %v111 = vld [vmem:[%s1 + $0xd0] sm:$0xff]
  %v112 = vld [vmem:[%s1 + $0xd8] sm:$0xff]
  %v113 = vld [vmem:[%s1 + $0xe0] sm:$0xff]
  %v114 = vld [vmem:[%s1 + $0xe8] sm:$0xff]
  %v115 = vld [vmem:[%s1 + $0xf0] sm:$0xff]
  %v116 = vld [vmem:[%s1 + $0xf8] sm:$0xff]
  %v117 = vld [vmem:[%s1 + $0x100] sm:$0xff]
  %v118 = vld [vmem:[%s1 + $0x108] sm:$0xff]
  %v119 = vld [vmem:[%s1 + $0x110] sm:$0xff]
  %v120 = vld [vmem:[%s1 + $0x118] sm:$0xff]
  %v121 = vld [vmem:[%s1 + $0x120] sm:$0xff]
  %v122 = vld [vmem:[%s1 + $0x128] sm:$0xff]
  %v123 = vld [vmem:[%s1 + $0x130] sm:$0xff]
  %v124 = vld [vmem:[%s1 + $0x138] sm:$0xff]
  %v125 = vld [vmem:[%s1 + $0x140] sm:$0xff]
  %v126 = vld [vmem:[%s1 + $0x148] sm:$0xff]
  %v127 = vld [vmem:[%s1 + $0x150] sm:$0xff]
  %v128 = vld [vmem:[%s1 + $0x158] sm:$0xff]
  %v129 = vld [vmem:[%s1 + $0x160] sm:$0xff]
  %v130 = vld [vmem:[%s1 + $0x168] sm:$0xff]
  %v131 = vld [vmem:[%s1 + $0x170] sm:$0xff]
  %v132 = vld [vmem:[%s1 + $0x178] sm:$0xff]
  %v133 = vld [vmem:[%s1 + $0x180] sm:$0xff]
  %v134 = vld [vmem:[%s1 + $0x188] sm:$0xff]
  %v135 = vld [vmem:[%s1 + $0x190] sm:$0xff]
  %v136 = vld [vmem:[%s1 + $0x198] sm:$0xff]
  %v137 = vld [vmem:[%s1 + $0x1a0] sm:$0xff]
  %v138 = vld [vmem:[%s1 + $0x1a8] sm:$0xff]
  %v139 = vld [vmem:[%s1 + $0x1b0] sm:$0xff]
  %v140 = vld [vmem:[%s1 + $0x1b8] sm:$0xff]
  %v141 = vld [vmem:[%s1 + $0x1c0] sm:$0xff]
  %v142 = vld [vmem:[%s1 + $0x1c8] sm:$0xff]
  %v143 = vld [vmem:[%s1 + $0x1d0] sm:$0xff]
  %v144 = vld [vmem:[%s1 + $0x1d8] sm:$0xff]
  %v145 = vld [vmem:[%s1 + $0x1e0] sm:$0xff]
  %v146 = vld [vmem:[%s1 + $0x1e8] sm:$0xff]
  %v147 = vld [vmem:[%s1 + $0x1f0] sm:$0xff]
  %v148 = vld [vmem:[%s1 + $0x1f8] sm:$0xff]
  %v149 = vpack.c.bf16 %v22, %v21
  %v150 = vpack.c.bf16 %v24, %v23
  %v151 = vpack.c.bf16 %v26, %v25
  %v152 = vpack.c.bf16 %v28, %v27
  %v153 = vpack.c.bf16 %v30, %v29
  %v154 = vpack.c.bf16 %v32, %v31
  %v155 = vpack.c.bf16 %v34, %v33
  %v156 = vpack.c.bf16 %v36, %v35
  %v157 = vpack.c.bf16 %v38, %v37
  %v158 = vpack.c.bf16 %v40, %v39
  %v159 = vpack.c.bf16 %v42, %v41
  %v160 = vpack.c.bf16 %v44, %v43
  %v161 = vpack.c.bf16 %v46, %v45
  %v162 = vpack.c.bf16 %v48, %v47
  %v163 = vpack.c.bf16 %v50, %v49
  %v164 = vpack.c.bf16 %v52, %v51
  %v165 = vpack.c.bf16 %v54, %v53
  %v166 = vpack.c.bf16 %v56, %v55
  %v167 = vpack.c.bf16 %v58, %v57
  %v168 = vpack.c.bf16 %v60, %v59
  %v169 = vpack.c.bf16 %v62, %v61
  %v170 = vpack.c.bf16 %v64, %v63
  %v171 = vpack.c.bf16 %v66, %v65
  %v172 = vpack.c.bf16 %v68, %v67
  %v173 = vpack.c.bf16 %v70, %v69
  %v174 = vpack.c.bf16 %v72, %v71
  %v175 = vpack.c.bf16 %v74, %v73
  %v176 = vpack.c.bf16 %v76, %v75
  %v177 = vpack.c.bf16 %v78, %v77
  %v178 = vpack.c.bf16 %v80, %v79
  %v179 = vpack.c.bf16 %v82, %v81
  %v180 = vpack.c.bf16 %v84, %v83
  %v181 = vpack.c.bf16 %v86, %v85
  %v182 = vpack.c.bf16 %v88, %v87
  %v183 = vpack.c.bf16 %v90, %v89
  %v184 = vpack.c.bf16 %v92, %v91
  %v185 = vpack.c.bf16 %v94, %v93
  %v186 = vpack.c.bf16 %v96, %v95
  %v187 = vpack.c.bf16 %v98, %v97
  %v188 = vpack.c.bf16 %v100, %v99
  %v189 = vpack.c.bf16 %v102, %v101
  %v190 = vpack.c.bf16 %v104, %v103
  %v191 = vpack.c.bf16 %v106, %v105
  %v192 = vpack.c.bf16 %v108, %v107
  %v193 = vpack.c.bf16 %v110, %v109
  %v194 = vpack.c.bf16 %v112, %v111
  %v195 = vpack.c.bf16 %v114, %v113
  %v196 = vpack.c.bf16 %v116, %v115
  %v197 = vpack.c.bf16 %v118, %v117
  %v198 = vpack.c.bf16 %v120, %v119
  %v199 = vpack.c.bf16 %v122, %v121
  %v200 = vpack.c.bf16 %v124, %v123
  %v201 = vpack.c.bf16 %v126, %v125
  %v202 = vpack.c.bf16 %v128, %v127
  %v203 = vpack.c.bf16 %v130, %v129
  %v204 = vpack.c.bf16 %v132, %v131
  %v205 = vpack.c.bf16 %v134, %v133
  %v206 = vpack.c.bf16 %v136, %v135
  %v207 = vpack.c.bf16 %v138, %v137
  %v208 = vpack.c.bf16 %v140, %v139
  %v209 = vpack.c.bf16 %v142, %v141
  %v210 = vpack.c.bf16 %v144, %v143
  %v211 = vpack.c.bf16 %v146, %v145
  %v212 = vpack.c.bf16 %v148, %v147
  %245 = vrot.lane.b32.xlu0 %v181, 4
  %v246 = vpop.permute.xlu0 %245
  %247 = vrot.lane.b32.xlu0 %v182, 4
  %v248 = vpop.permute.xlu0 %247
  %249 = vrot.lane.b32.xlu0 %v183, 4
  %v250 = vpop.permute.xlu0 %249
  %251 = vrot.lane.b32.xlu0 %v184, 4
  %v252 = vpop.permute.xlu0 %251
  %253 = vrot.lane.b32.xlu0 %v185, 4
  %v254 = vpop.permute.xlu0 %253
  %255 = vrot.lane.b32.xlu0 %v186, 4
  %v256 = vpop.permute.xlu0 %255
  %257 = vrot.lane.b32.xlu0 %v187, 4
  %v258 = vpop.permute.xlu0 %257
  %259 = vrot.lane.b32.xlu0 %v188, 4
  %v260 = vpop.permute.xlu0 %259
  %261 = vrot.lane.b32.xlu0 %v189, 4
  %v262 = vpop.permute.xlu0 %261
  %263 = vrot.lane.b32.xlu0 %v190, 4
  %v264 = vpop.permute.xlu0 %263
  %265 = vrot.lane.b32.xlu0 %v191, 4
  %v266 = vpop.permute.xlu0 %265
  %267 = vrot.lane.b32.xlu0 %v192, 4
  %v268 = vpop.permute.xlu0 %267
  %269 = vrot.lane.b32.xlu0 %v193, 4
  %v270 = vpop.permute.xlu0 %269
  %271 = vrot.lane.b32.xlu0 %v194, 4
  %v272 = vpop.permute.xlu0 %271
  %273 = vrot.lane.b32.xlu0 %v195, 4
  %v274 = vpop.permute.xlu0 %273
  %275 = vrot.lane.b32.xlu0 %v196, 4
  %v276 = vpop.permute.xlu0 %275
  %277 = vrot.lane.b32.xlu0 %v197, 4
  %v278 = vpop.permute.xlu0 %277
  %279 = vrot.lane.b32.xlu0 %v198, 4
  %v280 = vpop.permute.xlu0 %279
  %281 = vrot.lane.b32.xlu0 %v199, 4
  %v282 = vpop.permute.xlu0 %281
  %283 = vrot.lane.b32.xlu0 %v200, 4
  %v284 = vpop.permute.xlu0 %283
  %285 = vrot.lane.b32.xlu0 %v201, 4
  %v286 = vpop.permute.xlu0 %285
  %287 = vrot.lane.b32.xlu0 %v202, 4
  %v288 = vpop.permute.xlu0 %287
  %289 = vrot.lane.b32.xlu0 %v203, 4
  %v290 = vpop.permute.xlu0 %289
  %291 = vrot.lane.b32.xlu0 %v204, 4
  %v292 = vpop.permute.xlu0 %291
  %293 = vrot.lane.b32.xlu0 %v205, 4
  %v294 = vpop.permute.xlu0 %293
  %295 = vrot.lane.b32.xlu0 %v206, 4
  %v296 = vpop.permute.xlu0 %295
  %297 = vrot.lane.b32.xlu0 %v207, 4
  %v298 = vpop.permute.xlu0 %297
  %299 = vrot.lane.b32.xlu0 %v208, 4
  %v300 = vpop.permute.xlu0 %299
  %301 = vrot.lane.b32.xlu0 %v209, 4
  %v302 = vpop.permute.xlu0 %301
  %303 = vrot.lane.b32.xlu0 %v210, 4
  %v304 = vpop.permute.xlu0 %303
  %305 = vrot.lane.b32.xlu0 %v211, 4
  %v306 = vpop.permute.xlu0 %305
  %307 = vrot.lane.b32.xlu0 %v212, 4
  %v308 = vpop.permute.xlu0 %307
  %vm309 = vcmask 31744
  %v312 = vsel %vm309, %v149, %v246
  %v315 = vsel %vm309, %v150, %v248
  %v318 = vsel %vm309, %v151, %v250
  %v321 = vsel %vm309, %v152, %v252
  %v324 = vsel %vm309, %v153, %v254
  %v327 = vsel %vm309, %v154, %v256
  %v330 = vsel %vm309, %v155, %v258
  %v333 = vsel %vm309, %v156, %v260
  %v336 = vsel %vm309, %v157, %v262
  %v339 = vsel %vm309, %v158, %v264
  %v342 = vsel %vm309, %v159, %v266
  %v345 = vsel %vm309, %v160, %v268
  %v348 = vsel %vm309, %v161, %v270
  %v351 = vsel %vm309, %v162, %v272
  %v354 = vsel %vm309, %v163, %v274
  %v357 = vsel %vm309, %v164, %v276
  %v360 = vsel %vm309, %v165, %v278
  %v363 = vsel %vm309, %v166, %v280
  %v366 = vsel %vm309, %v167, %v282
  %v369 = vsel %vm309, %v168, %v284
  %v372 = vsel %vm309, %v169, %v286
  %v375 = vsel %vm309, %v170, %v288
  %v378 = vsel %vm309, %v171, %v290
  %v381 = vsel %vm309, %v172, %v292
  %v384 = vsel %vm309, %v173, %v294
  %v387 = vsel %vm309, %v174, %v296
  %v390 = vsel %vm309, %v175, %v298
  %v393 = vsel %vm309, %v176, %v300
  %v396 = vsel %vm309, %v177, %v302
  %v399 = vsel %vm309, %v178, %v304
  %v402 = vsel %vm309, %v179, %v306
  %v405 = vsel %vm309, %v180, %v308
  %v406 = vshrl.u32 %v312, 16
  %v408 = vrot.slane %v406, 7
  %v409 = vshll.u32 %v312, 16
  %v411 = vor.u32 %v408, %v409
  %v412 = vshrl.u32 %v315, 16
  %v414 = vrot.slane %v412, 7
  %v415 = vshll.u32 %v315, 16
  %v417 = vor.u32 %v414, %v415
  %v418 = vshrl.u32 %v318, 16
  %v420 = vrot.slane %v418, 7
  %v421 = vshll.u32 %v318, 16
  %v423 = vor.u32 %v420, %v421
  %v424 = vshrl.u32 %v321, 16
  %v426 = vrot.slane %v424, 7
  %v427 = vshll.u32 %v321, 16
  %v429 = vor.u32 %v426, %v427
  %v430 = vshrl.u32 %v324, 16
  %v432 = vrot.slane %v430, 7
  %v433 = vshll.u32 %v324, 16
  %v435 = vor.u32 %v432, %v433
  %v436 = vshrl.u32 %v327, 16
  %v438 = vrot.slane %v436, 7
  %v439 = vshll.u32 %v327, 16
  %v441 = vor.u32 %v438, %v439
  %v442 = vshrl.u32 %v330, 16
  %v444 = vrot.slane %v442, 7
  %v445 = vshll.u32 %v330, 16
  %v447 = vor.u32 %v444, %v445
  %v448 = vshrl.u32 %v333, 16
  %v450 = vrot.slane %v448, 7
  %v451 = vshll.u32 %v333, 16
  %v453 = vor.u32 %v450, %v451
  %v454 = vshrl.u32 %v336, 16
  %v456 = vrot.slane %v454, 7
  %v457 = vshll.u32 %v336, 16
  %v459 = vor.u32 %v456, %v457
  %v460 = vshrl.u32 %v339, 16
  %v462 = vrot.slane %v460, 7
  %v463 = vshll.u32 %v339, 16
  %v465 = vor.u32 %v462, %v463
  %v466 = vshrl.u32 %v342, 16
  %v468 = vrot.slane %v466, 7
  %v469 = vshll.u32 %v342, 16
  %v471 = vor.u32 %v468, %v469
  %v472 = vshrl.u32 %v345, 16
  %v474 = vrot.slane %v472, 7
  %v475 = vshll.u32 %v345, 16
  %v477 = vor.u32 %v474, %v475
  %v478 = vshrl.u32 %v348, 16
  %v480 = vrot.slane %v478, 7
  %v481 = vshll.u32 %v348, 16
  %v483 = vor.u32 %v480, %v481
  %v484 = vshrl.u32 %v351, 16
  %v486 = vrot.slane %v484, 7
  %v487 = vshll.u32 %v351, 16
  %v489 = vor.u32 %v486, %v487
  %v490 = vshrl.u32 %v354, 16
  %v492 = vrot.slane %v490, 7
  %v493 = vshll.u32 %v354, 16
  %v495 = vor.u32 %v492, %v493
  %v496 = vshrl.u32 %v357, 16
  %v498 = vrot.slane %v496, 7
  %v499 = vshll.u32 %v357, 16
  %v501 = vor.u32 %v498, %v499
  %v502 = vshrl.u32 %v360, 16
  %v504 = vrot.slane %v502, 7
  %v505 = vshll.u32 %v360, 16
  %v507 = vor.u32 %v504, %v505
  %v508 = vshrl.u32 %v363, 16
  %v510 = vrot.slane %v508, 7
  %v511 = vshll.u32 %v363, 16
  %v513 = vor.u32 %v510, %v511
  %v514 = vshrl.u32 %v366, 16
  %v516 = vrot.slane %v514, 7
  %v517 = vshll.u32 %v366, 16
  %v519 = vor.u32 %v516, %v517
  %v520 = vshrl.u32 %v369, 16
  %v522 = vrot.slane %v520, 7
  %v523 = vshll.u32 %v369, 16
  %v525 = vor.u32 %v522, %v523
  %v526 = vshrl.u32 %v372, 16
  %v528 = vrot.slane %v526, 7
  %v529 = vshll.u32 %v372, 16
  %v531 = vor.u32 %v528, %v529
  %v532 = vshrl.u32 %v375, 16
  %v534 = vrot.slane %v532, 7
  %v535 = vshll.u32 %v375, 16
  %v537 = vor.u32 %v534, %v535
  %v538 = vshrl.u32 %v378, 16
  %v540 = vrot.slane %v538, 7
  %v541 = vshll.u32 %v378, 16
  %v543 = vor.u32 %v540, %v541
  %v544 = vshrl.u32 %v381, 16
  %v546 = vrot.slane %v544, 7
  %v547 = vshll.u32 %v381, 16
  %v549 = vor.u32 %v546, %v547
  %v550 = vshrl.u32 %v384, 16
  %v552 = vrot.slane %v550, 7
  %v553 = vshll.u32 %v384, 16
  %v555 = vor.u32 %v552, %v553
  %v556 = vshrl.u32 %v387, 16
  %v558 = vrot.slane %v556, 7
  %v559 = vshll.u32 %v387, 16
  %v561 = vor.u32 %v558, %v559
  %v562 = vshrl.u32 %v390, 16
  %v564 = vrot.slane %v562, 7
  %v565 = vshll.u32 %v390, 16
  %v567 = vor.u32 %v564, %v565
  %v568 = vshrl.u32 %v393, 16
  %v570 = vrot.slane %v568, 7
  %v571 = vshll.u32 %v393, 16
  %v573 = vor.u32 %v570, %v571
  %v574 = vshrl.u32 %v396, 16
  %v576 = vrot.slane %v574, 7
  %v577 = vshll.u32 %v396, 16
  %v579 = vor.u32 %v576, %v577
  %v580 = vshrl.u32 %v399, 16
  %v582 = vrot.slane %v580, 7
  %v583 = vshll.u32 %v399, 16
  %v585 = vor.u32 %v582, %v583
  %v586 = vshrl.u32 %v402, 16
  %v588 = vrot.slane %v586, 7
  %v589 = vshll.u32 %v402, 16
  %v591 = vor.u32 %v588, %v589
  %v592 = vshrl.u32 %v405, 16
  %v594 = vrot.slane %v592, 7
  %v595 = vshll.u32 %v405, 16
  %v597 = vor.u32 %v594, %v595
  %vm662 = vcmask 1040384
  %vm663 = vsmask.f32 256
  %vm664 = vmand %vm662, %vm663
  %v665 = vsel %vm664, 0, %v411
  %v666 = vsel %vm664, 0, %v417
  %v667 = vsel %vm664, 0, %v423
  %v668 = vsel %vm664, 0, %v429
  %v669 = vsel %vm664, 0, %v435
  %v670 = vsel %vm664, 0, %v441
  %v671 = vsel %vm664, 0, %v447
  %v672 = vsel %vm664, 0, %v453
  %v673 = vsel %vm664, 0, %v459
  %v674 = vsel %vm664, 0, %v465
  %v675 = vsel %vm664, 0, %v471
  %v676 = vsel %vm664, 0, %v477
  %v677 = vsel %vm664, 0, %v483
  %v678 = vsel %vm664, 0, %v489
  %v679 = vsel %vm664, 0, %v495
  %v680 = vsel %vm664, 0, %v501
  %v681 = vsel %vm664, 0, %v507
  %v682 = vsel %vm664, 0, %v513
  %v683 = vsel %vm664, 0, %v519
  %v684 = vsel %vm664, 0, %v525
  %v685 = vsel %vm664, 0, %v531
  %v686 = vsel %vm664, 0, %v537
  %v687 = vsel %vm664, 0, %v543
  %v688 = vsel %vm664, 0, %v549
  %v689 = vsel %vm664, 0, %v555
  %v690 = vsel %vm664, 0, %v561
  %v691 = vsel %vm664, 0, %v567
  %v692 = vsel %vm664, 0, %v573
  %v693 = vsel %vm664, 0, %v579
  %v694 = vsel %vm664, 0, %v585
  %v695 = vsel %vm664, 0, %v591
  %v696 = vsel %vm664, 0, %v597
  %v697 = vsel %vm664, %v408, 0
  %v698 = vsel %vm664, %v414, 0
  %v699 = vsel %vm664, %v420, 0
  %v700 = vsel %vm664, %v426, 0
  %v701 = vsel %vm664, %v432, 0
  %v702 = vsel %vm664, %v438, 0
  %v703 = vsel %vm664, %v444, 0
  %v704 = vsel %vm664, %v450, 0
  %v705 = vsel %vm664, %v456, 0
  %v706 = vsel %vm664, %v462, 0
  %v707 = vsel %vm664, %v468, 0
  %v708 = vsel %vm664, %v474, 0
  %v709 = vsel %vm664, %v480, 0
  %v710 = vsel %vm664, %v486, 0
  %v711 = vsel %vm664, %v492, 0
  %v712 = vsel %vm664, %v498, 0
  %v713 = vsel %vm664, %v504, 0
  %v714 = vsel %vm664, %v510, 0
  %v715 = vsel %vm664, %v516, 0
  %v716 = vsel %vm664, %v522, 0
  %v717 = vsel %vm664, %v528, 0
  %v718 = vsel %vm664, %v534, 0
  %v719 = vsel %vm664, %v540, 0
  %v720 = vsel %vm664, %v546, 0
  %v721 = vsel %vm664, %v552, 0
  %v722 = vsel %vm664, %v558, 0
  %v723 = vsel %vm664, %v564, 0
  %v724 = vsel %vm664, %v570, 0
  %v725 = vsel %vm664, %v576, 0
  %v726 = vsel %vm664, %v582, 0
  %v727 = vsel %vm664, %v588, 0
  %v728 = vsel %vm664, %v594, 0
  %vm729 = vsmask.f32 7424
  %v731 = vshrl.u32 0, 16
  %v733 = vshll.u32 0, 16
  %v735 = vrot.slane %v733, 1
  %v736 = vor.u32 %v731, %v735
  %v737 = vsel %vm729, %v736, %v735
  %v739 = vshrl.u32 %v665, 16
  %v741 = vshll.u32 %v665, 16
  %v743 = vrot.slane %v741, 1
  %v744 = vor.u32 %v739, %v743
  %v746 = vshll.u32 %v697, 16
  %v748 = vrot.slane %v746, 1
  %v749 = vsel %vm729, %v744, %v748
  %v751 = vshrl.u32 %v666, 16
  %v753 = vshll.u32 %v666, 16
  %v755 = vrot.slane %v753, 1
  %v756 = vor.u32 %v751, %v755
  %v758 = vshll.u32 %v698, 16
  %v760 = vrot.slane %v758, 1
  %v761 = vsel %vm729, %v756, %v760
  %v763 = vshrl.u32 %v667, 16
  %v765 = vshll.u32 %v667, 16
  %v767 = vrot.slane %v765, 1
  %v768 = vor.u32 %v763, %v767
  %v770 = vshll.u32 %v699, 16
  %v772 = vrot.slane %v770, 1
  %v773 = vsel %vm729, %v768, %v772
  %v775 = vshrl.u32 %v668, 16
  %v777 = vshll.u32 %v668, 16
  %v779 = vrot.slane %v777, 1
  %v780 = vor.u32 %v775, %v779
  %v782 = vshll.u32 %v700, 16
  %v784 = vrot.slane %v782, 1
  %v785 = vsel %vm729, %v780, %v784
  %v787 = vshrl.u32 %v669, 16
  %v789 = vshll.u32 %v669, 16
  %v791 = vrot.slane %v789, 1
  %v792 = vor.u32 %v787, %v791
  %v794 = vshll.u32 %v701, 16
  %v796 = vrot.slane %v794, 1
  %v797 = vsel %vm729, %v792, %v796
  %v799 = vshrl.u32 %v670, 16
  %v801 = vshll.u32 %v670, 16
  %v803 = vrot.slane %v801, 1
  %v804 = vor.u32 %v799, %v803
  %v806 = vshll.u32 %v702, 16
  %v808 = vrot.slane %v806, 1
  %v809 = vsel %vm729, %v804, %v808
  %v811 = vshrl.u32 %v671, 16
  %v813 = vshll.u32 %v671, 16
  %v815 = vrot.slane %v813, 1
  %v816 = vor.u32 %v811, %v815
  %v818 = vshll.u32 %v703, 16
  %v820 = vrot.slane %v818, 1
  %v821 = vsel %vm729, %v816, %v820
  %v823 = vshrl.u32 %v672, 16
  %v825 = vshll.u32 %v672, 16
  %v827 = vrot.slane %v825, 1
  %v828 = vor.u32 %v823, %v827
  %v830 = vshll.u32 %v704, 16
  %v832 = vrot.slane %v830, 1
  %v833 = vsel %vm729, %v828, %v832
  %v835 = vshrl.u32 %v673, 16
  %v837 = vshll.u32 %v673, 16
  %v839 = vrot.slane %v837, 1
  %v840 = vor.u32 %v835, %v839
  %v842 = vshll.u32 %v705, 16
  %v844 = vrot.slane %v842, 1
  %v845 = vsel %vm729, %v840, %v844
  %v847 = vshrl.u32 %v674, 16
  %v849 = vshll.u32 %v674, 16
  %v851 = vrot.slane %v849, 1
  %v852 = vor.u32 %v847, %v851
  %v854 = vshll.u32 %v706, 16
  %v856 = vrot.slane %v854, 1
  %v857 = vsel %vm729, %v852, %v856
  %v859 = vshrl.u32 %v675, 16
  %v861 = vshll.u32 %v675, 16
  %v863 = vrot.slane %v861, 1
  %v864 = vor.u32 %v859, %v863
  %v866 = vshll.u32 %v707, 16
  %v868 = vrot.slane %v866, 1
  %v869 = vsel %vm729, %v864, %v868
  %v871 = vshrl.u32 %v676, 16
  %v873 = vshll.u32 %v676, 16
  %v875 = vrot.slane %v873, 1
  %v876 = vor.u32 %v871, %v875
  %v878 = vshll.u32 %v708, 16
  %v880 = vrot.slane %v878, 1
  %v881 = vsel %vm729, %v876, %v880
  %v883 = vshrl.u32 %v677, 16
  %v885 = vshll.u32 %v677, 16
  %v887 = vrot.slane %v885, 1
  %v888 = vor.u32 %v883, %v887
  %v890 = vshll.u32 %v709, 16
  %v892 = vrot.slane %v890, 1
  %v893 = vsel %vm729, %v888, %v892
  %v895 = vshrl.u32 %v678, 16
  %v897 = vshll.u32 %v678, 16
  %v899 = vrot.slane %v897, 1
  %v900 = vor.u32 %v895, %v899
  %v902 = vshll.u32 %v710, 16
  %v904 = vrot.slane %v902, 1
  %v905 = vsel %vm729, %v900, %v904
  %v907 = vshrl.u32 %v679, 16
  %v909 = vshll.u32 %v679, 16
  %v911 = vrot.slane %v909, 1
  %v912 = vor.u32 %v907, %v911
  %v914 = vshll.u32 %v711, 16
  %v916 = vrot.slane %v914, 1
  %v917 = vsel %vm729, %v912, %v916
  %v919 = vshrl.u32 %v681, 16
  %v921 = vshll.u32 %v681, 16
  %v923 = vrot.slane %v921, 1
  %v924 = vor.u32 %v919, %v923
  %v926 = vshll.u32 %v713, 16
  %v928 = vrot.slane %v926, 1
  %v929 = vsel %vm729, %v924, %v928
  %v931 = vshrl.u32 %v682, 16
  %v933 = vshll.u32 %v682, 16
  %v935 = vrot.slane %v933, 1
  %v936 = vor.u32 %v931, %v935
  %v938 = vshll.u32 %v714, 16
  %v940 = vrot.slane %v938, 1
  %v941 = vsel %vm729, %v936, %v940
  %v943 = vshrl.u32 %v683, 16
  %v945 = vshll.u32 %v683, 16
  %v947 = vrot.slane %v945, 1
  %v948 = vor.u32 %v943, %v947
  %v950 = vshll.u32 %v715, 16
  %v952 = vrot.slane %v950, 1
  %v953 = vsel %vm729, %v948, %v952
  %v955 = vshrl.u32 %v684, 16
  %v957 = vshll.u32 %v684, 16
  %v959 = vrot.slane %v957, 1
  %v960 = vor.u32 %v955, %v959
  %v962 = vshll.u32 %v716, 16
  %v964 = vrot.slane %v962, 1
  %v965 = vsel %vm729, %v960, %v964
  %v967 = vshrl.u32 %v685, 16
  %v969 = vshll.u32 %v685, 16
  %v971 = vrot.slane %v969, 1
  %v972 = vor.u32 %v967, %v971
  %v974 = vshll.u32 %v717, 16
  %v976 = vrot.slane %v974, 1
  %v977 = vsel %vm729, %v972, %v976
  %v979 = vshrl.u32 %v686, 16
  %v981 = vshll.u32 %v686, 16
  %v983 = vrot.slane %v981, 1
  %v984 = vor.u32 %v979, %v983
  %v986 = vshll.u32 %v718, 16
  %v988 = vrot.slane %v986, 1
  %v989 = vsel %vm729, %v984, %v988
  %v991 = vshrl.u32 %v687, 16
  %v993 = vshll.u32 %v687, 16
  %v995 = vrot.slane %v993, 1
  %v996 = vor.u32 %v991, %v995
  %v998 = vshll.u32 %v719, 16
  %v1000 = vrot.slane %v998, 1
  %v1001 = vsel %vm729, %v996, %v1000
  %v1003 = vshrl.u32 %v688, 16
  %v1005 = vshll.u32 %v688, 16
  %v1007 = vrot.slane %v1005, 1
  %v1008 = vor.u32 %v1003, %v1007
  %v1010 = vshll.u32 %v720, 16
  %v1012 = vrot.slane %v1010, 1
  %v1013 = vsel %vm729, %v1008, %v1012
  %v1015 = vshrl.u32 %v689, 16
  %v1017 = vshll.u32 %v689, 16
  %v1019 = vrot.slane %v1017, 1
  %v1020 = vor.u32 %v1015, %v1019
  %v1022 = vshll.u32 %v721, 16
  %v1024 = vrot.slane %v1022, 1
  %v1025 = vsel %vm729, %v1020, %v1024
  %v1027 = vshrl.u32 %v690, 16
  %v1029 = vshll.u32 %v690, 16
  %v1031 = vrot.slane %v1029, 1
  %v1032 = vor.u32 %v1027, %v1031
  %v1034 = vshll.u32 %v722, 16
  %v1036 = vrot.slane %v1034, 1
  %v1037 = vsel %vm729, %v1032, %v1036
  %v1039 = vshrl.u32 %v691, 16
  %v1041 = vshll.u32 %v691, 16
  %v1043 = vrot.slane %v1041, 1
  %v1044 = vor.u32 %v1039, %v1043
  %v1046 = vshll.u32 %v723, 16
  %v1048 = vrot.slane %v1046, 1
  %v1049 = vsel %vm729, %v1044, %v1048
  %v1051 = vshrl.u32 %v692, 16
  %v1053 = vshll.u32 %v692, 16
  %v1055 = vrot.slane %v1053, 1
  %v1056 = vor.u32 %v1051, %v1055
  %v1058 = vshll.u32 %v724, 16
  %v1060 = vrot.slane %v1058, 1
  %v1061 = vsel %vm729, %v1056, %v1060
  %v1063 = vshrl.u32 %v693, 16
  %v1065 = vshll.u32 %v693, 16
  %v1067 = vrot.slane %v1065, 1
  %v1068 = vor.u32 %v1063, %v1067
  %v1070 = vshll.u32 %v725, 16
  %v1072 = vrot.slane %v1070, 1
  %v1073 = vsel %vm729, %v1068, %v1072
  %v1075 = vshrl.u32 %v694, 16
  %v1077 = vshll.u32 %v694, 16
  %v1079 = vrot.slane %v1077, 1
  %v1080 = vor.u32 %v1075, %v1079
  %v1082 = vshll.u32 %v726, 16
  %v1084 = vrot.slane %v1082, 1
  %v1085 = vsel %vm729, %v1080, %v1084
  %v1087 = vshrl.u32 %v695, 16
  %v1089 = vshll.u32 %v695, 16
  %v1091 = vrot.slane %v1089, 1
  %v1092 = vor.u32 %v1087, %v1091
  %v1094 = vshll.u32 %v727, 16
  %v1096 = vrot.slane %v1094, 1
  %v1097 = vsel %vm729, %v1092, %v1096
  %1098 = vrot.lane.b32.xlu0 %v737, 12
  %v1099 = vpop.permute.xlu0 %1098
  %1100 = vrot.lane.b32.xlu0 %v749, 12
  %v1101 = vpop.permute.xlu0 %1100
  %1102 = vrot.lane.b32.xlu0 %v761, 12
  %v1103 = vpop.permute.xlu0 %1102
  %1104 = vrot.lane.b32.xlu0 %v773, 12
  %v1105 = vpop.permute.xlu0 %1104
  %1106 = vrot.lane.b32.xlu0 %v785, 12
  %v1107 = vpop.permute.xlu0 %1106
  %1108 = vrot.lane.b32.xlu0 %v797, 12
  %v1109 = vpop.permute.xlu0 %1108
  %1110 = vrot.lane.b32.xlu0 %v809, 12
  %v1111 = vpop.permute.xlu0 %1110
  %1112 = vrot.lane.b32.xlu0 %v821, 12
  %v1113 = vpop.permute.xlu0 %1112
  %1114 = vrot.lane.b32.xlu0 %v833, 12
  %v1115 = vpop.permute.xlu0 %1114
  %1116 = vrot.lane.b32.xlu0 %v845, 12
  %v1117 = vpop.permute.xlu0 %1116
  %1118 = vrot.lane.b32.xlu0 %v857, 12
  %v1119 = vpop.permute.xlu0 %1118
  %1120 = vrot.lane.b32.xlu0 %v869, 12
  %v1121 = vpop.permute.xlu0 %1120
  %1122 = vrot.lane.b32.xlu0 %v881, 12
  %v1123 = vpop.permute.xlu0 %1122
  %1124 = vrot.lane.b32.xlu0 %v893, 12
  %v1125 = vpop.permute.xlu0 %1124
  %1126 = vrot.lane.b32.xlu0 %v905, 12
  %v1127 = vpop.permute.xlu0 %1126
  %1128 = vrot.lane.b32.xlu0 %v917, 12
  %v1129 = vpop.permute.xlu0 %1128
  %1130 = vrot.lane.b32.xlu0 %v929, 12
  %v1131 = vpop.permute.xlu0 %1130
  %1132 = vrot.lane.b32.xlu0 %v941, 12
  %v1133 = vpop.permute.xlu0 %1132
  %1134 = vrot.lane.b32.xlu0 %v953, 12
  %v1135 = vpop.permute.xlu0 %1134
  %1136 = vrot.lane.b32.xlu0 %v965, 12
  %v1137 = vpop.permute.xlu0 %1136
  %1138 = vrot.lane.b32.xlu0 %v977, 12
  %v1139 = vpop.permute.xlu0 %1138
  %1140 = vrot.lane.b32.xlu0 %v989, 12
  %v1141 = vpop.permute.xlu0 %1140
  %1142 = vrot.lane.b32.xlu0 %v1001, 12
  %v1143 = vpop.permute.xlu0 %1142
  %1144 = vrot.lane.b32.xlu0 %v1013, 12
  %v1145 = vpop.permute.xlu0 %1144
  %1146 = vrot.lane.b32.xlu0 %v1025, 12
  %v1147 = vpop.permute.xlu0 %1146
  %1148 = vrot.lane.b32.xlu0 %v1037, 12
  %v1149 = vpop.permute.xlu0 %1148
  %1150 = vrot.lane.b32.xlu0 %v1049, 12
  %v1151 = vpop.permute.xlu0 %1150
  %1152 = vrot.lane.b32.xlu0 %v1061, 12
  %v1153 = vpop.permute.xlu0 %1152
  %1154 = vrot.lane.b32.xlu0 %v1073, 12
  %v1155 = vpop.permute.xlu0 %1154
  %1156 = vrot.lane.b32.xlu0 %v1085, 12
  %v1157 = vpop.permute.xlu0 %1156
  %1158 = vrot.lane.b32.xlu0 %v1097, 12
  %v1159 = vpop.permute.xlu0 %1158
  %vm1221 = vcmask 1046528
  %v1222 = vrot.slane 0, 1
  %v1223 = vsel %vm1221, %v1222, %v1222
  %v1224 = vrot.slane %v665, 1
  %v1225 = vrot.slane %v697, 1
  %v1226 = vsel %vm1221, %v1224, %v1225
  %v1227 = vrot.slane %v666, 1
  %v1228 = vrot.slane %v698, 1
  %v1229 = vsel %vm1221, %v1227, %v1228
  %v1230 = vrot.slane %v667, 1
  %v1231 = vrot.slane %v699, 1
  %v1232 = vsel %vm1221, %v1230, %v1231
  %v1233 = vrot.slane %v668, 1
  %v1234 = vrot.slane %v700, 1
  %v1235 = vsel %vm1221, %v1233, %v1234
  %v1236 = vrot.slane %v669, 1
  %v1237 = vrot.slane %v701, 1
  %v1238 = vsel %vm1221, %v1236, %v1237
  %v1239 = vrot.slane %v670, 1
  %v1240 = vrot.slane %v702, 1
  %v1241 = vsel %vm1221, %v1239, %v1240
  %v1242 = vrot.slane %v671, 1
  %v1243 = vrot.slane %v703, 1
  %v1244 = vsel %vm1221, %v1242, %v1243
  %v1245 = vrot.slane %v672, 1
  %v1246 = vrot.slane %v704, 1
  %v1247 = vsel %vm1221, %v1245, %v1246
  %v1248 = vrot.slane %v673, 1
  %v1249 = vrot.slane %v705, 1
  %v1250 = vsel %vm1221, %v1248, %v1249
  %v1251 = vrot.slane %v674, 1
  %v1252 = vrot.slane %v706, 1
  %v1253 = vsel %vm1221, %v1251, %v1252
  %v1254 = vrot.slane %v675, 1
  %v1255 = vrot.slane %v707, 1
  %v1256 = vsel %vm1221, %v1254, %v1255
  %v1257 = vrot.slane %v676, 1
  %v1258 = vrot.slane %v708, 1
  %v1259 = vsel %vm1221, %v1257, %v1258
  %v1260 = vrot.slane %v677, 1
  %v1261 = vrot.slane %v709, 1
  %v1262 = vsel %vm1221, %v1260, %v1261
  %v1263 = vrot.slane %v678, 1
  %v1264 = vrot.slane %v710, 1
  %v1265 = vsel %vm1221, %v1263, %v1264
  %v1266 = vrot.slane %v679, 1
  %v1267 = vrot.slane %v711, 1
  %v1268 = vsel %vm1221, %v1266, %v1267
  %v1269 = vrot.slane %v681, 1
  %v1270 = vrot.slane %v713, 1
  %v1271 = vsel %vm1221, %v1269, %v1270
  %v1272 = vrot.slane %v682, 1
  %v1273 = vrot.slane %v714, 1
  %v1274 = vsel %vm1221, %v1272, %v1273
  %v1275 = vrot.slane %v683, 1
  %v1276 = vrot.slane %v715, 1
  %v1277 = vsel %vm1221, %v1275, %v1276
  %v1278 = vrot.slane %v684, 1
  %v1279 = vrot.slane %v716, 1
  %v1280 = vsel %vm1221, %v1278, %v1279
  %v1281 = vrot.slane %v685, 1
  %v1282 = vrot.slane %v717, 1
  %v1283 = vsel %vm1221, %v1281, %v1282
  %v1284 = vrot.slane %v686, 1
  %v1285 = vrot.slane %v718, 1
  %v1286 = vsel %vm1221, %v1284, %v1285
  %v1287 = vrot.slane %v687, 1
  %v1288 = vrot.slane %v719, 1
  %v1289 = vsel %vm1221, %v1287, %v1288
  %v1290 = vrot.slane %v688, 1
  %v1291 = vrot.slane %v720, 1
  %v1292 = vsel %vm1221, %v1290, %v1291
  %v1293 = vrot.slane %v689, 1
  %v1294 = vrot.slane %v721, 1
  %v1295 = vsel %vm1221, %v1293, %v1294
  %v1296 = vrot.slane %v690, 1
  %v1297 = vrot.slane %v722, 1
  %v1298 = vsel %vm1221, %v1296, %v1297
  %v1299 = vrot.slane %v691, 1
  %v1300 = vrot.slane %v723, 1
  %v1301 = vsel %vm1221, %v1299, %v1300
  %v1302 = vrot.slane %v692, 1
  %v1303 = vrot.slane %v724, 1
  %v1304 = vsel %vm1221, %v1302, %v1303
  %v1305 = vrot.slane %v693, 1
  %v1306 = vrot.slane %v725, 1
  %v1307 = vsel %vm1221, %v1305, %v1306
  %v1308 = vrot.slane %v694, 1
  %v1309 = vrot.slane %v726, 1
  %v1310 = vsel %vm1221, %v1308, %v1309
  %v1311 = vrot.slane %v695, 1
  %v1312 = vrot.slane %v727, 1
  %v1313 = vsel %vm1221, %v1311, %v1312
  %1314 = vrot.lane.b32.xlu0 %v1223, 24
  %v1315 = vpop.permute.xlu0 %1314
  %1316 = vrot.lane.b32.xlu0 %v1226, 24
  %v1317 = vpop.permute.xlu0 %1316
  %1318 = vrot.lane.b32.xlu0 %v1229, 24
  %v1319 = vpop.permute.xlu0 %1318
  %1320 = vrot.lane.b32.xlu0 %v1232, 24
  %v1321 = vpop.permute.xlu0 %1320
  %1322 = vrot.lane.b32.xlu0 %v1235, 24
  %v1323 = vpop.permute.xlu0 %1322
  %1324 = vrot.lane.b32.xlu0 %v1238, 24
  %v1325 = vpop.permute.xlu0 %1324
  %1326 = vrot.lane.b32.xlu0 %v1241, 24
  %v1327 = vpop.permute.xlu0 %1326
  %1328 = vrot.lane.b32.xlu0 %v1244, 24
  %v1329 = vpop.permute.xlu0 %1328
  %1330 = vrot.lane.b32.xlu0 %v1247, 24
  %v1331 = vpop.permute.xlu0 %1330
  %1332 = vrot.lane.b32.xlu0 %v1250, 24
  %v1333 = vpop.permute.xlu0 %1332
  %1334 = vrot.lane.b32.xlu0 %v1253, 24
  %v1335 = vpop.permute.xlu0 %1334
  %1336 = vrot.lane.b32.xlu0 %v1256, 24
  %v1337 = vpop.permute.xlu0 %1336
  %1338 = vrot.lane.b32.xlu0 %v1259, 24
  %v1339 = vpop.permute.xlu0 %1338
  %1340 = vrot.lane.b32.xlu0 %v1262, 24
  %v1341 = vpop.permute.xlu0 %1340
  %1342 = vrot.lane.b32.xlu0 %v1265, 24
  %v1343 = vpop.permute.xlu0 %1342
  %1344 = vrot.lane.b32.xlu0 %v1268, 24
  %v1345 = vpop.permute.xlu0 %1344
  %1346 = vrot.lane.b32.xlu0 %v1271, 24
  %v1347 = vpop.permute.xlu0 %1346
  %1348 = vrot.lane.b32.xlu0 %v1274, 24
  %v1349 = vpop.permute.xlu0 %1348
  %1350 = vrot.lane.b32.xlu0 %v1277, 24
  %v1351 = vpop.permute.xlu0 %1350
  %1352 = vrot.lane.b32.xlu0 %v1280, 24
  %v1353 = vpop.permute.xlu0 %1352
  %1354 = vrot.lane.b32.xlu0 %v1283, 24
  %v1355 = vpop.permute.xlu0 %1354
  %1356 = vrot.lane.b32.xlu0 %v1286, 24
  %v1357 = vpop.permute.xlu0 %1356
  %1358 = vrot.lane.b32.xlu0 %v1289, 24
  %v1359 = vpop.permute.xlu0 %1358
  %1360 = vrot.lane.b32.xlu0 %v1292, 24
  %v1361 = vpop.permute.xlu0 %1360
  %1362 = vrot.lane.b32.xlu0 %v1295, 24
  %v1363 = vpop.permute.xlu0 %1362
  %1364 = vrot.lane.b32.xlu0 %v1298, 24
  %v1365 = vpop.permute.xlu0 %1364
  %1366 = vrot.lane.b32.xlu0 %v1301, 24
  %v1367 = vpop.permute.xlu0 %1366
  %1368 = vrot.lane.b32.xlu0 %v1304, 24
  %v1369 = vpop.permute.xlu0 %1368
  %1370 = vrot.lane.b32.xlu0 %v1307, 24
  %v1371 = vpop.permute.xlu0 %1370
  %1372 = vrot.lane.b32.xlu0 %v1310, 24
  %v1373 = vpop.permute.xlu0 %1372
  %1374 = vrot.lane.b32.xlu0 %v1313, 24
  %v1375 = vpop.permute.xlu0 %1374
  %1378 = vrot.lane.b32.xlu0 %v665, 36
  %v1379 = vpop.permute.xlu0 %1378
  %1380 = vrot.lane.b32.xlu0 %v666, 36
  %v1381 = vpop.permute.xlu0 %1380
  %1382 = vrot.lane.b32.xlu0 %v667, 36
  %v1383 = vpop.permute.xlu0 %1382
  %1384 = vrot.lane.b32.xlu0 %v668, 36
  %v1385 = vpop.permute.xlu0 %1384
  %1386 = vrot.lane.b32.xlu0 %v669, 36
  %v1387 = vpop.permute.xlu0 %1386
  %1388 = vrot.lane.b32.xlu0 %v670, 36
  %v1389 = vpop.permute.xlu0 %1388
  %1390 = vrot.lane.b32.xlu0 %v671, 36
  %v1391 = vpop.permute.xlu0 %1390
  %1392 = vrot.lane.b32.xlu0 %v672, 36
  %v1393 = vpop.permute.xlu0 %1392
  %1394 = vrot.lane.b32.xlu0 %v673, 36
  %v1395 = vpop.permute.xlu0 %1394
  %1396 = vrot.lane.b32.xlu0 %v674, 36
  %v1397 = vpop.permute.xlu0 %1396
  %1398 = vrot.lane.b32.xlu0 %v675, 36
  %v1399 = vpop.permute.xlu0 %1398
  %1400 = vrot.lane.b32.xlu0 %v676, 36
  %v1401 = vpop.permute.xlu0 %1400
  %1402 = vrot.lane.b32.xlu0 %v677, 36
  %v1403 = vpop.permute.xlu0 %1402
  %1404 = vrot.lane.b32.xlu0 %v678, 36
  %v1405 = vpop.permute.xlu0 %1404
  %1406 = vrot.lane.b32.xlu0 %v679, 36
  %v1407 = vpop.permute.xlu0 %1406
  %1408 = vrot.lane.b32.xlu0 %v680, 36
  %v1409 = vpop.permute.xlu0 %1408
  %1410 = vrot.lane.b32.xlu0 %v681, 36
  %v1411 = vpop.permute.xlu0 %1410
  %1412 = vrot.lane.b32.xlu0 %v682, 36
  %v1413 = vpop.permute.xlu0 %1412
  %1414 = vrot.lane.b32.xlu0 %v683, 36
  %v1415 = vpop.permute.xlu0 %1414
  %1416 = vrot.lane.b32.xlu0 %v684, 36
  %v1417 = vpop.permute.xlu0 %1416
  %1418 = vrot.lane.b32.xlu0 %v685, 36
  %v1419 = vpop.permute.xlu0 %1418
  %1420 = vrot.lane.b32.xlu0 %v686, 36
  %v1421 = vpop.permute.xlu0 %1420
  %1422 = vrot.lane.b32.xlu0 %v687, 36
  %v1423 = vpop.permute.xlu0 %1422
  %1424 = vrot.lane.b32.xlu0 %v688, 36
  %v1425 = vpop.permute.xlu0 %1424
  %1426 = vrot.lane.b32.xlu0 %v689, 36
  %v1427 = vpop.permute.xlu0 %1426
  %1428 = vrot.lane.b32.xlu0 %v690, 36
  %v1429 = vpop.permute.xlu0 %1428
  %1430 = vrot.lane.b32.xlu0 %v691, 36
  %v1431 = vpop.permute.xlu0 %1430
  %1432 = vrot.lane.b32.xlu0 %v692, 36
  %v1433 = vpop.permute.xlu0 %1432
  %1434 = vrot.lane.b32.xlu0 %v693, 36
  %v1435 = vpop.permute.xlu0 %1434
  %1436 = vrot.lane.b32.xlu0 %v694, 36
  %v1437 = vpop.permute.xlu0 %1436
  %1438 = vrot.lane.b32.xlu0 %v695, 36
  %v1439 = vpop.permute.xlu0 %1438
  %1440 = vrot.lane.b32.xlu0 %v696, 36
  %v1441 = vpop.permute.xlu0 %1440
  %v1443 = vshrl.u32 %v680, 16
  %v1445 = vshll.u32 %v680, 16
  %v1447 = vrot.slane %v1445, 1
  %v1448 = vor.u32 %v1443, %v1447
  %v1450 = vshll.u32 %v712, 16
  %v1452 = vrot.slane %v1450, 1
  %v1453 = vsel %vm729, %v1448, %v1452
  %v1455 = vshrl.u32 %v696, 16
  %v1457 = vshll.u32 %v696, 16
  %v1459 = vrot.slane %v1457, 1
  %v1460 = vor.u32 %v1455, %v1459
  %v1462 = vshll.u32 %v728, 16
  %v1464 = vrot.slane %v1462, 1
  %v1465 = vsel %vm729, %v1460, %v1464
  %1466 = vrot.lane.b32.xlu0 %v749, 48
  %v1467 = vpop.permute.xlu0 %1466
  %1468 = vrot.lane.b32.xlu0 %v761, 48
  %v1469 = vpop.permute.xlu0 %1468
  %1470 = vrot.lane.b32.xlu0 %v773, 48
  %v1471 = vpop.permute.xlu0 %1470
  %1472 = vrot.lane.b32.xlu0 %v785, 48
  %v1473 = vpop.permute.xlu0 %1472
  %1474 = vrot.lane.b32.xlu0 %v797, 48
  %v1475 = vpop.permute.xlu0 %1474
  %1476 = vrot.lane.b32.xlu0 %v809, 48
  %v1477 = vpop.permute.xlu0 %1476
  %1478 = vrot.lane.b32.xlu0 %v821, 48
  %v1479 = vpop.permute.xlu0 %1478
  %1480 = vrot.lane.b32.xlu0 %v833, 48
  %v1481 = vpop.permute.xlu0 %1480
  %1482 = vrot.lane.b32.xlu0 %v845, 48
  %v1483 = vpop.permute.xlu0 %1482
  %1484 = vrot.lane.b32.xlu0 %v857, 48
  %v1485 = vpop.permute.xlu0 %1484
  %1486 = vrot.lane.b32.xlu0 %v869, 48
  %v1487 = vpop.permute.xlu0 %1486
  %1488 = vrot.lane.b32.xlu0 %v881, 48
  %v1489 = vpop.permute.xlu0 %1488
  %1490 = vrot.lane.b32.xlu0 %v893, 48
  %v1491 = vpop.permute.xlu0 %1490
  %1492 = vrot.lane.b32.xlu0 %v905, 48
  %v1493 = vpop.permute.xlu0 %1492
  %1494 = vrot.lane.b32.xlu0 %v917, 48
  %v1495 = vpop.permute.xlu0 %1494
  %1496 = vrot.lane.b32.xlu0 %v1453, 48
  %v1497 = vpop.permute.xlu0 %1496
  %1498 = vrot.lane.b32.xlu0 %v929, 48
  %v1499 = vpop.permute.xlu0 %1498
  %1500 = vrot.lane.b32.xlu0 %v941, 48
  %v1501 = vpop.permute.xlu0 %1500
  %1502 = vrot.lane.b32.xlu0 %v953, 48
  %v1503 = vpop.permute.xlu0 %1502
  %1504 = vrot.lane.b32.xlu0 %v965, 48
  %v1505 = vpop.permute.xlu0 %1504
  %1506 = vrot.lane.b32.xlu0 %v977, 48
  %v1507 = vpop.permute.xlu0 %1506
  %1508 = vrot.lane.b32.xlu0 %v989, 48
  %v1509 = vpop.permute.xlu0 %1508
  %1510 = vrot.lane.b32.xlu0 %v1001, 48
  %v1511 = vpop.permute.xlu0 %1510
  %1512 = vrot.lane.b32.xlu0 %v1013, 48
  %v1513 = vpop.permute.xlu0 %1512
  %1514 = vrot.lane.b32.xlu0 %v1025, 48
  %v1515 = vpop.permute.xlu0 %1514
  %1516 = vrot.lane.b32.xlu0 %v1037, 48
  %v1517 = vpop.permute.xlu0 %1516
  %1518 = vrot.lane.b32.xlu0 %v1049, 48
  %v1519 = vpop.permute.xlu0 %1518
  %1520 = vrot.lane.b32.xlu0 %v1061, 48
  %v1521 = vpop.permute.xlu0 %1520
  %1522 = vrot.lane.b32.xlu0 %v1073, 48
  %v1523 = vpop.permute.xlu0 %1522
  %1524 = vrot.lane.b32.xlu0 %v1085, 48
  %v1525 = vpop.permute.xlu0 %1524
  %1526 = vrot.lane.b32.xlu0 %v1097, 48
  %v1527 = vpop.permute.xlu0 %1526
  %1528 = vrot.lane.b32.xlu0 %v1465, 48
  %v1529 = vpop.permute.xlu0 %1528
  %v1532 = vrot.slane %v680, 1
  %v1533 = vrot.slane %v712, 1
  %v1534 = vsel %vm1221, %v1532, %v1533
  %v1535 = vrot.slane %v696, 1
  %v1536 = vrot.slane %v728, 1
  %v1537 = vsel %vm1221, %v1535, %v1536
  %1538 = vrot.lane.b32.xlu0 %v1226, 60
  %v1539 = vpop.permute.xlu0 %1538
  %1540 = vrot.lane.b32.xlu0 %v1229, 60
  %v1541 = vpop.permute.xlu0 %1540
  %1542 = vrot.lane.b32.xlu0 %v1232, 60
  %v1543 = vpop.permute.xlu0 %1542
  %1544 = vrot.lane.b32.xlu0 %v1235, 60
  %v1545 = vpop.permute.xlu0 %1544
  %1546 = vrot.lane.b32.xlu0 %v1238, 60
  %v1547 = vpop.permute.xlu0 %1546
  %1548 = vrot.lane.b32.xlu0 %v1241, 60
  %v1549 = vpop.permute.xlu0 %1548
  %1550 = vrot.lane.b32.xlu0 %v1244, 60
  %v1551 = vpop.permute.xlu0 %1550
  %1552 = vrot.lane.b32.xlu0 %v1247, 60
  %v1553 = vpop.permute.xlu0 %1552
  %1554 = vrot.lane.b32.xlu0 %v1250, 60
  %v1555 = vpop.permute.xlu0 %1554
  %1556 = vrot.lane.b32.xlu0 %v1253, 60
  %v1557 = vpop.permute.xlu0 %1556
  %1558 = vrot.lane.b32.xlu0 %v1256, 60
  %v1559 = vpop.permute.xlu0 %1558
  %1560 = vrot.lane.b32.xlu0 %v1259, 60
  %v1561 = vpop.permute.xlu0 %1560
  %1562 = vrot.lane.b32.xlu0 %v1262, 60
  %v1563 = vpop.permute.xlu0 %1562
  %1564 = vrot.lane.b32.xlu0 %v1265, 60
  %v1565 = vpop.permute.xlu0 %1564
  %1566 = vrot.lane.b32.xlu0 %v1268, 60
  %v1567 = vpop.permute.xlu0 %1566
  %1568 = vrot.lane.b32.xlu0 %v1534, 60
  %v1569 = vpop.permute.xlu0 %1568
  %1570 = vrot.lane.b32.xlu0 %v1271, 60
  %v1571 = vpop.permute.xlu0 %1570
  %1572 = vrot.lane.b32.xlu0 %v1274, 60
  %v1573 = vpop.permute.xlu0 %1572
  %1574 = vrot.lane.b32.xlu0 %v1277, 60
  %v1575 = vpop.permute.xlu0 %1574
  %1576 = vrot.lane.b32.xlu0 %v1280, 60
  %v1577 = vpop.permute.xlu0 %1576
  %1578 = vrot.lane.b32.xlu0 %v1283, 60
  %v1579 = vpop.permute.xlu0 %1578
  %1580 = vrot.lane.b32.xlu0 %v1286, 60
  %v1581 = vpop.permute.xlu0 %1580
  %1582 = vrot.lane.b32.xlu0 %v1289, 60
  %v1583 = vpop.permute.xlu0 %1582
  %1584 = vrot.lane.b32.xlu0 %v1292, 60
  %v1585 = vpop.permute.xlu0 %1584
  %1586 = vrot.lane.b32.xlu0 %v1295, 60
  %v1587 = vpop.permute.xlu0 %1586
  %1588 = vrot.lane.b32.xlu0 %v1298, 60
  %v1589 = vpop.permute.xlu0 %1588
  %1590 = vrot.lane.b32.xlu0 %v1301, 60
  %v1591 = vpop.permute.xlu0 %1590
  %1592 = vrot.lane.b32.xlu0 %v1304, 60
  %v1593 = vpop.permute.xlu0 %1592
  %1594 = vrot.lane.b32.xlu0 %v1307, 60
  %v1595 = vpop.permute.xlu0 %1594
  %1596 = vrot.lane.b32.xlu0 %v1310, 60
  %v1597 = vpop.permute.xlu0 %1596
  %1598 = vrot.lane.b32.xlu0 %v1313, 60
  %v1599 = vpop.permute.xlu0 %1598
  %1600 = vrot.lane.b32.xlu0 %v1537, 60
  %v1601 = vpop.permute.xlu0 %1600
  %1602 = vrot.lane.b32.xlu0 %v666, 72
  %v1603 = vpop.permute.xlu0 %1602
  %1604 = vrot.lane.b32.xlu0 %v667, 72
  %v1605 = vpop.permute.xlu0 %1604
  %1606 = vrot.lane.b32.xlu0 %v668, 72
  %v1607 = vpop.permute.xlu0 %1606
  %1608 = vrot.lane.b32.xlu0 %v669, 72
  %v1609 = vpop.permute.xlu0 %1608
  %1610 = vrot.lane.b32.xlu0 %v670, 72
  %v1611 = vpop.permute.xlu0 %1610
  %1612 = vrot.lane.b32.xlu0 %v671, 72
  %v1613 = vpop.permute.xlu0 %1612
  %1614 = vrot.lane.b32.xlu0 %v672, 72
  %v1615 = vpop.permute.xlu0 %1614
  %1616 = vrot.lane.b32.xlu0 %v673, 72
  %v1617 = vpop.permute.xlu0 %1616
  %1618 = vrot.lane.b32.xlu0 %v674, 72
  %v1619 = vpop.permute.xlu0 %1618
  %1620 = vrot.lane.b32.xlu0 %v675, 72
  %v1621 = vpop.permute.xlu0 %1620
  %1622 = vrot.lane.b32.xlu0 %v676, 72
  %v1623 = vpop.permute.xlu0 %1622
  %1624 = vrot.lane.b32.xlu0 %v677, 72
  %v1625 = vpop.permute.xlu0 %1624
  %1626 = vrot.lane.b32.xlu0 %v678, 72
  %v1627 = vpop.permute.xlu0 %1626
  %1628 = vrot.lane.b32.xlu0 %v679, 72
  %v1629 = vpop.permute.xlu0 %1628
  %1630 = vrot.lane.b32.xlu0 %v680, 72
  %v1631 = vpop.permute.xlu0 %1630
  %1632 = vrot.lane.b32.xlu0 0, 72
  %v1633 = vpop.permute.xlu0 %1632
  %1634 = vrot.lane.b32.xlu0 %v682, 72
  %v1635 = vpop.permute.xlu0 %1634
  %1636 = vrot.lane.b32.xlu0 %v683, 72
  %v1637 = vpop.permute.xlu0 %1636
  %1638 = vrot.lane.b32.xlu0 %v684, 72
  %v1639 = vpop.permute.xlu0 %1638
  %1640 = vrot.lane.b32.xlu0 %v685, 72
  %v1641 = vpop.permute.xlu0 %1640
  %1642 = vrot.lane.b32.xlu0 %v686, 72
  %v1643 = vpop.permute.xlu0 %1642
  %1644 = vrot.lane.b32.xlu0 %v687, 72
  %v1645 = vpop.permute.xlu0 %1644
  %1646 = vrot.lane.b32.xlu0 %v688, 72
  %v1647 = vpop.permute.xlu0 %1646
  %1648 = vrot.lane.b32.xlu0 %v689, 72
  %v1649 = vpop.permute.xlu0 %1648
  %1650 = vrot.lane.b32.xlu0 %v690, 72
  %v1651 = vpop.permute.xlu0 %1650
  %1652 = vrot.lane.b32.xlu0 %v691, 72
  %v1653 = vpop.permute.xlu0 %1652
  %1654 = vrot.lane.b32.xlu0 %v692, 72
  %v1655 = vpop.permute.xlu0 %1654
  %1656 = vrot.lane.b32.xlu0 %v693, 72
  %v1657 = vpop.permute.xlu0 %1656
  %1658 = vrot.lane.b32.xlu0 %v694, 72
  %v1659 = vpop.permute.xlu0 %1658
  %1660 = vrot.lane.b32.xlu0 %v695, 72
  %v1661 = vpop.permute.xlu0 %1660
  %1662 = vrot.lane.b32.xlu0 %v696, 72
  %v1663 = vpop.permute.xlu0 %1662
  %1664 = vrot.lane.b32.xlu0 %v761, 84
  %v1665 = vpop.permute.xlu0 %1664
  %1666 = vrot.lane.b32.xlu0 %v773, 84
  %v1667 = vpop.permute.xlu0 %1666
  %1668 = vrot.lane.b32.xlu0 %v785, 84
  %v1669 = vpop.permute.xlu0 %1668
  %1670 = vrot.lane.b32.xlu0 %v797, 84
  %v1671 = vpop.permute.xlu0 %1670
  %1672 = vrot.lane.b32.xlu0 %v809, 84
  %v1673 = vpop.permute.xlu0 %1672
  %1674 = vrot.lane.b32.xlu0 %v821, 84
  %v1675 = vpop.permute.xlu0 %1674
  %1676 = vrot.lane.b32.xlu0 %v833, 84
  %v1677 = vpop.permute.xlu0 %1676
  %1678 = vrot.lane.b32.xlu0 %v845, 84
  %v1679 = vpop.permute.xlu0 %1678
  %1680 = vrot.lane.b32.xlu0 %v857, 84
  %v1681 = vpop.permute.xlu0 %1680
  %1682 = vrot.lane.b32.xlu0 %v869, 84
  %v1683 = vpop.permute.xlu0 %1682
  %1684 = vrot.lane.b32.xlu0 %v881, 84
  %v1685 = vpop.permute.xlu0 %1684
  %1686 = vrot.lane.b32.xlu0 %v893, 84
  %v1687 = vpop.permute.xlu0 %1686
  %1688 = vrot.lane.b32.xlu0 %v905, 84
  %v1689 = vpop.permute.xlu0 %1688
  %1690 = vrot.lane.b32.xlu0 %v917, 84
  %v1691 = vpop.permute.xlu0 %1690
  %1692 = vrot.lane.b32.xlu0 %v1453, 84
  %v1693 = vpop.permute.xlu0 %1692
  %1694 = vrot.lane.b32.xlu0 %v737, 84
  %v1695 = vpop.permute.xlu0 %1694
  %1696 = vrot.lane.b32.xlu0 %v941, 84
  %v1697 = vpop.permute.xlu0 %1696
  %1698 = vrot.lane.b32.xlu0 %v953, 84
  %v1699 = vpop.permute.xlu0 %1698
  %1700 = vrot.lane.b32.xlu0 %v965, 84
  %v1701 = vpop.permute.xlu0 %1700
  %1702 = vrot.lane.b32.xlu0 %v977, 84
  %v1703 = vpop.permute.xlu0 %1702
  %1704 = vrot.lane.b32.xlu0 %v989, 84
  %v1705 = vpop.permute.xlu0 %1704
  %1706 = vrot.lane.b32.xlu0 %v1001, 84
  %v1707 = vpop.permute.xlu0 %1706
  %1708 = vrot.lane.b32.xlu0 %v1013, 84
  %v1709 = vpop.permute.xlu0 %1708
  %1710 = vrot.lane.b32.xlu0 %v1025, 84
  %v1711 = vpop.permute.xlu0 %1710
  %1712 = vrot.lane.b32.xlu0 %v1037, 84
  %v1713 = vpop.permute.xlu0 %1712
  %1714 = vrot.lane.b32.xlu0 %v1049, 84
  %v1715 = vpop.permute.xlu0 %1714
  %1716 = vrot.lane.b32.xlu0 %v1061, 84
  %v1717 = vpop.permute.xlu0 %1716
  %1718 = vrot.lane.b32.xlu0 %v1073, 84
  %v1719 = vpop.permute.xlu0 %1718
  %1720 = vrot.lane.b32.xlu0 %v1085, 84
  %v1721 = vpop.permute.xlu0 %1720
  %1722 = vrot.lane.b32.xlu0 %v1097, 84
  %v1723 = vpop.permute.xlu0 %1722
  %1724 = vrot.lane.b32.xlu0 %v1465, 84
  %v1725 = vpop.permute.xlu0 %1724
  %1726 = vrot.lane.b32.xlu0 %v1229, 96
  %v1727 = vpop.permute.xlu0 %1726
  %1728 = vrot.lane.b32.xlu0 %v1232, 96
  %v1729 = vpop.permute.xlu0 %1728
  %1730 = vrot.lane.b32.xlu0 %v1235, 96
  %v1731 = vpop.permute.xlu0 %1730
  %1732 = vrot.lane.b32.xlu0 %v1238, 96
  %v1733 = vpop.permute.xlu0 %1732
  %1734 = vrot.lane.b32.xlu0 %v1241, 96
  %v1735 = vpop.permute.xlu0 %1734
  %1736 = vrot.lane.b32.xlu0 %v1244, 96
  %v1737 = vpop.permute.xlu0 %1736
  %1738 = vrot.lane.b32.xlu0 %v1247, 96
  %v1739 = vpop.permute.xlu0 %1738
  %1740 = vrot.lane.b32.xlu0 %v1250, 96
  %v1741 = vpop.permute.xlu0 %1740
  %1742 = vrot.lane.b32.xlu0 %v1253, 96
  %v1743 = vpop.permute.xlu0 %1742
  %1744 = vrot.lane.b32.xlu0 %v1256, 96
  %v1745 = vpop.permute.xlu0 %1744
  %1746 = vrot.lane.b32.xlu0 %v1259, 96
  %v1747 = vpop.permute.xlu0 %1746
  %1748 = vrot.lane.b32.xlu0 %v1262, 96
  %v1749 = vpop.permute.xlu0 %1748
  %1750 = vrot.lane.b32.xlu0 %v1265, 96
  %v1751 = vpop.permute.xlu0 %1750
  %1752 = vrot.lane.b32.xlu0 %v1268, 96
  %v1753 = vpop.permute.xlu0 %1752
  %1754 = vrot.lane.b32.xlu0 %v1534, 96
  %v1755 = vpop.permute.xlu0 %1754
  %1756 = vrot.lane.b32.xlu0 %v1223, 96
  %v1757 = vpop.permute.xlu0 %1756
  %1758 = vrot.lane.b32.xlu0 %v1274, 96
  %v1759 = vpop.permute.xlu0 %1758
  %1760 = vrot.lane.b32.xlu0 %v1277, 96
  %v1761 = vpop.permute.xlu0 %1760
  %1762 = vrot.lane.b32.xlu0 %v1280, 96
  %v1763 = vpop.permute.xlu0 %1762
  %1764 = vrot.lane.b32.xlu0 %v1283, 96
  %v1765 = vpop.permute.xlu0 %1764
  %1766 = vrot.lane.b32.xlu0 %v1286, 96
  %v1767 = vpop.permute.xlu0 %1766
  %1768 = vrot.lane.b32.xlu0 %v1289, 96
  %v1769 = vpop.permute.xlu0 %1768
  %1770 = vrot.lane.b32.xlu0 %v1292, 96
  %v1771 = vpop.permute.xlu0 %1770
  %1772 = vrot.lane.b32.xlu0 %v1295, 96
  %v1773 = vpop.permute.xlu0 %1772
  %1774 = vrot.lane.b32.xlu0 %v1298, 96
  %v1775 = vpop.permute.xlu0 %1774
  %1776 = vrot.lane.b32.xlu0 %v1301, 96
  %v1777 = vpop.permute.xlu0 %1776
  %1778 = vrot.lane.b32.xlu0 %v1304, 96
  %v1779 = vpop.permute.xlu0 %1778
  %1780 = vrot.lane.b32.xlu0 %v1307, 96
  %v1781 = vpop.permute.xlu0 %1780
  %1782 = vrot.lane.b32.xlu0 %v1310, 96
  %v1783 = vpop.permute.xlu0 %1782
  %1784 = vrot.lane.b32.xlu0 %v1313, 96
  %v1785 = vpop.permute.xlu0 %1784
  %1786 = vrot.lane.b32.xlu0 %v1537, 96
  %v1787 = vpop.permute.xlu0 %1786
  %vm1788 = vcmask 97280
  %v1790 = vsel %vm1788, 0, %v1099
  %v1792 = vsel %vm1788, %v665, %v1101
  %v1794 = vsel %vm1788, %v666, %v1103
  %v1796 = vsel %vm1788, %v667, %v1105
  %v1798 = vsel %vm1788, %v668, %v1107
  %v1800 = vsel %vm1788, %v669, %v1109
  %v1802 = vsel %vm1788, %v670, %v1111
  %v1804 = vsel %vm1788, %v671, %v1113
  %v1806 = vsel %vm1788, %v672, %v1115
  %v1808 = vsel %vm1788, %v673, %v1117
  %v1810 = vsel %vm1788, %v674, %v1119
  %v1812 = vsel %vm1788, %v675, %v1121
  %v1814 = vsel %vm1788, %v676, %v1123
  %v1816 = vsel %vm1788, %v677, %v1125
  %v1818 = vsel %vm1788, %v678, %v1127
  %v1820 = vsel %vm1788, %v679, %v1129
  %v1822 = vsel %vm1788, %v681, %v1131
  %v1824 = vsel %vm1788, %v682, %v1133
  %v1826 = vsel %vm1788, %v683, %v1135
  %v1828 = vsel %vm1788, %v684, %v1137
  %v1830 = vsel %vm1788, %v685, %v1139
  %v1832 = vsel %vm1788, %v686, %v1141
  %v1834 = vsel %vm1788, %v687, %v1143
  %v1836 = vsel %vm1788, %v688, %v1145
  %v1838 = vsel %vm1788, %v689, %v1147
  %v1840 = vsel %vm1788, %v690, %v1149
  %v1842 = vsel %vm1788, %v691, %v1151
  %v1844 = vsel %vm1788, %v692, %v1153
  %v1846 = vsel %vm1788, %v693, %v1155
  %v1848 = vsel %vm1788, %v694, %v1157
  %v1850 = vsel %vm1788, %v695, %v1159
  %vm1851 = vcmask 195584
  %v1853 = vsel %vm1851, %v1790, %v1315
  %v1855 = vsel %vm1851, %v1792, %v1317
  %v1857 = vsel %vm1851, %v1794, %v1319
  %v1859 = vsel %vm1851, %v1796, %v1321
  %v1861 = vsel %vm1851, %v1798, %v1323
  %v1863 = vsel %vm1851, %v1800, %v1325
  %v1865 = vsel %vm1851, %v1802, %v1327
  %v1867 = vsel %vm1851, %v1804, %v1329
  %v1869 = vsel %vm1851, %v1806, %v1331
  %v1871 = vsel %vm1851, %v1808, %v1333
  %v1873 = vsel %vm1851, %v1810, %v1335
  %v1875 = vsel %vm1851, %v1812, %v1337
  %v1877 = vsel %vm1851, %v1814, %v1339
  %v1879 = vsel %vm1851, %v1816, %v1341
  %v1881 = vsel %vm1851, %v1818, %v1343
  %v1883 = vsel %vm1851, %v1820, %v1345
  %v1885 = vsel %vm1851, %v1822, %v1347
  %v1887 = vsel %vm1851, %v1824, %v1349
  %v1889 = vsel %vm1851, %v1826, %v1351
  %v1891 = vsel %vm1851, %v1828, %v1353
  %v1893 = vsel %vm1851, %v1830, %v1355
  %v1895 = vsel %vm1851, %v1832, %v1357
  %v1897 = vsel %vm1851, %v1834, %v1359
  %v1899 = vsel %vm1851, %v1836, %v1361
  %v1901 = vsel %vm1851, %v1838, %v1363
  %v1903 = vsel %vm1851, %v1840, %v1365
  %v1905 = vsel %vm1851, %v1842, %v1367
  %v1907 = vsel %vm1851, %v1844, %v1369
  %v1909 = vsel %vm1851, %v1846, %v1371
  %v1911 = vsel %vm1851, %v1848, %v1373
  %v1913 = vsel %vm1851, %v1850, %v1375
  %vm1914 = vcmask 293888
  %v1916 = vsel %vm1914, %v1853, %v1379
  %v1918 = vsel %vm1914, %v1855, %v1381
  %v1920 = vsel %vm1914, %v1857, %v1383
  %v1922 = vsel %vm1914, %v1859, %v1385
  %v1924 = vsel %vm1914, %v1861, %v1387
  %v1926 = vsel %vm1914, %v1863, %v1389
  %v1928 = vsel %vm1914, %v1865, %v1391
  %v1930 = vsel %vm1914, %v1867, %v1393
  %v1932 = vsel %vm1914, %v1869, %v1395
  %v1934 = vsel %vm1914, %v1871, %v1397
  %v1936 = vsel %vm1914, %v1873, %v1399
  %v1938 = vsel %vm1914, %v1875, %v1401
  %v1940 = vsel %vm1914, %v1877, %v1403
  %v1942 = vsel %vm1914, %v1879, %v1405
  %v1944 = vsel %vm1914, %v1881, %v1407
  %v1946 = vsel %vm1914, %v1883, %v1409
  %v1948 = vsel %vm1914, %v1853, %v1411
  %v1950 = vsel %vm1914, %v1885, %v1413
  %v1952 = vsel %vm1914, %v1887, %v1415
  %v1954 = vsel %vm1914, %v1889, %v1417
  %v1956 = vsel %vm1914, %v1891, %v1419
  %v1958 = vsel %vm1914, %v1893, %v1421
  %v1960 = vsel %vm1914, %v1895, %v1423
  %v1962 = vsel %vm1914, %v1897, %v1425
  %v1964 = vsel %vm1914, %v1899, %v1427
  %v1966 = vsel %vm1914, %v1901, %v1429
  %v1968 = vsel %vm1914, %v1903, %v1431
  %v1970 = vsel %vm1914, %v1905, %v1433
  %v1972 = vsel %vm1914, %v1907, %v1435
  %v1974 = vsel %vm1914, %v1909, %v1437
  %v1976 = vsel %vm1914, %v1911, %v1439
  %v1978 = vsel %vm1914, %v1913, %v1441
  %vm1979 = vcmask 392192
  %v1981 = vsel %vm1979, %v1916, %v1467
  %v1983 = vsel %vm1979, %v1918, %v1469
  %v1985 = vsel %vm1979, %v1920, %v1471
  %v1987 = vsel %vm1979, %v1922, %v1473
  %v1989 = vsel %vm1979, %v1924, %v1475
  %v1991 = vsel %vm1979, %v1926, %v1477
  %v1993 = vsel %vm1979, %v1928, %v1479
  %v1995 = vsel %vm1979, %v1930, %v1481
  %v1997 = vsel %vm1979, %v1932, %v1483
  %v1999 = vsel %vm1979, %v1934, %v1485
  %v2001 = vsel %vm1979, %v1936, %v1487
  %v2003 = vsel %vm1979, %v1938, %v1489
  %v2005 = vsel %vm1979, %v1940, %v1491
  %v2007 = vsel %vm1979, %v1942, %v1493
  %v2009 = vsel %vm1979, %v1944, %v1495
  %v2011 = vsel %vm1979, %v1946, %v1497
  %v2013 = vsel %vm1979, %v1948, %v1499
  %v2015 = vsel %vm1979, %v1950, %v1501
  %v2017 = vsel %vm1979, %v1952, %v1503
  %v2019 = vsel %vm1979, %v1954, %v1505
  %v2021 = vsel %vm1979, %v1956, %v1507
  %v2023 = vsel %vm1979, %v1958, %v1509
  %v2025 = vsel %vm1979, %v1960, %v1511
  %v2027 = vsel %vm1979, %v1962, %v1513
  %v2029 = vsel %vm1979, %v1964, %v1515
  %v2031 = vsel %vm1979, %v1966, %v1517
  %v2033 = vsel %vm1979, %v1968, %v1519
  %v2035 = vsel %vm1979, %v1970, %v1521
  %v2037 = vsel %vm1979, %v1972, %v1523
  %v2039 = vsel %vm1979, %v1974, %v1525
  %v2041 = vsel %vm1979, %v1976, %v1527
  %v2043 = vsel %vm1979, %v1978, %v1529
  %vm2044 = vcmask 490496
  %v2046 = vsel %vm2044, %v1981, %v1539
  %v2048 = vsel %vm2044, %v1983, %v1541
  %v2050 = vsel %vm2044, %v1985, %v1543
  %v2052 = vsel %vm2044, %v1987, %v1545
  %v2054 = vsel %vm2044, %v1989, %v1547
  %v2056 = vsel %vm2044, %v1991, %v1549
  %v2058 = vsel %vm2044, %v1993, %v1551
  %v2060 = vsel %vm2044, %v1995, %v1553
  %v2062 = vsel %vm2044, %v1997, %v1555
  %v2064 = vsel %vm2044, %v1999, %v1557
  %v2066 = vsel %vm2044, %v2001, %v1559
  %v2068 = vsel %vm2044, %v2003, %v1561
  %v2070 = vsel %vm2044, %v2005, %v1563
  %v2072 = vsel %vm2044, %v2007, %v1565
  %v2074 = vsel %vm2044, %v2009, %v1567
  %v2076 = vsel %vm2044, %v2011, %v1569
  %v2078 = vsel %vm2044, %v2013, %v1571
  %v2080 = vsel %vm2044, %v2015, %v1573
  %v2082 = vsel %vm2044, %v2017, %v1575
  %v2084 = vsel %vm2044, %v2019, %v1577
  %v2086 = vsel %vm2044, %v2021, %v1579
  %v2088 = vsel %vm2044, %v2023, %v1581
  %v2090 = vsel %vm2044, %v2025, %v1583
  %v2092 = vsel %vm2044, %v2027, %v1585
  %v2094 = vsel %vm2044, %v2029, %v1587
  %v2096 = vsel %vm2044, %v2031, %v1589
  %v2098 = vsel %vm2044, %v2033, %v1591
  %v2100 = vsel %vm2044, %v2035, %v1593
  %v2102 = vsel %vm2044, %v2037, %v1595
  %v2104 = vsel %vm2044, %v2039, %v1597
  %v2106 = vsel %vm2044, %v2041, %v1599
  %v2108 = vsel %vm2044, %v2043, %v1601
  %vm2109 = vcmask 588800
  %v2111 = vsel %vm2109, %v2046, %v1603
  %v2113 = vsel %vm2109, %v2048, %v1605
  %v2115 = vsel %vm2109, %v2050, %v1607
  %v2117 = vsel %vm2109, %v2052, %v1609
  %v2119 = vsel %vm2109, %v2054, %v1611
  %v2121 = vsel %vm2109, %v2056, %v1613
  %v2123 = vsel %vm2109, %v2058, %v1615
  %v2125 = vsel %vm2109, %v2060, %v1617
  %v2127 = vsel %vm2109, %v2062, %v1619
  %v2129 = vsel %vm2109, %v2064, %v1621
  %v2131 = vsel %vm2109, %v2066, %v1623
  %v2133 = vsel %vm2109, %v2068, %v1625
  %v2135 = vsel %vm2109, %v2070, %v1627
  %v2137 = vsel %vm2109, %v2072, %v1629
  %v2139 = vsel %vm2109, %v2074, %v1631
  %v2141 = vsel %vm2109, %v2076, %v1633
  %v2143 = vsel %vm2109, %v2078, %v1635
  %v2145 = vsel %vm2109, %v2080, %v1637
  %v2147 = vsel %vm2109, %v2082, %v1639
  %v2149 = vsel %vm2109, %v2084, %v1641
  %v2151 = vsel %vm2109, %v2086, %v1643
  %v2153 = vsel %vm2109, %v2088, %v1645
  %v2155 = vsel %vm2109, %v2090, %v1647
  %v2157 = vsel %vm2109, %v2092, %v1649
  %v2159 = vsel %vm2109, %v2094, %v1651
  %v2161 = vsel %vm2109, %v2096, %v1653
  %v2163 = vsel %vm2109, %v2098, %v1655
  %v2165 = vsel %vm2109, %v2100, %v1657
  %v2167 = vsel %vm2109, %v2102, %v1659
  %v2169 = vsel %vm2109, %v2104, %v1661
  %v2171 = vsel %vm2109, %v2106, %v1663
  %v2172 = vsel %vm2109, %v2108, %v1633
  %vm2173 = vcmask 687104
  %v2175 = vsel %vm2173, %v2111, %v1665
  %v2177 = vsel %vm2173, %v2113, %v1667
  %v2179 = vsel %vm2173, %v2115, %v1669
  %v2181 = vsel %vm2173, %v2117, %v1671
  %v2183 = vsel %vm2173, %v2119, %v1673
  %v2185 = vsel %vm2173, %v2121, %v1675
  %v2187 = vsel %vm2173, %v2123, %v1677
  %v2189 = vsel %vm2173, %v2125, %v1679
  %v2191 = vsel %vm2173, %v2127, %v1681
  %v2193 = vsel %vm2173, %v2129, %v1683
  %v2195 = vsel %vm2173, %v2131, %v1685
  %v2197 = vsel %vm2173, %v2133, %v1687
  %v2199 = vsel %vm2173, %v2135, %v1689
  %v2201 = vsel %vm2173, %v2137, %v1691
  %v2203 = vsel %vm2173, %v2139, %v1693
  %v2205 = vsel %vm2173, %v2141, %v1695
  %v2207 = vsel %vm2173, %v2143, %v1697
  %v2209 = vsel %vm2173, %v2145, %v1699
  %v2211 = vsel %vm2173, %v2147, %v1701
  %v2213 = vsel %vm2173, %v2149, %v1703
  %v2215 = vsel %vm2173, %v2151, %v1705
  %v2217 = vsel %vm2173, %v2153, %v1707
  %v2219 = vsel %vm2173, %v2155, %v1709
  %v2221 = vsel %vm2173, %v2157, %v1711
  %v2223 = vsel %vm2173, %v2159, %v1713
  %v2225 = vsel %vm2173, %v2161, %v1715
  %v2227 = vsel %vm2173, %v2163, %v1717
  %v2229 = vsel %vm2173, %v2165, %v1719
  %v2231 = vsel %vm2173, %v2167, %v1721
  %v2233 = vsel %vm2173, %v2169, %v1723
  %v2235 = vsel %vm2173, %v2171, %v1725
  %v2236 = vsel %vm2173, %v2172, %v1695
  %vm2237 = vcmask 785408
  %v2239 = vsel %vm2237, %v2175, %v1727
  %v2241 = vsel %vm2237, %v2177, %v1729
  %v2243 = vsel %vm2237, %v2179, %v1731
  %v2245 = vsel %vm2237, %v2181, %v1733
  %v2247 = vsel %vm2237, %v2183, %v1735
  %v2249 = vsel %vm2237, %v2185, %v1737
  %v2251 = vsel %vm2237, %v2187, %v1739
  %v2253 = vsel %vm2237, %v2189, %v1741
  %v2255 = vsel %vm2237, %v2191, %v1743
  %v2257 = vsel %vm2237, %v2193, %v1745
  %v2259 = vsel %vm2237, %v2195, %v1747
  %v2261 = vsel %vm2237, %v2197, %v1749
  %v2263 = vsel %vm2237, %v2199, %v1751
  %v2265 = vsel %vm2237, %v2201, %v1753
  %v2267 = vsel %vm2237, %v2203, %v1755
  %v2269 = vsel %vm2237, %v2205, %v1757
  %v2271 = vsel %vm2237, %v2207, %v1759
  %v2273 = vsel %vm2237, %v2209, %v1761
  %v2275 = vsel %vm2237, %v2211, %v1763
  %v2277 = vsel %vm2237, %v2213, %v1765
  %v2279 = vsel %vm2237, %v2215, %v1767
  %v2281 = vsel %vm2237, %v2217, %v1769
  %v2283 = vsel %vm2237, %v2219, %v1771
  %v2285 = vsel %vm2237, %v2221, %v1773
  %v2287 = vsel %vm2237, %v2223, %v1775
  %v2289 = vsel %vm2237, %v2225, %v1777
  %v2291 = vsel %vm2237, %v2227, %v1779
  %v2293 = vsel %vm2237, %v2229, %v1781
  %v2295 = vsel %vm2237, %v2231, %v1783
  %v2297 = vsel %vm2237, %v2233, %v1785
  %v2299 = vsel %vm2237, %v2235, %v1787
  %v2300 = vsel %vm2237, %v2236, %v1757
  %v2301 = vld [vmem:[%s2] sm:$0xf]
  %v2302 = vld [vmem:[%s2 + $0x4] sm:$0xf]
  %v2303 = vld [vmem:[%s2 + $0x8] sm:$0xf]
  %v2304 = vld [vmem:[%s2 + $0xc] sm:$0xf]
  %v2305 = vld [vmem:[%s2 + $0x10] sm:$0xf]
  %v2306 = vld [vmem:[%s2 + $0x14] sm:$0xf]
  %v2307 = vld [vmem:[%s2 + $0x18] sm:$0xf]
  %v2308 = vld [vmem:[%s2 + $0x1c] sm:$0xf]
  %v2309 = vld [vmem:[%s2 + $0x20] sm:$0xf]
  %v2310 = vld [vmem:[%s2 + $0x24] sm:$0xf]
  %v2311 = vld [vmem:[%s2 + $0x28] sm:$0xf]
  %v2312 = vld [vmem:[%s2 + $0x2c] sm:$0xf]
  %v2313 = vld [vmem:[%s2 + $0x30] sm:$0xf]
  %v2314 = vld [vmem:[%s2 + $0x34] sm:$0x3]
  %v2315 = vld [vmem:[%s4] sm:$0x1]
  %v2317 = vlaneseq
  %v2318 = vshrl.u32 %v2317, 7
  %v2319 = vsub.s32 0, %v2318
  %v2320 = vrot.slane %v2315, %v2319
  %v2336 = vunpack.c.l.b16 %v2301
  %v2337 = vunpack.c.l.b16 %v2302
  %v2338 = vunpack.c.l.b16 %v2303
  %v2339 = vunpack.c.l.b16 %v2304
  %v2340 = vunpack.c.l.b16 %v2305
  %v2341 = vunpack.c.l.b16 %v2306
  %v2342 = vunpack.c.l.b16 %v2307
  %v2343 = vunpack.c.l.b16 %v2308
  %v2344 = vunpack.c.l.b16 %v2309
  %v2345 = vunpack.c.l.b16 %v2310
  %v2346 = vunpack.c.l.b16 %v2311
  %v2347 = vunpack.c.l.b16 %v2312
  %v2348 = vunpack.c.l.b16 %v2313
  %v2349 = vunpack.c.l.b16 %v2314
  %v2350 = vpack.c.b16 %v2337, %v2336
  %v2351 = vpack.c.b16 %v2339, %v2338
  %v2352 = vpack.c.b16 %v2341, %v2340
  %v2353 = vpack.c.b16 %v2343, %v2342
  %v2354 = vpack.c.b16 %v2345, %v2344
  %v2355 = vpack.c.b16 %v2347, %v2346
  %v2356 = vpack.c.b16 %v2349, %v2348
  %vm2363 = vcmask 883712
  %v2364 = vsel %vm2363, %v2239, 0
  %v2366 = vsel %vm2363, %v2241, 0
  %v2368 = vsel %vm2363, %v2243, 0
  %v2370 = vsel %vm2363, %v2245, 0
  %v2372 = vsel %vm2363, %v2247, 0
  %v2374 = vsel %vm2363, %v2249, 0
  %v2376 = vsel %vm2363, %v2251, 0
  %v2378 = vsel %vm2363, %v2253, 0
  %v2380 = vsel %vm2363, %v2255, 0
  %v2382 = vsel %vm2363, %v2257, 0
  %v2384 = vsel %vm2363, %v2259, 0
  %v2386 = vsel %vm2363, %v2261, 0
  %v2388 = vsel %vm2363, %v2263, 0
  %v2390 = vsel %vm2363, %v2265, 0
  %v2392 = vsel %vm2363, %v2267, 0
  %v2394 = vsel %vm2363, %v2269, 0
  %v2396 = vsel %vm2363, %v2271, 0
  %v2398 = vsel %vm2363, %v2273, 0
  %v2400 = vsel %vm2363, %v2275, 0
  %v2402 = vsel %vm2363, %v2277, 0
  %v2404 = vsel %vm2363, %v2279, 0
  %v2406 = vsel %vm2363, %v2281, 0
  %v2408 = vsel %vm2363, %v2283, 0
  %v2410 = vsel %vm2363, %v2285, 0
  %v2412 = vsel %vm2363, %v2287, 0
  %v2414 = vsel %vm2363, %v2289, 0
  %v2416 = vsel %vm2363, %v2291, 0
  %v2418 = vsel %vm2363, %v2293, 0
  %v2420 = vsel %vm2363, %v2295, 0
  %v2422 = vsel %vm2363, %v2297, 0
  %v2424 = vsel %vm2363, %v2299, 0
  %v2426 = vsel %vm2363, %v2300, 0
  %vm2428 = vcmask 1045504
  %v2430 = vsel %vm2428, %v2356, 0
  %2432 = vmatprep.subr.bf16.mxu0 0
  %2433 = vmatpush1.bf16.msra.mxu0 %v2350
  %2434 = vmatprep.subr.bf16.mxu0 0
  %2435 = vmatpush1.bf16.msra.mxu0 %v2351
  %2436 = vmatprep.subr.bf16.mxu0 0
  %2437 = vmatpush1.bf16.msra.mxu0 %v2352
  %2438 = vmatprep.subr.bf16.mxu0 0
  %2439 = vmatpush1.bf16.msra.mxu0 %v2353
  %2440 = vmatprep.subr.bf16.mxu0 0
  %2441 = vmatpush1.bf16.msra.mxu0 %v2354
  %2442 = vmatprep.subr.bf16.mxu0 0
  %2443 = vmatpush1.bf16.msra.mxu0 %v2355
  %2444 = vmatprep.subr.bf16.mxu0 0
  %2445 = vmatpush1.bf16.msra.mxu0 %v2430
  %2446 = vmatprep.subr.bf16.mxu0 0
  %2447 = vmatpush1.bf16.msra.mxu0 0
  %2448 = vmatprep.subr.bf16.mxu0 0
  %2449 = vmatpush1.bf16.msra.mxu0 0
  %2450 = vmatprep.subr.bf16.mxu0 0
  %2451 = vmatpush1.bf16.msra.mxu0 0
  %2452 = vmatprep.subr.bf16.mxu0 0
  %2453 = vmatpush1.bf16.msra.mxu0 0
  %2454 = vmatprep.subr.bf16.mxu0 0
  %2455 = vmatpush1.bf16.msra.mxu0 0
  %2456 = vmatprep.subr.bf16.mxu0 0
  %2457 = vmatpush1.bf16.msra.mxu0 0
  %2458 = vmatprep.subr.bf16.mxu0 0
  %2459 = vmatpush1.bf16.msra.mxu0 0
  %2460 = vmatprep.subr.bf16.mxu0 0
  %2461 = vmatpush1.bf16.msra.mxu0 0
  %2462 = vmatprep.subr.bf16.mxu0 0
  %2463 = vmatpush1.bf16.msra.mxu0 0
  %2464 = vmatprep.mubr.bf16.mxu0 0
  %2465 = vmatmul.mubr.bf16.gmra.mrb[0].mxu0 %v2364
  %v2466 = vpop.f32.mrb[0].mxu0
  %v2467 = vadd.f32 %v2320, %v2466
  %v2468 = vpop.f32.mrb[0].mxu0
  %v2469 = vpop.f32.mrb[0].mxu0
  %v2470 = vadd.f32 %v2320, %v2469
  %v2471 = vpop.f32.mrb[0].mxu0
  %2472 = vmatprep.mubr.bf16.mxu0 0
  %2473 = vmatmul.mubr.bf16.gmra.mrb[0].mxu0 %v2366
  %v2474 = vpop.f32.mrb[0].mxu0
  %v2475 = vadd.f32 %v2320, %v2474
  %v2476 = vpop.f32.mrb[0].mxu0
  %v2477 = vpop.f32.mrb[0].mxu0
  %v2478 = vadd.f32 %v2320, %v2477
  %v2479 = vpop.f32.mrb[0].mxu0
  %2480 = vmatprep.mubr.bf16.mxu0 0
  %2481 = vmatmul.mubr.bf16.gmra.mrb[0].mxu0 %v2368
  %v2482 = vpop.f32.mrb[0].mxu0
  %v2483 = vadd.f32 %v2320, %v2482
  %v2484 = vpop.f32.mrb[0].mxu0
  %v2485 = vpop.f32.mrb[0].mxu0
  %v2486 = vadd.f32 %v2320, %v2485
  %v2487 = vpop.f32.mrb[0].mxu0
  %2488 = vmatprep.mubr.bf16.mxu0 0
  %2489 = vmatmul.mubr.bf16.gmra.mrb[0].mxu0 %v2370
  %v2490 = vpop.f32.mrb[0].mxu0
  %v2491 = vadd.f32 %v2320, %v2490
  %v2492 = vpop.f32.mrb[0].mxu0
  %v2493 = vpop.f32.mrb[0].mxu0
  %v2494 = vadd.f32 %v2320, %v2493
  %v2495 = vpop.f32.mrb[0].mxu0
  %2496 = vmatprep.mubr.bf16.mxu0 0
  %2497 = vmatmul.mubr.bf16.gmra.mrb[0].mxu0 %v2372
  %v2498 = vpop.f32.mrb[0].mxu0
  %v2499 = vadd.f32 %v2320, %v2498
  %v2500 = vpop.f32.mrb[0].mxu0
  %v2501 = vpop.f32.mrb[0].mxu0
  %v2502 = vadd.f32 %v2320, %v2501
  %v2503 = vpop.f32.mrb[0].mxu0
  %2504 = vmatprep.mubr.bf16.mxu0 0
  %2505 = vmatmul.mubr.bf16.gmra.mrb[0].mxu0 %v2374
  %v2506 = vpop.f32.mrb[0].mxu0
  %v2507 = vadd.f32 %v2320, %v2506
  %v2508 = vpop.f32.mrb[0].mxu0
  %v2509 = vpop.f32.mrb[0].mxu0
  %v2510 = vadd.f32 %v2320, %v2509
  %v2511 = vpop.f32.mrb[0].mxu0
  %2512 = vmatprep.mubr.bf16.mxu0 0
  %2513 = vmatmul.mubr.bf16.gmra.mrb[0].mxu0 %v2376
  %v2514 = vpop.f32.mrb[0].mxu0
  %v2515 = vadd.f32 %v2320, %v2514
  %v2516 = vpop.f32.mrb[0].mxu0
  %v2517 = vpop.f32.mrb[0].mxu0
  %v2518 = vadd.f32 %v2320, %v2517
  %v2519 = vpop.f32.mrb[0].mxu0
  %2520 = vmatprep.mubr.bf16.mxu0 0
  %2521 = vmatmul.mubr.bf16.gmra.mrb[0].mxu0 %v2378
  %v2522 = vpop.f32.mrb[0].mxu0
  %v2523 = vadd.f32 %v2320, %v2522
  %v2524 = vpop.f32.mrb[0].mxu0
  %v2525 = vpop.f32.mrb[0].mxu0
  %v2526 = vadd.f32 %v2320, %v2525
  %v2527 = vpop.f32.mrb[0].mxu0
  %2528 = vmatprep.mubr.bf16.mxu0 0
  %2529 = vmatmul.mubr.bf16.gmra.mrb[0].mxu0 %v2380
  %v2530 = vpop.f32.mrb[0].mxu0
  %v2531 = vadd.f32 %v2320, %v2530
  %v2532 = vpop.f32.mrb[0].mxu0
  %v2533 = vpop.f32.mrb[0].mxu0
  %v2534 = vadd.f32 %v2320, %v2533
  %v2535 = vpop.f32.mrb[0].mxu0
  %2536 = vmatprep.mubr.bf16.mxu0 0
  %2537 = vmatmul.mubr.bf16.gmra.mrb[0].mxu0 %v2382
  %v2538 = vpop.f32.mrb[0].mxu0
  %v2539 = vadd.f32 %v2320, %v2538
  %v2540 = vpop.f32.mrb[0].mxu0
  %v2541 = vpop.f32.mrb[0].mxu0
  %v2542 = vadd.f32 %v2320, %v2541
  %v2543 = vpop.f32.mrb[0].mxu0
  %2544 = vmatprep.mubr.bf16.mxu0 0
  %2545 = vmatmul.mubr.bf16.gmra.mrb[0].mxu0 %v2384
  %v2546 = vpop.f32.mrb[0].mxu0
  %v2547 = vadd.f32 %v2320, %v2546
  %v2548 = vpop.f32.mrb[0].mxu0
  %v2549 = vpop.f32.mrb[0].mxu0
  %v2550 = vadd.f32 %v2320, %v2549
  %v2551 = vpop.f32.mrb[0].mxu0
  %2552 = vmatprep.mubr.bf16.mxu0 0
  %2553 = vmatmul.mubr.bf16.gmra.mrb[0].mxu0 %v2386
  %v2554 = vpop.f32.mrb[0].mxu0
  %v2555 = vadd.f32 %v2320, %v2554
  %v2556 = vpop.f32.mrb[0].mxu0
  %v2557 = vpop.f32.mrb[0].mxu0
  %v2558 = vadd.f32 %v2320, %v2557
  %v2559 = vpop.f32.mrb[0].mxu0
  %2560 = vmatprep.mubr.bf16.mxu0 0
  %2561 = vmatmul.mubr.bf16.gmra.mrb[0].mxu0 %v2388
  %v2562 = vpop.f32.mrb[0].mxu0
  %v2563 = vadd.f32 %v2320, %v2562
  %v2564 = vpop.f32.mrb[0].mxu0
  %v2565 = vpop.f32.mrb[0].mxu0
  %v2566 = vadd.f32 %v2320, %v2565
  %v2567 = vpop.f32.mrb[0].mxu0
  %2568 = vmatprep.mubr.bf16.mxu0 0
  %2569 = vmatmul.mubr.bf16.gmra.mrb[0].mxu0 %v2390
  %v2570 = vpop.f32.mrb[0].mxu0
  %v2571 = vadd.f32 %v2320, %v2570
  %v2572 = vpop.f32.mrb[0].mxu0
  %v2573 = vpop.f32.mrb[0].mxu0
  %v2574 = vadd.f32 %v2320, %v2573
  %v2575 = vpop.f32.mrb[0].mxu0
  %2576 = vmatprep.mubr.bf16.mxu0 0
  %2577 = vmatmul.mubr.bf16.gmra.mrb[0].mxu0 %v2392
  %v2578 = vpop.f32.mrb[0].mxu0
  %v2579 = vadd.f32 %v2320, %v2578
  %v2580 = vpop.f32.mrb[0].mxu0
  %v2581 = vpop.f32.mrb[0].mxu0
  %v2582 = vadd.f32 %v2320, %v2581
  %v2583 = vpop.f32.mrb[0].mxu0
  %2584 = vmatprep.mubr.bf16.mxu0 0
  %2585 = vmatmul.mubr.bf16.gmra.mrb[0].mxu0 %v2394
  %v2586 = vpop.f32.mrb[0].mxu0
  %v2587 = vadd.f32 %v2320, %v2586
  %v2588 = vpop.f32.mrb[0].mxu0
  %v2589 = vpop.f32.mrb[0].mxu0
  %v2590 = vadd.f32 %v2320, %v2589
  %v2591 = vpop.f32.mrb[0].mxu0
  %2592 = vmatprep.mubr.bf16.mxu0 0
  %2593 = vmatmul.mubr.bf16.gmra.mrb[0].mxu0 %v2396
  %v2594 = vpop.f32.mrb[0].mxu0
  %v2595 = vadd.f32 %v2320, %v2594
  %v2596 = vpop.f32.mrb[0].mxu0
  %v2597 = vpop.f32.mrb[0].mxu0
  %v2598 = vadd.f32 %v2320, %v2597
  %v2599 = vpop.f32.mrb[0].mxu0
  %2600 = vmatprep.mubr.bf16.mxu0 0
  %2601 = vmatmul.mubr.bf16.gmra.mrb[0].mxu0 %v2398
  %v2602 = vpop.f32.mrb[0].mxu0
  %v2603 = vadd.f32 %v2320, %v2602
  %v2604 = vpop.f32.mrb[0].mxu0
  %v2605 = vpop.f32.mrb[0].mxu0
  %v2606 = vadd.f32 %v2320, %v2605
  %v2607 = vpop.f32.mrb[0].mxu0
  %2608 = vmatprep.mubr.bf16.mxu0 0
  %2609 = vmatmul.mubr.bf16.gmra.mrb[0].mxu0 %v2400
  %v2610 = vpop.f32.mrb[0].mxu0
  %v2611 = vadd.f32 %v2320, %v2610
  %v2612 = vpop.f32.mrb[0].mxu0
  %v2613 = vpop.f32.mrb[0].mxu0
  %v2614 = vadd.f32 %v2320, %v2613
  %v2615 = vpop.f32.mrb[0].mxu0
  %2616 = vmatprep.mubr.bf16.mxu0 0
  %2617 = vmatmul.mubr.bf16.gmra.mrb[0].mxu0 %v2402
  %v2618 = vpop.f32.mrb[0].mxu0
  %v2619 = vadd.f32 %v2320, %v2618
  %v2620 = vpop.f32.mrb[0].mxu0
  %v2621 = vpop.f32.mrb[0].mxu0
  %v2622 = vadd.f32 %v2320, %v2621
  %v2623 = vpop.f32.mrb[0].mxu0
  %2624 = vmatprep.mubr.bf16.mxu0 0
  %2625 = vmatmul.mubr.bf16.gmra.mrb[0].mxu0 %v2404
  %v2626 = vpop.f32.mrb[0].mxu0
  %v2627 = vadd.f32 %v2320, %v2626
  %v2628 = vpop.f32.mrb[0].mxu0
  %v2629 = vpop.f32.mrb[0].mxu0
  %v2630 = vadd.f32 %v2320, %v2629
  %v2631 = vpop.f32.mrb[0].mxu0
  %2632 = vmatprep.mubr.bf16.mxu0 0
  %2633 = vmatmul.mubr.bf16.gmra.mrb[0].mxu0 %v2406
  %v2634 = vpop.f32.mrb[0].mxu0
  %v2635 = vadd.f32 %v2320, %v2634
  %v2636 = vpop.f32.mrb[0].mxu0
  %v2637 = vpop.f32.mrb[0].mxu0
  %v2638 = vadd.f32 %v2320, %v2637
  %v2639 = vpop.f32.mrb[0].mxu0
  %2640 = vmatprep.mubr.bf16.mxu0 0
  %2641 = vmatmul.mubr.bf16.gmra.mrb[0].mxu0 %v2408
  %v2642 = vpop.f32.mrb[0].mxu0
  %v2643 = vadd.f32 %v2320, %v2642
  %v2644 = vpop.f32.mrb[0].mxu0
  %v2645 = vpop.f32.mrb[0].mxu0
  %v2646 = vadd.f32 %v2320, %v2645
  %v2647 = vpop.f32.mrb[0].mxu0
  %2648 = vmatprep.mubr.bf16.mxu0 0
  %2649 = vmatmul.mubr.bf16.gmra.mrb[0].mxu0 %v2410
  %v2650 = vpop.f32.mrb[0].mxu0
  %v2651 = vadd.f32 %v2320, %v2650
  %v2652 = vpop.f32.mrb[0].mxu0
  %v2653 = vpop.f32.mrb[0].mxu0
  %v2654 = vadd.f32 %v2320, %v2653
  %v2655 = vpop.f32.mrb[0].mxu0
  %2656 = vmatprep.mubr.bf16.mxu0 0
  %2657 = vmatmul.mubr.bf16.gmra.mrb[0].mxu0 %v2412
  %v2658 = vpop.f32.mrb[0].mxu0
  %v2659 = vadd.f32 %v2320, %v2658
  %v2660 = vpop.f32.mrb[0].mxu0
  %v2661 = vpop.f32.mrb[0].mxu0
  %v2662 = vadd.f32 %v2320, %v2661
  %v2663 = vpop.f32.mrb[0].mxu0
  %2664 = vmatprep.mubr.bf16.mxu0 0
  %2665 = vmatmul.mubr.bf16.gmra.mrb[0].mxu0 %v2414
  %v2666 = vpop.f32.mrb[0].mxu0
  %v2667 = vadd.f32 %v2320, %v2666
  %v2668 = vpop.f32.mrb[0].mxu0
  %v2669 = vpop.f32.mrb[0].mxu0
  %v2670 = vadd.f32 %v2320, %v2669
  %v2671 = vpop.f32.mrb[0].mxu0
  %2672 = vmatprep.mubr.bf16.mxu0 0
  %2673 = vmatmul.mubr.bf16.gmra.mrb[0].mxu0 %v2416
  %v2674 = vpop.f32.mrb[0].mxu0
  %v2675 = vadd.f32 %v2320, %v2674
  %v2676 = vpop.f32.mrb[0].mxu0
  %v2677 = vpop.f32.mrb[0].mxu0
  %v2678 = vadd.f32 %v2320, %v2677
  %v2679 = vpop.f32.mrb[0].mxu0
  %2680 = vmatprep.mubr.bf16.mxu0 0
  %2681 = vmatmul.mubr.bf16.gmra.mrb[0].mxu0 %v2418
  %v2682 = vpop.f32.mrb[0].mxu0
  %v2683 = vadd.f32 %v2320, %v2682
  %v2684 = vpop.f32.mrb[0].mxu0
  %v2685 = vpop.f32.mrb[0].mxu0
  %v2686 = vadd.f32 %v2320, %v2685
  %v2687 = vpop.f32.mrb[0].mxu0
  %2688 = vmatprep.mubr.bf16.mxu0 0
  %2689 = vmatmul.mubr.bf16.gmra.mrb[0].mxu0 %v2420
  %v2690 = vpop.f32.mrb[0].mxu0
  %v2691 = vadd.f32 %v2320, %v2690
  %v2692 = vpop.f32.mrb[0].mxu0
  %v2693 = vpop.f32.mrb[0].mxu0
  %v2694 = vadd.f32 %v2320, %v2693
  %v2695 = vpop.f32.mrb[0].mxu0
  %2696 = vmatprep.mubr.bf16.mxu0 0
  %2697 = vmatmul.mubr.bf16.gmra.mrb[0].mxu0 %v2422
  %v2698 = vpop.f32.mrb[0].mxu0
  %v2699 = vadd.f32 %v2320, %v2698
  %v2700 = vpop.f32.mrb[0].mxu0
  %v2701 = vpop.f32.mrb[0].mxu0
  %v2702 = vadd.f32 %v2320, %v2701
  %v2703 = vpop.f32.mrb[0].mxu0
  %2704 = vmatprep.mubr.bf16.mxu0 0
  %2705 = vmatmul.mubr.bf16.gmra.mrb[0].mxu0 %v2424
  %v2706 = vpop.f32.mrb[0].mxu0
  %v2707 = vadd.f32 %v2320, %v2706
  %v2708 = vpop.f32.mrb[0].mxu0
  %v2709 = vpop.f32.mrb[0].mxu0
  %v2710 = vadd.f32 %v2320, %v2709
  %v2711 = vpop.f32.mrb[0].mxu0
  %2712 = vmatprep.mubr.bf16.mxu0 0
  %2713 = vmatmul.mubr.bf16.gmra.mrb[0].mxu0 %v2426
  %v2714 = vpop.f32.mrb[0].mxu0
  %v2715 = vadd.f32 %v2320, %v2714
  %v2716 = vpop.f32.mrb[0].mxu0
  %v2717 = vpop.f32.mrb[0].mxu0
  %v2718 = vadd.f32 %v2320, %v2717
  %v2719 = vpop.f32.mrb[0].mxu0
  %2720 = vdwg.mxu0
  %v2721 = vxor.u32 %v2467, 2147483648
  %v2722 = vxor.u32 %v2470, 2147483648
  %v2723 = vxor.u32 %v2475, 2147483648
  %v2724 = vxor.u32 %v2478, 2147483648
  %v2725 = vxor.u32 %v2483, 2147483648
  %v2726 = vxor.u32 %v2486, 2147483648
  %v2727 = vxor.u32 %v2491, 2147483648
  %v2728 = vxor.u32 %v2494, 2147483648
  %v2729 = vxor.u32 %v2499, 2147483648
  %v2730 = vxor.u32 %v2502, 2147483648
  %v2731 = vxor.u32 %v2507, 2147483648
  %v2732 = vxor.u32 %v2510, 2147483648
  %v2733 = vxor.u32 %v2515, 2147483648
  %v2734 = vxor.u32 %v2518, 2147483648
  %v2735 = vxor.u32 %v2523, 2147483648
  %v2736 = vxor.u32 %v2526, 2147483648
  %v2737 = vxor.u32 %v2531, 2147483648
  %v2738 = vxor.u32 %v2534, 2147483648
  %v2739 = vxor.u32 %v2539, 2147483648
  %v2740 = vxor.u32 %v2542, 2147483648
  %v2741 = vxor.u32 %v2547, 2147483648
  %v2742 = vxor.u32 %v2550, 2147483648
  %v2743 = vxor.u32 %v2555, 2147483648
  %v2744 = vxor.u32 %v2558, 2147483648
  %v2745 = vxor.u32 %v2563, 2147483648
  %v2746 = vxor.u32 %v2566, 2147483648
  %v2747 = vxor.u32 %v2571, 2147483648
  %v2748 = vxor.u32 %v2574, 2147483648
  %v2749 = vxor.u32 %v2579, 2147483648
  %v2750 = vxor.u32 %v2582, 2147483648
  %v2751 = vxor.u32 %v2587, 2147483648
  %v2752 = vxor.u32 %v2590, 2147483648
  %v2753 = vxor.u32 %v2595, 2147483648
  %v2754 = vxor.u32 %v2598, 2147483648
  %v2755 = vxor.u32 %v2603, 2147483648
  %v2756 = vxor.u32 %v2606, 2147483648
  %v2757 = vxor.u32 %v2611, 2147483648
  %v2758 = vxor.u32 %v2614, 2147483648
  %v2759 = vxor.u32 %v2619, 2147483648
  %v2760 = vxor.u32 %v2622, 2147483648
  %v2761 = vxor.u32 %v2627, 2147483648
  %v2762 = vxor.u32 %v2630, 2147483648
  %v2763 = vxor.u32 %v2635, 2147483648
  %v2764 = vxor.u32 %v2638, 2147483648
  %v2765 = vxor.u32 %v2643, 2147483648
  %v2766 = vxor.u32 %v2646, 2147483648
  %v2767 = vxor.u32 %v2651, 2147483648
  %v2768 = vxor.u32 %v2654, 2147483648
  %v2769 = vxor.u32 %v2659, 2147483648
  %v2770 = vxor.u32 %v2662, 2147483648
  %v2771 = vxor.u32 %v2667, 2147483648
  %v2772 = vxor.u32 %v2670, 2147483648
  %v2773 = vxor.u32 %v2675, 2147483648
  %v2774 = vxor.u32 %v2678, 2147483648
  %v2775 = vxor.u32 %v2683, 2147483648
  %v2776 = vxor.u32 %v2686, 2147483648
  %v2777 = vxor.u32 %v2691, 2147483648
  %v2778 = vxor.u32 %v2694, 2147483648
  %v2779 = vxor.u32 %v2699, 2147483648
  %v2780 = vxor.u32 %v2702, 2147483648
  %v2781 = vxor.u32 %v2707, 2147483648
  %v2782 = vxor.u32 %v2710, 2147483648
  %v2783 = vxor.u32 %v2715, 2147483648
  %v2784 = vxor.u32 %v2718, 2147483648
  %v2785 = vmul.f32 %v2721, 1.442695
  %v2786 = vpow.pop %v2785
  %v2787 = vmul.f32 %v2722, 1.442695
  %v2788 = vpow.pop %v2787
  %v2789 = vmul.f32 %v2723, 1.442695
  %v2790 = vpow.pop %v2789
  %v2791 = vmul.f32 %v2724, 1.442695
  %v2792 = vpow.pop %v2791
  %v2793 = vmul.f32 %v2725, 1.442695
  %v2794 = vpow.pop %v2793
  %v2795 = vmul.f32 %v2726, 1.442695
  %v2796 = vpow.pop %v2795
  %v2797 = vmul.f32 %v2727, 1.442695
  %v2798 = vpow.pop %v2797
  %v2799 = vmul.f32 %v2728, 1.442695
  %v2800 = vpow.pop %v2799
  %v2801 = vmul.f32 %v2729, 1.442695
  %v2802 = vpow.pop %v2801
  %v2803 = vmul.f32 %v2730, 1.442695
  %v2804 = vpow.pop %v2803
  %v2805 = vmul.f32 %v2731, 1.442695
  %v2806 = vpow.pop %v2805
  %v2807 = vmul.f32 %v2732, 1.442695
  %v2808 = vpow.pop %v2807
  %v2809 = vmul.f32 %v2733, 1.442695
  %v2810 = vpow.pop %v2809
  %v2811 = vmul.f32 %v2734, 1.442695
  %v2812 = vpow.pop %v2811
  %v2813 = vmul.f32 %v2735, 1.442695
  %v2814 = vpow.pop %v2813
  %v2815 = vmul.f32 %v2736, 1.442695
  %v2816 = vpow.pop %v2815
  %v2817 = vmul.f32 %v2737, 1.442695
  %v2818 = vpow.pop %v2817
  %v2819 = vmul.f32 %v2738, 1.442695
  %v2820 = vpow.pop %v2819
  %v2821 = vmul.f32 %v2739, 1.442695
  %v2822 = vpow.pop %v2821
  %v2823 = vmul.f32 %v2740, 1.442695
  %v2824 = vpow.pop %v2823
  %v2825 = vmul.f32 %v2741, 1.442695
  %v2826 = vpow.pop %v2825
  %v2827 = vmul.f32 %v2742, 1.442695
  %v2828 = vpow.pop %v2827
  %v2829 = vmul.f32 %v2743, 1.442695
  %v2830 = vpow.pop %v2829
  %v2831 = vmul.f32 %v2744, 1.442695
  %v2832 = vpow.pop %v2831
  %v2833 = vmul.f32 %v2745, 1.442695
  %v2834 = vpow.pop %v2833
  %v2835 = vmul.f32 %v2746, 1.442695
  %v2836 = vpow.pop %v2835
  %v2837 = vmul.f32 %v2747, 1.442695
  %v2838 = vpow.pop %v2837
  %v2839 = vmul.f32 %v2748, 1.442695
  %v2840 = vpow.pop %v2839
  %v2841 = vmul.f32 %v2749, 1.442695
  %v2842 = vpow.pop %v2841
  %v2843 = vmul.f32 %v2750, 1.442695
  %v2844 = vpow.pop %v2843
  %v2845 = vmul.f32 %v2751, 1.442695
  %v2846 = vpow.pop %v2845
  %v2847 = vmul.f32 %v2752, 1.442695
  %v2848 = vpow.pop %v2847
  %v2849 = vmul.f32 %v2753, 1.442695
  %v2850 = vpow.pop %v2849
  %v2851 = vmul.f32 %v2754, 1.442695
  %v2852 = vpow.pop %v2851
  %v2853 = vmul.f32 %v2755, 1.442695
  %v2854 = vpow.pop %v2853
  %v2855 = vmul.f32 %v2756, 1.442695
  %v2856 = vpow.pop %v2855
  %v2857 = vmul.f32 %v2757, 1.442695
  %v2858 = vpow.pop %v2857
  %v2859 = vmul.f32 %v2758, 1.442695
  %v2860 = vpow.pop %v2859
  %v2861 = vmul.f32 %v2759, 1.442695
  %v2862 = vpow.pop %v2861
  %v2863 = vmul.f32 %v2760, 1.442695
  %v2864 = vpow.pop %v2863
  %v2865 = vmul.f32 %v2761, 1.442695
  %v2866 = vpow.pop %v2865
  %v2867 = vmul.f32 %v2762, 1.442695
  %v2868 = vpow.pop %v2867
  %v2869 = vmul.f32 %v2763, 1.442695
  %v2870 = vpow.pop %v2869
  %v2871 = vmul.f32 %v2764, 1.442695
  %v2872 = vpow.pop %v2871
  %v2873 = vmul.f32 %v2765, 1.442695
  %v2874 = vpow.pop %v2873
  %v2875 = vmul.f32 %v2766, 1.442695
  %v2876 = vpow.pop %v2875
  %v2877 = vmul.f32 %v2767, 1.442695
  %v2878 = vpow.pop %v2877
  %v2879 = vmul.f32 %v2768, 1.442695
  %v2880 = vpow.pop %v2879
  %v2881 = vmul.f32 %v2769, 1.442695
  %v2882 = vpow.pop %v2881
  %v2883 = vmul.f32 %v2770, 1.442695
  %v2884 = vpow.pop %v2883
  %v2885 = vmul.f32 %v2771, 1.442695
  %v2886 = vpow.pop %v2885
  %v2887 = vmul.f32 %v2772, 1.442695
  %v2888 = vpow.pop %v2887
  %v2889 = vmul.f32 %v2773, 1.442695
  %v2890 = vpow.pop %v2889
  %v2891 = vmul.f32 %v2774, 1.442695
  %v2892 = vpow.pop %v2891
  %v2893 = vmul.f32 %v2775, 1.442695
  %v2894 = vpow.pop %v2893
  %v2895 = vmul.f32 %v2776, 1.442695
  %v2896 = vpow.pop %v2895
  %v2897 = vmul.f32 %v2777, 1.442695
  %v2898 = vpow.pop %v2897
  %v2899 = vmul.f32 %v2778, 1.442695
  %v2900 = vpow.pop %v2899
  %v2901 = vmul.f32 %v2779, 1.442695
  %v2902 = vpow.pop %v2901
  %v2903 = vmul.f32 %v2780, 1.442695
  %v2904 = vpow.pop %v2903
  %v2905 = vmul.f32 %v2781, 1.442695
  %v2906 = vpow.pop %v2905
  %v2907 = vmul.f32 %v2782, 1.442695
  %v2908 = vpow.pop %v2907
  %v2909 = vmul.f32 %v2783, 1.442695
  %v2910 = vpow.pop %v2909
  %v2911 = vmul.f32 %v2784, 1.442695
  %v2912 = vpow.pop %v2911
  %v2913 = vadd.f32 %v2786, 1.0
  %v2914 = vadd.f32 %v2788, 1.0
  %v2915 = vadd.f32 %v2790, 1.0
  %v2916 = vadd.f32 %v2792, 1.0
  %v2917 = vadd.f32 %v2794, 1.0
  %v2918 = vadd.f32 %v2796, 1.0
  %v2919 = vadd.f32 %v2798, 1.0
  %v2920 = vadd.f32 %v2800, 1.0
  %v2921 = vadd.f32 %v2802, 1.0
  %v2922 = vadd.f32 %v2804, 1.0
  %v2923 = vadd.f32 %v2806, 1.0
  %v2924 = vadd.f32 %v2808, 1.0
  %v2925 = vadd.f32 %v2810, 1.0
  %v2926 = vadd.f32 %v2812, 1.0
  %v2927 = vadd.f32 %v2814, 1.0
  %v2928 = vadd.f32 %v2816, 1.0
  %v2929 = vadd.f32 %v2818, 1.0
  %v2930 = vadd.f32 %v2820, 1.0
  %v2931 = vadd.f32 %v2822, 1.0
  %v2932 = vadd.f32 %v2824, 1.0
  %v2933 = vadd.f32 %v2826, 1.0
  %v2934 = vadd.f32 %v2828, 1.0
  %v2935 = vadd.f32 %v2830, 1.0
  %v2936 = vadd.f32 %v2832, 1.0
  %v2937 = vadd.f32 %v2834, 1.0
  %v2938 = vadd.f32 %v2836, 1.0
  %v2939 = vadd.f32 %v2838, 1.0
  %v2940 = vadd.f32 %v2840, 1.0
  %v2941 = vadd.f32 %v2842, 1.0
  %v2942 = vadd.f32 %v2844, 1.0
  %v2943 = vadd.f32 %v2846, 1.0
  %v2944 = vadd.f32 %v2848, 1.0
  %v2945 = vadd.f32 %v2850, 1.0
  %v2946 = vadd.f32 %v2852, 1.0
  %v2947 = vadd.f32 %v2854, 1.0
  %v2948 = vadd.f32 %v2856, 1.0
  %v2949 = vadd.f32 %v2858, 1.0
  %v2950 = vadd.f32 %v2860, 1.0
  %v2951 = vadd.f32 %v2862, 1.0
  %v2952 = vadd.f32 %v2864, 1.0
  %v2953 = vadd.f32 %v2866, 1.0
  %v2954 = vadd.f32 %v2868, 1.0
  %v2955 = vadd.f32 %v2870, 1.0
  %v2956 = vadd.f32 %v2872, 1.0
  %v2957 = vadd.f32 %v2874, 1.0
  %v2958 = vadd.f32 %v2876, 1.0
  %v2959 = vadd.f32 %v2878, 1.0
  %v2960 = vadd.f32 %v2880, 1.0
  %v2961 = vadd.f32 %v2882, 1.0
  %v2962 = vadd.f32 %v2884, 1.0
  %v2963 = vadd.f32 %v2886, 1.0
  %v2964 = vadd.f32 %v2888, 1.0
  %v2965 = vadd.f32 %v2890, 1.0
  %v2966 = vadd.f32 %v2892, 1.0
  %v2967 = vadd.f32 %v2894, 1.0
  %v2968 = vadd.f32 %v2896, 1.0
  %v2969 = vadd.f32 %v2898, 1.0
  %v2970 = vadd.f32 %v2900, 1.0
  %v2971 = vadd.f32 %v2902, 1.0
  %v2972 = vadd.f32 %v2904, 1.0
  %v2973 = vadd.f32 %v2906, 1.0
  %v2974 = vadd.f32 %v2908, 1.0
  %v2975 = vadd.f32 %v2910, 1.0
  %v2976 = vadd.f32 %v2912, 1.0
  %v2977 = vrcp.pop %v2913
  %v2978 = vmul.f32 1.0, %v2977
  %v2979 = vrcp.pop %v2914
  %v2980 = vmul.f32 1.0, %v2979
  %v2981 = vrcp.pop %v2915
  %v2982 = vmul.f32 1.0, %v2981
  %v2983 = vrcp.pop %v2916
  %v2984 = vmul.f32 1.0, %v2983
  %v2985 = vrcp.pop %v2917
  %v2986 = vmul.f32 1.0, %v2985
  %v2987 = vrcp.pop %v2918
  %v2988 = vmul.f32 1.0, %v2987
  %v2989 = vrcp.pop %v2919
  %v2990 = vmul.f32 1.0, %v2989
  %v2991 = vrcp.pop %v2920
  %v2992 = vmul.f32 1.0, %v2991
  %v2993 = vrcp.pop %v2921
  %v2994 = vmul.f32 1.0, %v2993
  %v2995 = vrcp.pop %v2922
  %v2996 = vmul.f32 1.0, %v2995
  %v2997 = vrcp.pop %v2923
  %v2998 = vmul.f32 1.0, %v2997
  %v2999 = vrcp.pop %v2924
  %v3000 = vmul.f32 1.0, %v2999
  %v3001 = vrcp.pop %v2925
  %v3002 = vmul.f32 1.0, %v3001
  %v3003 = vrcp.pop %v2926
  %v3004 = vmul.f32 1.0, %v3003
  %v3005 = vrcp.pop %v2927
  %v3006 = vmul.f32 1.0, %v3005
  %v3007 = vrcp.pop %v2928
  %v3008 = vmul.f32 1.0, %v3007
  %v3009 = vrcp.pop %v2929
  %v3010 = vmul.f32 1.0, %v3009
  %v3011 = vrcp.pop %v2930
  %v3012 = vmul.f32 1.0, %v3011
  %v3013 = vrcp.pop %v2931
  %v3014 = vmul.f32 1.0, %v3013
  %v3015 = vrcp.pop %v2932
  %v3016 = vmul.f32 1.0, %v3015
  %v3017 = vrcp.pop %v2933
  %v3018 = vmul.f32 1.0, %v3017
  %v3019 = vrcp.pop %v2934
  %v3020 = vmul.f32 1.0, %v3019
  %v3021 = vrcp.pop %v2935
  %v3022 = vmul.f32 1.0, %v3021
  %v3023 = vrcp.pop %v2936
  %v3024 = vmul.f32 1.0, %v3023
  %v3025 = vrcp.pop %v2937
  %v3026 = vmul.f32 1.0, %v3025
  %v3027 = vrcp.pop %v2938
  %v3028 = vmul.f32 1.0, %v3027
  %v3029 = vrcp.pop %v2939
  %v3030 = vmul.f32 1.0, %v3029
  %v3031 = vrcp.pop %v2940
  %v3032 = vmul.f32 1.0, %v3031
  %v3033 = vrcp.pop %v2941
  %v3034 = vmul.f32 1.0, %v3033
  %v3035 = vrcp.pop %v2942
  %v3036 = vmul.f32 1.0, %v3035
  %v3037 = vrcp.pop %v2943
  %v3038 = vmul.f32 1.0, %v3037
  %v3039 = vrcp.pop %v2944
  %v3040 = vmul.f32 1.0, %v3039
  %v3041 = vrcp.pop %v2945
  %v3042 = vmul.f32 1.0, %v3041
  %v3043 = vrcp.pop %v2946
  %v3044 = vmul.f32 1.0, %v3043
  %v3045 = vrcp.pop %v2947
  %v3046 = vmul.f32 1.0, %v3045
  %v3047 = vrcp.pop %v2948
  %v3048 = vmul.f32 1.0, %v3047
  %v3049 = vrcp.pop %v2949
  %v3050 = vmul.f32 1.0, %v3049
  %v3051 = vrcp.pop %v2950
  %v3052 = vmul.f32 1.0, %v3051
  %v3053 = vrcp.pop %v2951
  %v3054 = vmul.f32 1.0, %v3053
  %v3055 = vrcp.pop %v2952
  %v3056 = vmul.f32 1.0, %v3055
  %v3057 = vrcp.pop %v2953
  %v3058 = vmul.f32 1.0, %v3057
  %v3059 = vrcp.pop %v2954
  %v3060 = vmul.f32 1.0, %v3059
  %v3061 = vrcp.pop %v2955
  %v3062 = vmul.f32 1.0, %v3061
  %v3063 = vrcp.pop %v2956
  %v3064 = vmul.f32 1.0, %v3063
  %v3065 = vrcp.pop %v2957
  %v3066 = vmul.f32 1.0, %v3065
  %v3067 = vrcp.pop %v2958
  %v3068 = vmul.f32 1.0, %v3067
  %v3069 = vrcp.pop %v2959
  %v3070 = vmul.f32 1.0, %v3069
  %v3071 = vrcp.pop %v2960
  %v3072 = vmul.f32 1.0, %v3071
  %v3073 = vrcp.pop %v2961
  %v3074 = vmul.f32 1.0, %v3073
  %v3075 = vrcp.pop %v2962
  %v3076 = vmul.f32 1.0, %v3075
  %v3077 = vrcp.pop %v2963
  %v3078 = vmul.f32 1.0, %v3077
  %v3079 = vrcp.pop %v2964
  %v3080 = vmul.f32 1.0, %v3079
  %v3081 = vrcp.pop %v2965
  %v3082 = vmul.f32 1.0, %v3081
  %v3083 = vrcp.pop %v2966
  %v3084 = vmul.f32 1.0, %v3083
  %v3085 = vrcp.pop %v2967
  %v3086 = vmul.f32 1.0, %v3085
  %v3087 = vrcp.pop %v2968
  %v3088 = vmul.f32 1.0, %v3087
  %v3089 = vrcp.pop %v2969
  %v3090 = vmul.f32 1.0, %v3089
  %v3091 = vrcp.pop %v2970
  %v3092 = vmul.f32 1.0, %v3091
  %v3093 = vrcp.pop %v2971
  %v3094 = vmul.f32 1.0, %v3093
  %v3095 = vrcp.pop %v2972
  %v3096 = vmul.f32 1.0, %v3095
  %v3097 = vrcp.pop %v2973
  %v3098 = vmul.f32 1.0, %v3097
  %v3099 = vrcp.pop %v2974
  %v3100 = vmul.f32 1.0, %v3099
  %v3101 = vrcp.pop %v2975
  %v3102 = vmul.f32 1.0, %v3101
  %v3103 = vrcp.pop %v2976
  %v3104 = vmul.f32 1.0, %v3103
  %v3105 = vmul.f32 %v2978, %v85
  %v3106 = vmul.f32 %v2980, %v86
  %v3107 = vmul.f32 %v2982, %v87
  %v3108 = vmul.f32 %v2984, %v88
  %v3109 = vmul.f32 %v2986, %v89
  %v3110 = vmul.f32 %v2988, %v90
  %v3111 = vmul.f32 %v2990, %v91
  %v3112 = vmul.f32 %v2992, %v92
  %v3113 = vmul.f32 %v2994, %v93
  %v3114 = vmul.f32 %v2996, %v94
  %v3115 = vmul.f32 %v2998, %v95
  %v3116 = vmul.f32 %v3000, %v96
  %v3117 = vmul.f32 %v3002, %v97
  %v3118 = vmul.f32 %v3004, %v98
  %v3119 = vmul.f32 %v3006, %v99
  %v3120 = vmul.f32 %v3008, %v100
  %v3121 = vmul.f32 %v3010, %v101
  %v3122 = vmul.f32 %v3012, %v102
  %v3123 = vmul.f32 %v3014, %v103
  %v3124 = vmul.f32 %v3016, %v104
  %v3125 = vmul.f32 %v3018, %v105
  %v3126 = vmul.f32 %v3020, %v106
  %v3127 = vmul.f32 %v3022, %v107
  %v3128 = vmul.f32 %v3024, %v108
  %v3129 = vmul.f32 %v3026, %v109
  %v3130 = vmul.f32 %v3028, %v110
  %v3131 = vmul.f32 %v3030, %v111
  %v3132 = vmul.f32 %v3032, %v112
  %v3133 = vmul.f32 %v3034, %v113
  %v3134 = vmul.f32 %v3036, %v114
  %v3135 = vmul.f32 %v3038, %v115
  %v3136 = vmul.f32 %v3040, %v116
  %v3137 = vmul.f32 %v3042, %v117
  %v3138 = vmul.f32 %v3044, %v118
  %v3139 = vmul.f32 %v3046, %v119
  %v3140 = vmul.f32 %v3048, %v120
  %v3141 = vmul.f32 %v3050, %v121
  %v3142 = vmul.f32 %v3052, %v122
  %v3143 = vmul.f32 %v3054, %v123
  %v3144 = vmul.f32 %v3056, %v124
  %v3145 = vmul.f32 %v3058, %v125
  %v3146 = vmul.f32 %v3060, %v126
  %v3147 = vmul.f32 %v3062, %v127
  %v3148 = vmul.f32 %v3064, %v128
  %v3149 = vmul.f32 %v3066, %v129
  %v3150 = vmul.f32 %v3068, %v130
  %v3151 = vmul.f32 %v3070, %v131
  %v3152 = vmul.f32 %v3072, %v132
  %v3153 = vmul.f32 %v3074, %v133
  %v3154 = vmul.f32 %v3076, %v134
  %v3155 = vmul.f32 %v3078, %v135
  %v3156 = vmul.f32 %v3080, %v136
  %v3157 = vmul.f32 %v3082, %v137
  %v3158 = vmul.f32 %v3084, %v138
  %v3159 = vmul.f32 %v3086, %v139
  %v3160 = vmul.f32 %v3088, %v140
  %v3161 = vmul.f32 %v3090, %v141
  %v3162 = vmul.f32 %v3092, %v142
  %v3163 = vmul.f32 %v3094, %v143
  %v3164 = vmul.f32 %v3096, %v144
  %v3165 = vmul.f32 %v3098, %v145
  %v3166 = vmul.f32 %v3100, %v146
  %v3167 = vmul.f32 %v3102, %v147
  %v3168 = vmul.f32 %v3104, %v148
  %v3169 = vpack.c.bf16 %v3106, %v3105
  %v3170 = vpack.c.bf16 %v3108, %v3107
  %v3171 = vpack.c.bf16 %v3110, %v3109
  %v3172 = vpack.c.bf16 %v3112, %v3111
  %v3173 = vpack.c.bf16 %v3114, %v3113
  %v3174 = vpack.c.bf16 %v3116, %v3115
  %v3175 = vpack.c.bf16 %v3118, %v3117
  %v3176 = vpack.c.bf16 %v3120, %v3119
  %v3177 = vpack.c.bf16 %v3122, %v3121
  %v3178 = vpack.c.bf16 %v3124, %v3123
  %v3179 = vpack.c.bf16 %v3126, %v3125
  %v3180 = vpack.c.bf16 %v3128, %v3127
  %v3181 = vpack.c.bf16 %v3130, %v3129
  %v3182 = vpack.c.bf16 %v3132, %v3131
  %v3183 = vpack.c.bf16 %v3134, %v3133
  %v3184 = vpack.c.bf16 %v3136, %v3135
  %v3185 = vpack.c.bf16 %v3138, %v3137
  %v3186 = vpack.c.bf16 %v3140, %v3139
  %v3187 = vpack.c.bf16 %v3142, %v3141
  %v3188 = vpack.c.bf16 %v3144, %v3143
  %v3189 = vpack.c.bf16 %v3146, %v3145
  %v3190 = vpack.c.bf16 %v3148, %v3147
  %v3191 = vpack.c.bf16 %v3150, %v3149
  %v3192 = vpack.c.bf16 %v3152, %v3151
  %v3193 = vpack.c.bf16 %v3154, %v3153
  %v3194 = vpack.c.bf16 %v3156, %v3155
  %v3195 = vpack.c.bf16 %v3158, %v3157
  %v3196 = vpack.c.bf16 %v3160, %v3159
  %v3197 = vpack.c.bf16 %v3162, %v3161
  %v3198 = vpack.c.bf16 %v3164, %v3163
  %v3199 = vpack.c.bf16 %v3166, %v3165
  %v3200 = vpack.c.bf16 %v3168, %v3167
  %v3202 = vshrl.u32 %v3169, 16
  %v3204 = vrot.slane %v3202, 7
  %v3205 = vshll.u32 %v3169, 16
  %v3207 = vor.u32 %v3204, %v3205
  %v3209 = vshrl.u32 %v3170, 16
  %v3211 = vrot.slane %v3209, 7
  %v3212 = vshll.u32 %v3170, 16
  %v3214 = vor.u32 %v3211, %v3212
  %v3216 = vshrl.u32 %v3171, 16
  %v3218 = vrot.slane %v3216, 7
  %v3219 = vshll.u32 %v3171, 16
  %v3221 = vor.u32 %v3218, %v3219
  %v3223 = vshrl.u32 %v3172, 16
  %v3225 = vrot.slane %v3223, 7
  %v3226 = vshll.u32 %v3172, 16
  %v3228 = vor.u32 %v3225, %v3226
  %v3230 = vshrl.u32 %v3173, 16
  %v3232 = vrot.slane %v3230, 7
  %v3233 = vshll.u32 %v3173, 16
  %v3235 = vor.u32 %v3232, %v3233
  %v3237 = vshrl.u32 %v3174, 16
  %v3239 = vrot.slane %v3237, 7
  %v3240 = vshll.u32 %v3174, 16
  %v3242 = vor.u32 %v3239, %v3240
  %v3244 = vshrl.u32 %v3175, 16
  %v3246 = vrot.slane %v3244, 7
  %v3247 = vshll.u32 %v3175, 16
  %v3249 = vor.u32 %v3246, %v3247
  %v3251 = vshrl.u32 %v3176, 16
  %v3253 = vrot.slane %v3251, 7
  %v3254 = vshll.u32 %v3176, 16
  %v3256 = vor.u32 %v3253, %v3254
  %v3258 = vshrl.u32 %v3177, 16
  %v3260 = vrot.slane %v3258, 7
  %v3261 = vshll.u32 %v3177, 16
  %v3263 = vor.u32 %v3260, %v3261
  %v3265 = vshrl.u32 %v3178, 16
  %v3267 = vrot.slane %v3265, 7
  %v3268 = vshll.u32 %v3178, 16
  %v3270 = vor.u32 %v3267, %v3268
  %v3272 = vshrl.u32 %v3179, 16
  %v3274 = vrot.slane %v3272, 7
  %v3275 = vshll.u32 %v3179, 16
  %v3277 = vor.u32 %v3274, %v3275
  %v3279 = vshrl.u32 %v3180, 16
  %v3281 = vrot.slane %v3279, 7
  %v3282 = vshll.u32 %v3180, 16
  %v3284 = vor.u32 %v3281, %v3282
  %v3286 = vshrl.u32 %v3181, 16
  %v3288 = vrot.slane %v3286, 7
  %v3289 = vshll.u32 %v3181, 16
  %v3291 = vor.u32 %v3288, %v3289
  %v3293 = vshrl.u32 %v3182, 16
  %v3295 = vrot.slane %v3293, 7
  %v3296 = vshll.u32 %v3182, 16
  %v3298 = vor.u32 %v3295, %v3296
  %v3300 = vshrl.u32 %v3183, 16
  %v3302 = vrot.slane %v3300, 7
  %v3303 = vshll.u32 %v3183, 16
  %v3305 = vor.u32 %v3302, %v3303
  %v3307 = vshrl.u32 %v3184, 16
  %v3309 = vrot.slane %v3307, 7
  %v3310 = vshll.u32 %v3184, 16
  %v3312 = vor.u32 %v3309, %v3310
  %v3314 = vshrl.u32 %v3185, 16
  %v3316 = vrot.slane %v3314, 7
  %v3317 = vshll.u32 %v3185, 16
  %v3319 = vor.u32 %v3316, %v3317
  %v3321 = vshrl.u32 %v3186, 16
  %v3323 = vrot.slane %v3321, 7
  %v3324 = vshll.u32 %v3186, 16
  %v3326 = vor.u32 %v3323, %v3324
  %v3328 = vshrl.u32 %v3187, 16
  %v3330 = vrot.slane %v3328, 7
  %v3331 = vshll.u32 %v3187, 16
  %v3333 = vor.u32 %v3330, %v3331
  %v3335 = vshrl.u32 %v3188, 16
  %v3337 = vrot.slane %v3335, 7
  %v3338 = vshll.u32 %v3188, 16
  %v3340 = vor.u32 %v3337, %v3338
  %v3342 = vshrl.u32 %v3189, 16
  %v3344 = vrot.slane %v3342, 7
  %v3345 = vshll.u32 %v3189, 16
  %v3347 = vor.u32 %v3344, %v3345
  %v3349 = vshrl.u32 %v3190, 16
  %v3351 = vrot.slane %v3349, 7
  %v3352 = vshll.u32 %v3190, 16
  %v3354 = vor.u32 %v3351, %v3352
  %v3356 = vshrl.u32 %v3191, 16
  %v3358 = vrot.slane %v3356, 7
  %v3359 = vshll.u32 %v3191, 16
  %v3361 = vor.u32 %v3358, %v3359
  %v3363 = vshrl.u32 %v3192, 16
  %v3365 = vrot.slane %v3363, 7
  %v3366 = vshll.u32 %v3192, 16
  %v3368 = vor.u32 %v3365, %v3366
  %v3370 = vshrl.u32 %v3193, 16
  %v3372 = vrot.slane %v3370, 7
  %v3373 = vshll.u32 %v3193, 16
  %v3375 = vor.u32 %v3372, %v3373
  %v3377 = vshrl.u32 %v3194, 16
  %v3379 = vrot.slane %v3377, 7
  %v3380 = vshll.u32 %v3194, 16
  %v3382 = vor.u32 %v3379, %v3380
  %v3384 = vshrl.u32 %v3195, 16
  %v3386 = vrot.slane %v3384, 7
  %v3387 = vshll.u32 %v3195, 16
  %v3389 = vor.u32 %v3386, %v3387
  %v3391 = vshrl.u32 %v3196, 16
  %v3393 = vrot.slane %v3391, 7
  %v3394 = vshll.u32 %v3196, 16
  %v3396 = vor.u32 %v3393, %v3394
  %v3398 = vshrl.u32 %v3197, 16
  %v3400 = vrot.slane %v3398, 7
  %v3401 = vshll.u32 %v3197, 16
  %v3403 = vor.u32 %v3400, %v3401
  %v3405 = vshrl.u32 %v3198, 16
  %v3407 = vrot.slane %v3405, 7
  %v3408 = vshll.u32 %v3198, 16
  %v3410 = vor.u32 %v3407, %v3408
  %v3412 = vshrl.u32 %v3199, 16
  %v3414 = vrot.slane %v3412, 7
  %v3415 = vshll.u32 %v3199, 16
  %v3417 = vor.u32 %v3414, %v3415
  %v3419 = vshrl.u32 %v3200, 16
  %v3421 = vrot.slane %v3419, 7
  %v3422 = vshll.u32 %v3200, 16
  %v3424 = vor.u32 %v3421, %v3422
  %v3489 = vsel %vm664, 0, %v3207
  %v3490 = vsel %vm664, 0, %v3214
  %v3491 = vsel %vm664, 0, %v3221
  %v3492 = vsel %vm664, 0, %v3228
  %v3493 = vsel %vm664, 0, %v3235
  %v3494 = vsel %vm664, 0, %v3242
  %v3495 = vsel %vm664, 0, %v3249
  %v3496 = vsel %vm664, 0, %v3256
  %v3497 = vsel %vm664, 0, %v3263
  %v3498 = vsel %vm664, 0, %v3270
  %v3499 = vsel %vm664, 0, %v3277
  %v3500 = vsel %vm664, 0, %v3284
  %v3501 = vsel %vm664, 0, %v3291
  %v3502 = vsel %vm664, 0, %v3298
  %v3503 = vsel %vm664, 0, %v3305
  %v3504 = vsel %vm664, 0, %v3312
  %v3505 = vsel %vm664, 0, %v3319
  %v3506 = vsel %vm664, 0, %v3326
  %v3507 = vsel %vm664, 0, %v3333
  %v3508 = vsel %vm664, 0, %v3340
  %v3509 = vsel %vm664, 0, %v3347
  %v3510 = vsel %vm664, 0, %v3354
  %v3511 = vsel %vm664, 0, %v3361
  %v3512 = vsel %vm664, 0, %v3368
  %v3513 = vsel %vm664, 0, %v3375
  %v3514 = vsel %vm664, 0, %v3382
  %v3515 = vsel %vm664, 0, %v3389
  %v3516 = vsel %vm664, 0, %v3396
  %v3517 = vsel %vm664, 0, %v3403
  %v3518 = vsel %vm664, 0, %v3410
  %v3519 = vsel %vm664, 0, %v3417
  %v3520 = vsel %vm664, 0, %v3424
  %v3521 = vsel %vm664, %v3204, 0
  %v3522 = vsel %vm664, %v3211, 0
  %v3523 = vsel %vm664, %v3218, 0
  %v3524 = vsel %vm664, %v3225, 0
  %v3525 = vsel %vm664, %v3232, 0
  %v3526 = vsel %vm664, %v3239, 0
  %v3527 = vsel %vm664, %v3246, 0
  %v3528 = vsel %vm664, %v3253, 0
  %v3529 = vsel %vm664, %v3260, 0
  %v3530 = vsel %vm664, %v3267, 0
  %v3531 = vsel %vm664, %v3274, 0
  %v3532 = vsel %vm664, %v3281, 0
  %v3533 = vsel %vm664, %v3288, 0
  %v3534 = vsel %vm664, %v3295, 0
  %v3535 = vsel %vm664, %v3302, 0
  %v3536 = vsel %vm664, %v3309, 0
  %v3537 = vsel %vm664, %v3316, 0
  %v3538 = vsel %vm664, %v3323, 0
  %v3539 = vsel %vm664, %v3330, 0
  %v3540 = vsel %vm664, %v3337, 0
  %v3541 = vsel %vm664, %v3344, 0
  %v3542 = vsel %vm664, %v3351, 0
  %v3543 = vsel %vm664, %v3358, 0
  %v3544 = vsel %vm664, %v3365, 0
  %v3545 = vsel %vm664, %v3372, 0
  %v3546 = vsel %vm664, %v3379, 0
  %v3547 = vsel %vm664, %v3386, 0
  %v3548 = vsel %vm664, %v3393, 0
  %v3549 = vsel %vm664, %v3400, 0
  %v3550 = vsel %vm664, %v3407, 0
  %v3551 = vsel %vm664, %v3414, 0
  %v3552 = vsel %vm664, %v3421, 0
  %v3554 = vshrl.u32 %v3489, 16
  %v3556 = vshll.u32 %v3489, 16
  %v3558 = vrot.slane %v3556, 1
  %v3559 = vor.u32 %v3554, %v3558
  %v3561 = vshll.u32 %v3521, 16
  %v3563 = vrot.slane %v3561, 1
  %v3564 = vsel %vm729, %v3559, %v3563
  %v3566 = vshrl.u32 %v3490, 16
  %v3568 = vshll.u32 %v3490, 16
  %v3570 = vrot.slane %v3568, 1
  %v3571 = vor.u32 %v3566, %v3570
  %v3573 = vshll.u32 %v3522, 16
  %v3575 = vrot.slane %v3573, 1
  %v3576 = vsel %vm729, %v3571, %v3575
  %v3578 = vshrl.u32 %v3491, 16
  %v3580 = vshll.u32 %v3491, 16
  %v3582 = vrot.slane %v3580, 1
  %v3583 = vor.u32 %v3578, %v3582
  %v3585 = vshll.u32 %v3523, 16
  %v3587 = vrot.slane %v3585, 1
  %v3588 = vsel %vm729, %v3583, %v3587
  %v3590 = vshrl.u32 %v3492, 16
  %v3592 = vshll.u32 %v3492, 16
  %v3594 = vrot.slane %v3592, 1
  %v3595 = vor.u32 %v3590, %v3594
  %v3597 = vshll.u32 %v3524, 16
  %v3599 = vrot.slane %v3597, 1
  %v3600 = vsel %vm729, %v3595, %v3599
  %v3602 = vshrl.u32 %v3493, 16
  %v3604 = vshll.u32 %v3493, 16
  %v3606 = vrot.slane %v3604, 1
  %v3607 = vor.u32 %v3602, %v3606
  %v3609 = vshll.u32 %v3525, 16
  %v3611 = vrot.slane %v3609, 1
  %v3612 = vsel %vm729, %v3607, %v3611
  %v3614 = vshrl.u32 %v3494, 16
  %v3616 = vshll.u32 %v3494, 16
  %v3618 = vrot.slane %v3616, 1
  %v3619 = vor.u32 %v3614, %v3618
  %v3621 = vshll.u32 %v3526, 16
  %v3623 = vrot.slane %v3621, 1
  %v3624 = vsel %vm729, %v3619, %v3623
  %v3626 = vshrl.u32 %v3495, 16
  %v3628 = vshll.u32 %v3495, 16
  %v3630 = vrot.slane %v3628, 1
  %v3631 = vor.u32 %v3626, %v3630
  %v3633 = vshll.u32 %v3527, 16
  %v3635 = vrot.slane %v3633, 1
  %v3636 = vsel %vm729, %v3631, %v3635
  %v3638 = vshrl.u32 %v3496, 16
  %v3640 = vshll.u32 %v3496, 16
  %v3642 = vrot.slane %v3640, 1
  %v3643 = vor.u32 %v3638, %v3642
  %v3645 = vshll.u32 %v3528, 16
  %v3647 = vrot.slane %v3645, 1
  %v3648 = vsel %vm729, %v3643, %v3647
  %v3650 = vshrl.u32 %v3497, 16
  %v3652 = vshll.u32 %v3497, 16
  %v3654 = vrot.slane %v3652, 1
  %v3655 = vor.u32 %v3650, %v3654
  %v3657 = vshll.u32 %v3529, 16
  %v3659 = vrot.slane %v3657, 1
  %v3660 = vsel %vm729, %v3655, %v3659
  %v3662 = vshrl.u32 %v3498, 16
  %v3664 = vshll.u32 %v3498, 16
  %v3666 = vrot.slane %v3664, 1
  %v3667 = vor.u32 %v3662, %v3666
  %v3669 = vshll.u32 %v3530, 16
  %v3671 = vrot.slane %v3669, 1
  %v3672 = vsel %vm729, %v3667, %v3671
  %v3674 = vshrl.u32 %v3499, 16
  %v3676 = vshll.u32 %v3499, 16
  %v3678 = vrot.slane %v3676, 1
  %v3679 = vor.u32 %v3674, %v3678
  %v3681 = vshll.u32 %v3531, 16
  %v3683 = vrot.slane %v3681, 1
  %v3684 = vsel %vm729, %v3679, %v3683
  %v3686 = vshrl.u32 %v3500, 16
  %v3688 = vshll.u32 %v3500, 16
  %v3690 = vrot.slane %v3688, 1
  %v3691 = vor.u32 %v3686, %v3690
  %v3693 = vshll.u32 %v3532, 16
  %v3695 = vrot.slane %v3693, 1
  %v3696 = vsel %vm729, %v3691, %v3695
  %v3698 = vshrl.u32 %v3501, 16
  %v3700 = vshll.u32 %v3501, 16
  %v3702 = vrot.slane %v3700, 1
  %v3703 = vor.u32 %v3698, %v3702
  %v3705 = vshll.u32 %v3533, 16
  %v3707 = vrot.slane %v3705, 1
  %v3708 = vsel %vm729, %v3703, %v3707
  %v3710 = vshrl.u32 %v3502, 16
  %v3712 = vshll.u32 %v3502, 16
  %v3714 = vrot.slane %v3712, 1
  %v3715 = vor.u32 %v3710, %v3714
  %v3717 = vshll.u32 %v3534, 16
  %v3719 = vrot.slane %v3717, 1
  %v3720 = vsel %vm729, %v3715, %v3719
  %v3722 = vshrl.u32 %v3503, 16
  %v3724 = vshll.u32 %v3503, 16
  %v3726 = vrot.slane %v3724, 1
  %v3727 = vor.u32 %v3722, %v3726
  %v3729 = vshll.u32 %v3535, 16
  %v3731 = vrot.slane %v3729, 1
  %v3732 = vsel %vm729, %v3727, %v3731
  %v3734 = vshrl.u32 %v3505, 16
  %v3736 = vshll.u32 %v3505, 16
  %v3738 = vrot.slane %v3736, 1
  %v3739 = vor.u32 %v3734, %v3738
  %v3741 = vshll.u32 %v3537, 16
  %v3743 = vrot.slane %v3741, 1
  %v3744 = vsel %vm729, %v3739, %v3743
  %v3746 = vshrl.u32 %v3506, 16
  %v3748 = vshll.u32 %v3506, 16
  %v3750 = vrot.slane %v3748, 1
  %v3751 = vor.u32 %v3746, %v3750
  %v3753 = vshll.u32 %v3538, 16
  %v3755 = vrot.slane %v3753, 1
  %v3756 = vsel %vm729, %v3751, %v3755
  %v3758 = vshrl.u32 %v3507, 16
  %v3760 = vshll.u32 %v3507, 16
  %v3762 = vrot.slane %v3760, 1
  %v3763 = vor.u32 %v3758, %v3762
  %v3765 = vshll.u32 %v3539, 16
  %v3767 = vrot.slane %v3765, 1
  %v3768 = vsel %vm729, %v3763, %v3767
  %v3770 = vshrl.u32 %v3508, 16
  %v3772 = vshll.u32 %v3508, 16
  %v3774 = vrot.slane %v3772, 1
  %v3775 = vor.u32 %v3770, %v3774
  %v3777 = vshll.u32 %v3540, 16
  %v3779 = vrot.slane %v3777, 1
  %v3780 = vsel %vm729, %v3775, %v3779
  %v3782 = vshrl.u32 %v3509, 16
  %v3784 = vshll.u32 %v3509, 16
  %v3786 = vrot.slane %v3784, 1
  %v3787 = vor.u32 %v3782, %v3786
  %v3789 = vshll.u32 %v3541, 16
  %v3791 = vrot.slane %v3789, 1
  %v3792 = vsel %vm729, %v3787, %v3791
  %v3794 = vshrl.u32 %v3510, 16
  %v3796 = vshll.u32 %v3510, 16
  %v3798 = vrot.slane %v3796, 1
  %v3799 = vor.u32 %v3794, %v3798
  %v3801 = vshll.u32 %v3542, 16
  %v3803 = vrot.slane %v3801, 1
  %v3804 = vsel %vm729, %v3799, %v3803
  %v3806 = vshrl.u32 %v3511, 16
  %v3808 = vshll.u32 %v3511, 16
  %v3810 = vrot.slane %v3808, 1
  %v3811 = vor.u32 %v3806, %v3810
  %v3813 = vshll.u32 %v3543, 16
  %v3815 = vrot.slane %v3813, 1
  %v3816 = vsel %vm729, %v3811, %v3815
  %v3818 = vshrl.u32 %v3512, 16
  %v3820 = vshll.u32 %v3512, 16
  %v3822 = vrot.slane %v3820, 1
  %v3823 = vor.u32 %v3818, %v3822
  %v3825 = vshll.u32 %v3544, 16
  %v3827 = vrot.slane %v3825, 1
  %v3828 = vsel %vm729, %v3823, %v3827
  %v3830 = vshrl.u32 %v3513, 16
  %v3832 = vshll.u32 %v3513, 16
  %v3834 = vrot.slane %v3832, 1
  %v3835 = vor.u32 %v3830, %v3834
  %v3837 = vshll.u32 %v3545, 16
  %v3839 = vrot.slane %v3837, 1
  %v3840 = vsel %vm729, %v3835, %v3839
  %v3842 = vshrl.u32 %v3514, 16
  %v3844 = vshll.u32 %v3514, 16
  %v3846 = vrot.slane %v3844, 1
  %v3847 = vor.u32 %v3842, %v3846
  %v3849 = vshll.u32 %v3546, 16
  %v3851 = vrot.slane %v3849, 1
  %v3852 = vsel %vm729, %v3847, %v3851
  %v3854 = vshrl.u32 %v3515, 16
  %v3856 = vshll.u32 %v3515, 16
  %v3858 = vrot.slane %v3856, 1
  %v3859 = vor.u32 %v3854, %v3858
  %v3861 = vshll.u32 %v3547, 16
  %v3863 = vrot.slane %v3861, 1
  %v3864 = vsel %vm729, %v3859, %v3863
  %v3866 = vshrl.u32 %v3516, 16
  %v3868 = vshll.u32 %v3516, 16
  %v3870 = vrot.slane %v3868, 1
  %v3871 = vor.u32 %v3866, %v3870
  %v3873 = vshll.u32 %v3548, 16
  %v3875 = vrot.slane %v3873, 1
  %v3876 = vsel %vm729, %v3871, %v3875
  %v3878 = vshrl.u32 %v3517, 16
  %v3880 = vshll.u32 %v3517, 16
  %v3882 = vrot.slane %v3880, 1
  %v3883 = vor.u32 %v3878, %v3882
  %v3885 = vshll.u32 %v3549, 16
  %v3887 = vrot.slane %v3885, 1
  %v3888 = vsel %vm729, %v3883, %v3887
  %v3890 = vshrl.u32 %v3518, 16
  %v3892 = vshll.u32 %v3518, 16
  %v3894 = vrot.slane %v3892, 1
  %v3895 = vor.u32 %v3890, %v3894
  %v3897 = vshll.u32 %v3550, 16
  %v3899 = vrot.slane %v3897, 1
  %v3900 = vsel %vm729, %v3895, %v3899
  %v3902 = vshrl.u32 %v3519, 16
  %v3904 = vshll.u32 %v3519, 16
  %v3906 = vrot.slane %v3904, 1
  %v3907 = vor.u32 %v3902, %v3906
  %v3909 = vshll.u32 %v3551, 16
  %v3911 = vrot.slane %v3909, 1
  %v3912 = vsel %vm729, %v3907, %v3911
  %3913 = vrot.lane.b32.xlu0 %v737, 8
  %v3914 = vpop.permute.xlu0 %3913
  %3915 = vrot.lane.b32.xlu0 %v3564, 8
  %v3916 = vpop.permute.xlu0 %3915
  %3917 = vrot.lane.b32.xlu0 %v3576, 8
  %v3918 = vpop.permute.xlu0 %3917
  %3919 = vrot.lane.b32.xlu0 %v3588, 8
  %v3920 = vpop.permute.xlu0 %3919
  %3921 = vrot.lane.b32.xlu0 %v3600, 8
  %v3922 = vpop.permute.xlu0 %3921
  %3923 = vrot.lane.b32.xlu0 %v3612, 8
  %v3924 = vpop.permute.xlu0 %3923
  %3925 = vrot.lane.b32.xlu0 %v3624, 8
  %v3926 = vpop.permute.xlu0 %3925
  %3927 = vrot.lane.b32.xlu0 %v3636, 8
  %v3928 = vpop.permute.xlu0 %3927
  %3929 = vrot.lane.b32.xlu0 %v3648, 8
  %v3930 = vpop.permute.xlu0 %3929
  %3931 = vrot.lane.b32.xlu0 %v3660, 8
  %v3932 = vpop.permute.xlu0 %3931
  %3933 = vrot.lane.b32.xlu0 %v3672, 8
  %v3934 = vpop.permute.xlu0 %3933
  %3935 = vrot.lane.b32.xlu0 %v3684, 8
  %v3936 = vpop.permute.xlu0 %3935
  %3937 = vrot.lane.b32.xlu0 %v3696, 8
  %v3938 = vpop.permute.xlu0 %3937
  %3939 = vrot.lane.b32.xlu0 %v3708, 8
  %v3940 = vpop.permute.xlu0 %3939
  %3941 = vrot.lane.b32.xlu0 %v3720, 8
  %v3942 = vpop.permute.xlu0 %3941
  %3943 = vrot.lane.b32.xlu0 %v3732, 8
  %v3944 = vpop.permute.xlu0 %3943
  %3945 = vrot.lane.b32.xlu0 %v3744, 8
  %v3946 = vpop.permute.xlu0 %3945
  %3947 = vrot.lane.b32.xlu0 %v3756, 8
  %v3948 = vpop.permute.xlu0 %3947
  %3949 = vrot.lane.b32.xlu0 %v3768, 8
  %v3950 = vpop.permute.xlu0 %3949
  %3951 = vrot.lane.b32.xlu0 %v3780, 8
  %v3952 = vpop.permute.xlu0 %3951
  %3953 = vrot.lane.b32.xlu0 %v3792, 8
  %v3954 = vpop.permute.xlu0 %3953
  %3955 = vrot.lane.b32.xlu0 %v3804, 8
  %v3956 = vpop.permute.xlu0 %3955
  %3957 = vrot.lane.b32.xlu0 %v3816, 8
  %v3958 = vpop.permute.xlu0 %3957
  %3959 = vrot.lane.b32.xlu0 %v3828, 8
  %v3960 = vpop.permute.xlu0 %3959
  %3961 = vrot.lane.b32.xlu0 %v3840, 8
  %v3962 = vpop.permute.xlu0 %3961
  %3963 = vrot.lane.b32.xlu0 %v3852, 8
  %v3964 = vpop.permute.xlu0 %3963
  %3965 = vrot.lane.b32.xlu0 %v3864, 8
  %v3966 = vpop.permute.xlu0 %3965
  %3967 = vrot.lane.b32.xlu0 %v3876, 8
  %v3968 = vpop.permute.xlu0 %3967
  %3969 = vrot.lane.b32.xlu0 %v3888, 8
  %v3970 = vpop.permute.xlu0 %3969
  %3971 = vrot.lane.b32.xlu0 %v3900, 8
  %v3972 = vpop.permute.xlu0 %3971
  %3973 = vrot.lane.b32.xlu0 %v3912, 8
  %v3974 = vpop.permute.xlu0 %3973
  %v4035 = vrot.slane %v3489, 1
  %v4036 = vrot.slane %v3521, 1
  %v4037 = vsel %vm1221, %v4035, %v4036
  %v4038 = vrot.slane %v3490, 1
  %v4039 = vrot.slane %v3522, 1
  %v4040 = vsel %vm1221, %v4038, %v4039
  %v4041 = vrot.slane %v3491, 1
  %v4042 = vrot.slane %v3523, 1
  %v4043 = vsel %vm1221, %v4041, %v4042
  %v4044 = vrot.slane %v3492, 1
  %v4045 = vrot.slane %v3524, 1
  %v4046 = vsel %vm1221, %v4044, %v4045
  %v4047 = vrot.slane %v3493, 1
  %v4048 = vrot.slane %v3525, 1
  %v4049 = vsel %vm1221, %v4047, %v4048
  %v4050 = vrot.slane %v3494, 1
  %v4051 = vrot.slane %v3526, 1
  %v4052 = vsel %vm1221, %v4050, %v4051
  %v4053 = vrot.slane %v3495, 1
  %v4054 = vrot.slane %v3527, 1
  %v4055 = vsel %vm1221, %v4053, %v4054
  %v4056 = vrot.slane %v3496, 1
  %v4057 = vrot.slane %v3528, 1
  %v4058 = vsel %vm1221, %v4056, %v4057
  %v4059 = vrot.slane %v3497, 1
  %v4060 = vrot.slane %v3529, 1
  %v4061 = vsel %vm1221, %v4059, %v4060
  %v4062 = vrot.slane %v3498, 1
  %v4063 = vrot.slane %v3530, 1
  %v4064 = vsel %vm1221, %v4062, %v4063
  %v4065 = vrot.slane %v3499, 1
  %v4066 = vrot.slane %v3531, 1
  %v4067 = vsel %vm1221, %v4065, %v4066
  %v4068 = vrot.slane %v3500, 1
  %v4069 = vrot.slane %v3532, 1
  %v4070 = vsel %vm1221, %v4068, %v4069
  %v4071 = vrot.slane %v3501, 1
  %v4072 = vrot.slane %v3533, 1
  %v4073 = vsel %vm1221, %v4071, %v4072
  %v4074 = vrot.slane %v3502, 1
  %v4075 = vrot.slane %v3534, 1
  %v4076 = vsel %vm1221, %v4074, %v4075
  %v4077 = vrot.slane %v3503, 1
  %v4078 = vrot.slane %v3535, 1
  %v4079 = vsel %vm1221, %v4077, %v4078
  %v4080 = vrot.slane %v3505, 1
  %v4081 = vrot.slane %v3537, 1
  %v4082 = vsel %vm1221, %v4080, %v4081
  %v4083 = vrot.slane %v3506, 1
  %v4084 = vrot.slane %v3538, 1
  %v4085 = vsel %vm1221, %v4083, %v4084
  %v4086 = vrot.slane %v3507, 1
  %v4087 = vrot.slane %v3539, 1
  %v4088 = vsel %vm1221, %v4086, %v4087
  %v4089 = vrot.slane %v3508, 1
  %v4090 = vrot.slane %v3540, 1
  %v4091 = vsel %vm1221, %v4089, %v4090
  %v4092 = vrot.slane %v3509, 1
  %v4093 = vrot.slane %v3541, 1
  %v4094 = vsel %vm1221, %v4092, %v4093
  %v4095 = vrot.slane %v3510, 1
  %v4096 = vrot.slane %v3542, 1
  %v4097 = vsel %vm1221, %v4095, %v4096
  %v4098 = vrot.slane %v3511, 1
  %v4099 = vrot.slane %v3543, 1
  %v4100 = vsel %vm1221, %v4098, %v4099
  %v4101 = vrot.slane %v3512, 1
  %v4102 = vrot.slane %v3544, 1
  %v4103 = vsel %vm1221, %v4101, %v4102
  %v4104 = vrot.slane %v3513, 1
  %v4105 = vrot.slane %v3545, 1
  %v4106 = vsel %vm1221, %v4104, %v4105
  %v4107 = vrot.slane %v3514, 1
  %v4108 = vrot.slane %v3546, 1
  %v4109 = vsel %vm1221, %v4107, %v4108
  %v4110 = vrot.slane %v3515, 1
  %v4111 = vrot.slane %v3547, 1
  %v4112 = vsel %vm1221, %v4110, %v4111
  %v4113 = vrot.slane %v3516, 1
  %v4114 = vrot.slane %v3548, 1
  %v4115 = vsel %vm1221, %v4113, %v4114
  %v4116 = vrot.slane %v3517, 1
  %v4117 = vrot.slane %v3549, 1
  %v4118 = vsel %vm1221, %v4116, %v4117
  %v4119 = vrot.slane %v3518, 1
  %v4120 = vrot.slane %v3550, 1
  %v4121 = vsel %vm1221, %v4119, %v4120
  %v4122 = vrot.slane %v3519, 1
  %v4123 = vrot.slane %v3551, 1
  %v4124 = vsel %vm1221, %v4122, %v4123
  %4125 = vrot.lane.b32.xlu0 %v1223, 16
  %v4126 = vpop.permute.xlu0 %4125
  %4127 = vrot.lane.b32.xlu0 %v4037, 16
  %v4128 = vpop.permute.xlu0 %4127
  %4129 = vrot.lane.b32.xlu0 %v4040, 16
  %v4130 = vpop.permute.xlu0 %4129
  %4131 = vrot.lane.b32.xlu0 %v4043, 16
  %v4132 = vpop.permute.xlu0 %4131
  %4133 = vrot.lane.b32.xlu0 %v4046, 16
  %v4134 = vpop.permute.xlu0 %4133
  %4135 = vrot.lane.b32.xlu0 %v4049, 16
  %v4136 = vpop.permute.xlu0 %4135
  %4137 = vrot.lane.b32.xlu0 %v4052, 16
  %v4138 = vpop.permute.xlu0 %4137
  %4139 = vrot.lane.b32.xlu0 %v4055, 16
  %v4140 = vpop.permute.xlu0 %4139
  %4141 = vrot.lane.b32.xlu0 %v4058, 16
  %v4142 = vpop.permute.xlu0 %4141
  %4143 = vrot.lane.b32.xlu0 %v4061, 16
  %v4144 = vpop.permute.xlu0 %4143
  %4145 = vrot.lane.b32.xlu0 %v4064, 16
  %v4146 = vpop.permute.xlu0 %4145
  %4147 = vrot.lane.b32.xlu0 %v4067, 16
  %v4148 = vpop.permute.xlu0 %4147
  %4149 = vrot.lane.b32.xlu0 %v4070, 16
  %v4150 = vpop.permute.xlu0 %4149
  %4151 = vrot.lane.b32.xlu0 %v4073, 16
  %v4152 = vpop.permute.xlu0 %4151
  %4153 = vrot.lane.b32.xlu0 %v4076, 16
  %v4154 = vpop.permute.xlu0 %4153
  %4155 = vrot.lane.b32.xlu0 %v4079, 16
  %v4156 = vpop.permute.xlu0 %4155
  %4157 = vrot.lane.b32.xlu0 %v4082, 16
  %v4158 = vpop.permute.xlu0 %4157
  %4159 = vrot.lane.b32.xlu0 %v4085, 16
  %v4160 = vpop.permute.xlu0 %4159
  %4161 = vrot.lane.b32.xlu0 %v4088, 16
  %v4162 = vpop.permute.xlu0 %4161
  %4163 = vrot.lane.b32.xlu0 %v4091, 16
  %v4164 = vpop.permute.xlu0 %4163
  %4165 = vrot.lane.b32.xlu0 %v4094, 16
  %v4166 = vpop.permute.xlu0 %4165
  %4167 = vrot.lane.b32.xlu0 %v4097, 16
  %v4168 = vpop.permute.xlu0 %4167
  %4169 = vrot.lane.b32.xlu0 %v4100, 16
  %v4170 = vpop.permute.xlu0 %4169
  %4171 = vrot.lane.b32.xlu0 %v4103, 16
  %v4172 = vpop.permute.xlu0 %4171
  %4173 = vrot.lane.b32.xlu0 %v4106, 16
  %v4174 = vpop.permute.xlu0 %4173
  %4175 = vrot.lane.b32.xlu0 %v4109, 16
  %v4176 = vpop.permute.xlu0 %4175
  %4177 = vrot.lane.b32.xlu0 %v4112, 16
  %v4178 = vpop.permute.xlu0 %4177
  %4179 = vrot.lane.b32.xlu0 %v4115, 16
  %v4180 = vpop.permute.xlu0 %4179
  %4181 = vrot.lane.b32.xlu0 %v4118, 16
  %v4182 = vpop.permute.xlu0 %4181
  %4183 = vrot.lane.b32.xlu0 %v4121, 16
  %v4184 = vpop.permute.xlu0 %4183
  %4185 = vrot.lane.b32.xlu0 %v4124, 16
  %v4186 = vpop.permute.xlu0 %4185
  %4189 = vrot.lane.b32.xlu0 %v3489, 24
  %v4190 = vpop.permute.xlu0 %4189
  %4191 = vrot.lane.b32.xlu0 %v3490, 24
  %v4192 = vpop.permute.xlu0 %4191
  %4193 = vrot.lane.b32.xlu0 %v3491, 24
  %v4194 = vpop.permute.xlu0 %4193
  %4195 = vrot.lane.b32.xlu0 %v3492, 24
  %v4196 = vpop.permute.xlu0 %4195
  %4197 = vrot.lane.b32.xlu0 %v3493, 24
  %v4198 = vpop.permute.xlu0 %4197
  %4199 = vrot.lane.b32.xlu0 %v3494, 24
  %v4200 = vpop.permute.xlu0 %4199
  %4201 = vrot.lane.b32.xlu0 %v3495, 24
  %v4202 = vpop.permute.xlu0 %4201
  %4203 = vrot.lane.b32.xlu0 %v3496, 24
  %v4204 = vpop.permute.xlu0 %4203
  %4205 = vrot.lane.b32.xlu0 %v3497, 24
  %v4206 = vpop.permute.xlu0 %4205
  %4207 = vrot.lane.b32.xlu0 %v3498, 24
  %v4208 = vpop.permute.xlu0 %4207
  %4209 = vrot.lane.b32.xlu0 %v3499, 24
  %v4210 = vpop.permute.xlu0 %4209
  %4211 = vrot.lane.b32.xlu0 %v3500, 24
  %v4212 = vpop.permute.xlu0 %4211
  %4213 = vrot.lane.b32.xlu0 %v3501, 24
  %v4214 = vpop.permute.xlu0 %4213
  %4215 = vrot.lane.b32.xlu0 %v3502, 24
  %v4216 = vpop.permute.xlu0 %4215
  %4217 = vrot.lane.b32.xlu0 %v3503, 24
  %v4218 = vpop.permute.xlu0 %4217
  %4219 = vrot.lane.b32.xlu0 %v3504, 24
  %v4220 = vpop.permute.xlu0 %4219
  %4221 = vrot.lane.b32.xlu0 %v3505, 24
  %v4222 = vpop.permute.xlu0 %4221
  %4223 = vrot.lane.b32.xlu0 %v3506, 24
  %v4224 = vpop.permute.xlu0 %4223
  %4225 = vrot.lane.b32.xlu0 %v3507, 24
  %v4226 = vpop.permute.xlu0 %4225
  %4227 = vrot.lane.b32.xlu0 %v3508, 24
  %v4228 = vpop.permute.xlu0 %4227
  %4229 = vrot.lane.b32.xlu0 %v3509, 24
  %v4230 = vpop.permute.xlu0 %4229
  %4231 = vrot.lane.b32.xlu0 %v3510, 24
  %v4232 = vpop.permute.xlu0 %4231
  %4233 = vrot.lane.b32.xlu0 %v3511, 24
  %v4234 = vpop.permute.xlu0 %4233
  %4235 = vrot.lane.b32.xlu0 %v3512, 24
  %v4236 = vpop.permute.xlu0 %4235
  %4237 = vrot.lane.b32.xlu0 %v3513, 24
  %v4238 = vpop.permute.xlu0 %4237
  %4239 = vrot.lane.b32.xlu0 %v3514, 24
  %v4240 = vpop.permute.xlu0 %4239
  %4241 = vrot.lane.b32.xlu0 %v3515, 24
  %v4242 = vpop.permute.xlu0 %4241
  %4243 = vrot.lane.b32.xlu0 %v3516, 24
  %v4244 = vpop.permute.xlu0 %4243
  %4245 = vrot.lane.b32.xlu0 %v3517, 24
  %v4246 = vpop.permute.xlu0 %4245
  %4247 = vrot.lane.b32.xlu0 %v3518, 24
  %v4248 = vpop.permute.xlu0 %4247
  %4249 = vrot.lane.b32.xlu0 %v3519, 24
  %v4250 = vpop.permute.xlu0 %4249
  %4251 = vrot.lane.b32.xlu0 %v3520, 24
  %v4252 = vpop.permute.xlu0 %4251
  %v4254 = vshrl.u32 %v3504, 16
  %v4256 = vshll.u32 %v3504, 16
  %v4258 = vrot.slane %v4256, 1
  %v4259 = vor.u32 %v4254, %v4258
  %v4261 = vshll.u32 %v3536, 16
  %v4263 = vrot.slane %v4261, 1
  %v4264 = vsel %vm729, %v4259, %v4263
  %v4266 = vshrl.u32 %v3520, 16
  %v4268 = vshll.u32 %v3520, 16
  %v4270 = vrot.slane %v4268, 1
  %v4271 = vor.u32 %v4266, %v4270
  %v4273 = vshll.u32 %v3552, 16
  %v4275 = vrot.slane %v4273, 1
  %v4276 = vsel %vm729, %v4271, %v4275
  %4277 = vrot.lane.b32.xlu0 %v3564, 32
  %v4278 = vpop.permute.xlu0 %4277
  %4279 = vrot.lane.b32.xlu0 %v3576, 32
  %v4280 = vpop.permute.xlu0 %4279
  %4281 = vrot.lane.b32.xlu0 %v3588, 32
  %v4282 = vpop.permute.xlu0 %4281
  %4283 = vrot.lane.b32.xlu0 %v3600, 32
  %v4284 = vpop.permute.xlu0 %4283
  %4285 = vrot.lane.b32.xlu0 %v3612, 32
  %v4286 = vpop.permute.xlu0 %4285
  %4287 = vrot.lane.b32.xlu0 %v3624, 32
  %v4288 = vpop.permute.xlu0 %4287
  %4289 = vrot.lane.b32.xlu0 %v3636, 32
  %v4290 = vpop.permute.xlu0 %4289
  %4291 = vrot.lane.b32.xlu0 %v3648, 32
  %v4292 = vpop.permute.xlu0 %4291
  %4293 = vrot.lane.b32.xlu0 %v3660, 32
  %v4294 = vpop.permute.xlu0 %4293
  %4295 = vrot.lane.b32.xlu0 %v3672, 32
  %v4296 = vpop.permute.xlu0 %4295
  %4297 = vrot.lane.b32.xlu0 %v3684, 32
  %v4298 = vpop.permute.xlu0 %4297
  %4299 = vrot.lane.b32.xlu0 %v3696, 32
  %v4300 = vpop.permute.xlu0 %4299
  %4301 = vrot.lane.b32.xlu0 %v3708, 32
  %v4302 = vpop.permute.xlu0 %4301
  %4303 = vrot.lane.b32.xlu0 %v3720, 32
  %v4304 = vpop.permute.xlu0 %4303
  %4305 = vrot.lane.b32.xlu0 %v3732, 32
  %v4306 = vpop.permute.xlu0 %4305
  %4307 = vrot.lane.b32.xlu0 %v4264, 32
  %v4308 = vpop.permute.xlu0 %4307
  %4309 = vrot.lane.b32.xlu0 %v3744, 32
  %v4310 = vpop.permute.xlu0 %4309
  %4311 = vrot.lane.b32.xlu0 %v3756, 32
  %v4312 = vpop.permute.xlu0 %4311
  %4313 = vrot.lane.b32.xlu0 %v3768, 32
  %v4314 = vpop.permute.xlu0 %4313
  %4315 = vrot.lane.b32.xlu0 %v3780, 32
  %v4316 = vpop.permute.xlu0 %4315
  %4317 = vrot.lane.b32.xlu0 %v3792, 32
  %v4318 = vpop.permute.xlu0 %4317
  %4319 = vrot.lane.b32.xlu0 %v3804, 32
  %v4320 = vpop.permute.xlu0 %4319
  %4321 = vrot.lane.b32.xlu0 %v3816, 32
  %v4322 = vpop.permute.xlu0 %4321
  %4323 = vrot.lane.b32.xlu0 %v3828, 32
  %v4324 = vpop.permute.xlu0 %4323
  %4325 = vrot.lane.b32.xlu0 %v3840, 32
  %v4326 = vpop.permute.xlu0 %4325
  %4327 = vrot.lane.b32.xlu0 %v3852, 32
  %v4328 = vpop.permute.xlu0 %4327
  %4329 = vrot.lane.b32.xlu0 %v3864, 32
  %v4330 = vpop.permute.xlu0 %4329
  %4331 = vrot.lane.b32.xlu0 %v3876, 32
  %v4332 = vpop.permute.xlu0 %4331
  %4333 = vrot.lane.b32.xlu0 %v3888, 32
  %v4334 = vpop.permute.xlu0 %4333
  %4335 = vrot.lane.b32.xlu0 %v3900, 32
  %v4336 = vpop.permute.xlu0 %4335
  %4337 = vrot.lane.b32.xlu0 %v3912, 32
  %v4338 = vpop.permute.xlu0 %4337
  %4339 = vrot.lane.b32.xlu0 %v4276, 32
  %v4340 = vpop.permute.xlu0 %4339
  %v4343 = vrot.slane %v3504, 1
  %v4344 = vrot.slane %v3536, 1
  %v4345 = vsel %vm1221, %v4343, %v4344
  %v4346 = vrot.slane %v3520, 1
  %v4347 = vrot.slane %v3552, 1
  %v4348 = vsel %vm1221, %v4346, %v4347
  %4349 = vrot.lane.b32.xlu0 %v4037, 40
  %v4350 = vpop.permute.xlu0 %4349
  %4351 = vrot.lane.b32.xlu0 %v4040, 40
  %v4352 = vpop.permute.xlu0 %4351
  %4353 = vrot.lane.b32.xlu0 %v4043, 40
  %v4354 = vpop.permute.xlu0 %4353
  %4355 = vrot.lane.b32.xlu0 %v4046, 40
  %v4356 = vpop.permute.xlu0 %4355
  %4357 = vrot.lane.b32.xlu0 %v4049, 40
  %v4358 = vpop.permute.xlu0 %4357
  %4359 = vrot.lane.b32.xlu0 %v4052, 40
  %v4360 = vpop.permute.xlu0 %4359
  %4361 = vrot.lane.b32.xlu0 %v4055, 40
  %v4362 = vpop.permute.xlu0 %4361
  %4363 = vrot.lane.b32.xlu0 %v4058, 40
  %v4364 = vpop.permute.xlu0 %4363
  %4365 = vrot.lane.b32.xlu0 %v4061, 40
  %v4366 = vpop.permute.xlu0 %4365
  %4367 = vrot.lane.b32.xlu0 %v4064, 40
  %v4368 = vpop.permute.xlu0 %4367
  %4369 = vrot.lane.b32.xlu0 %v4067, 40
  %v4370 = vpop.permute.xlu0 %4369
  %4371 = vrot.lane.b32.xlu0 %v4070, 40
  %v4372 = vpop.permute.xlu0 %4371
  %4373 = vrot.lane.b32.xlu0 %v4073, 40
  %v4374 = vpop.permute.xlu0 %4373
  %4375 = vrot.lane.b32.xlu0 %v4076, 40
  %v4376 = vpop.permute.xlu0 %4375
  %4377 = vrot.lane.b32.xlu0 %v4079, 40
  %v4378 = vpop.permute.xlu0 %4377
  %4379 = vrot.lane.b32.xlu0 %v4345, 40
  %v4380 = vpop.permute.xlu0 %4379
  %4381 = vrot.lane.b32.xlu0 %v4082, 40
  %v4382 = vpop.permute.xlu0 %4381
  %4383 = vrot.lane.b32.xlu0 %v4085, 40
  %v4384 = vpop.permute.xlu0 %4383
  %4385 = vrot.lane.b32.xlu0 %v4088, 40
  %v4386 = vpop.permute.xlu0 %4385
  %4387 = vrot.lane.b32.xlu0 %v4091, 40
  %v4388 = vpop.permute.xlu0 %4387
  %4389 = vrot.lane.b32.xlu0 %v4094, 40
  %v4390 = vpop.permute.xlu0 %4389
  %4391 = vrot.lane.b32.xlu0 %v4097, 40
  %v4392 = vpop.permute.xlu0 %4391
  %4393 = vrot.lane.b32.xlu0 %v4100, 40
  %v4394 = vpop.permute.xlu0 %4393
  %4395 = vrot.lane.b32.xlu0 %v4103, 40
  %v4396 = vpop.permute.xlu0 %4395
  %4397 = vrot.lane.b32.xlu0 %v4106, 40
  %v4398 = vpop.permute.xlu0 %4397
  %4399 = vrot.lane.b32.xlu0 %v4109, 40
  %v4400 = vpop.permute.xlu0 %4399
  %4401 = vrot.lane.b32.xlu0 %v4112, 40
  %v4402 = vpop.permute.xlu0 %4401
  %4403 = vrot.lane.b32.xlu0 %v4115, 40
  %v4404 = vpop.permute.xlu0 %4403
  %4405 = vrot.lane.b32.xlu0 %v4118, 40
  %v4406 = vpop.permute.xlu0 %4405
  %4407 = vrot.lane.b32.xlu0 %v4121, 40
  %v4408 = vpop.permute.xlu0 %4407
  %4409 = vrot.lane.b32.xlu0 %v4124, 40
  %v4410 = vpop.permute.xlu0 %4409
  %4411 = vrot.lane.b32.xlu0 %v4348, 40
  %v4412 = vpop.permute.xlu0 %4411
  %4413 = vrot.lane.b32.xlu0 %v3490, 48
  %v4414 = vpop.permute.xlu0 %4413
  %4415 = vrot.lane.b32.xlu0 %v3491, 48
  %v4416 = vpop.permute.xlu0 %4415
  %4417 = vrot.lane.b32.xlu0 %v3492, 48
  %v4418 = vpop.permute.xlu0 %4417
  %4419 = vrot.lane.b32.xlu0 %v3493, 48
  %v4420 = vpop.permute.xlu0 %4419
  %4421 = vrot.lane.b32.xlu0 %v3494, 48
  %v4422 = vpop.permute.xlu0 %4421
  %4423 = vrot.lane.b32.xlu0 %v3495, 48
  %v4424 = vpop.permute.xlu0 %4423
  %4425 = vrot.lane.b32.xlu0 %v3496, 48
  %v4426 = vpop.permute.xlu0 %4425
  %4427 = vrot.lane.b32.xlu0 %v3497, 48
  %v4428 = vpop.permute.xlu0 %4427
  %4429 = vrot.lane.b32.xlu0 %v3498, 48
  %v4430 = vpop.permute.xlu0 %4429
  %4431 = vrot.lane.b32.xlu0 %v3499, 48
  %v4432 = vpop.permute.xlu0 %4431
  %4433 = vrot.lane.b32.xlu0 %v3500, 48
  %v4434 = vpop.permute.xlu0 %4433
  %4435 = vrot.lane.b32.xlu0 %v3501, 48
  %v4436 = vpop.permute.xlu0 %4435
  %4437 = vrot.lane.b32.xlu0 %v3502, 48
  %v4438 = vpop.permute.xlu0 %4437
  %4439 = vrot.lane.b32.xlu0 %v3503, 48
  %v4440 = vpop.permute.xlu0 %4439
  %4441 = vrot.lane.b32.xlu0 %v3504, 48
  %v4442 = vpop.permute.xlu0 %4441
  %4443 = vrot.lane.b32.xlu0 0, 48
  %v4444 = vpop.permute.xlu0 %4443
  %4445 = vrot.lane.b32.xlu0 %v3506, 48
  %v4446 = vpop.permute.xlu0 %4445
  %4447 = vrot.lane.b32.xlu0 %v3507, 48
  %v4448 = vpop.permute.xlu0 %4447
  %4449 = vrot.lane.b32.xlu0 %v3508, 48
  %v4450 = vpop.permute.xlu0 %4449
  %4451 = vrot.lane.b32.xlu0 %v3509, 48
  %v4452 = vpop.permute.xlu0 %4451
  %4453 = vrot.lane.b32.xlu0 %v3510, 48
  %v4454 = vpop.permute.xlu0 %4453
  %4455 = vrot.lane.b32.xlu0 %v3511, 48
  %v4456 = vpop.permute.xlu0 %4455
  %4457 = vrot.lane.b32.xlu0 %v3512, 48
  %v4458 = vpop.permute.xlu0 %4457
  %4459 = vrot.lane.b32.xlu0 %v3513, 48
  %v4460 = vpop.permute.xlu0 %4459
  %4461 = vrot.lane.b32.xlu0 %v3514, 48
  %v4462 = vpop.permute.xlu0 %4461
  %4463 = vrot.lane.b32.xlu0 %v3515, 48
  %v4464 = vpop.permute.xlu0 %4463
  %4465 = vrot.lane.b32.xlu0 %v3516, 48
  %v4466 = vpop.permute.xlu0 %4465
  %4467 = vrot.lane.b32.xlu0 %v3517, 48
  %v4468 = vpop.permute.xlu0 %4467
  %4469 = vrot.lane.b32.xlu0 %v3518, 48
  %v4470 = vpop.permute.xlu0 %4469
  %4471 = vrot.lane.b32.xlu0 %v3519, 48
  %v4472 = vpop.permute.xlu0 %4471
  %4473 = vrot.lane.b32.xlu0 %v3520, 48
  %v4474 = vpop.permute.xlu0 %4473
  %4475 = vrot.lane.b32.xlu0 %v3576, 56
  %v4476 = vpop.permute.xlu0 %4475
  %4477 = vrot.lane.b32.xlu0 %v3588, 56
  %v4478 = vpop.permute.xlu0 %4477
  %4479 = vrot.lane.b32.xlu0 %v3600, 56
  %v4480 = vpop.permute.xlu0 %4479
  %4481 = vrot.lane.b32.xlu0 %v3612, 56
  %v4482 = vpop.permute.xlu0 %4481
  %4483 = vrot.lane.b32.xlu0 %v3624, 56
  %v4484 = vpop.permute.xlu0 %4483
  %4485 = vrot.lane.b32.xlu0 %v3636, 56
  %v4486 = vpop.permute.xlu0 %4485
  %4487 = vrot.lane.b32.xlu0 %v3648, 56
  %v4488 = vpop.permute.xlu0 %4487
  %4489 = vrot.lane.b32.xlu0 %v3660, 56
  %v4490 = vpop.permute.xlu0 %4489
  %4491 = vrot.lane.b32.xlu0 %v3672, 56
  %v4492 = vpop.permute.xlu0 %4491
  %4493 = vrot.lane.b32.xlu0 %v3684, 56
  %v4494 = vpop.permute.xlu0 %4493
  %4495 = vrot.lane.b32.xlu0 %v3696, 56
  %v4496 = vpop.permute.xlu0 %4495
  %4497 = vrot.lane.b32.xlu0 %v3708, 56
  %v4498 = vpop.permute.xlu0 %4497
  %4499 = vrot.lane.b32.xlu0 %v3720, 56
  %v4500 = vpop.permute.xlu0 %4499
  %4501 = vrot.lane.b32.xlu0 %v3732, 56
  %v4502 = vpop.permute.xlu0 %4501
  %4503 = vrot.lane.b32.xlu0 %v4264, 56
  %v4504 = vpop.permute.xlu0 %4503
  %4505 = vrot.lane.b32.xlu0 %v737, 56
  %v4506 = vpop.permute.xlu0 %4505
  %4507 = vrot.lane.b32.xlu0 %v3756, 56
  %v4508 = vpop.permute.xlu0 %4507
  %4509 = vrot.lane.b32.xlu0 %v3768, 56
  %v4510 = vpop.permute.xlu0 %4509
  %4511 = vrot.lane.b32.xlu0 %v3780, 56
  %v4512 = vpop.permute.xlu0 %4511
  %4513 = vrot.lane.b32.xlu0 %v3792, 56
  %v4514 = vpop.permute.xlu0 %4513
  %4515 = vrot.lane.b32.xlu0 %v3804, 56
  %v4516 = vpop.permute.xlu0 %4515
  %4517 = vrot.lane.b32.xlu0 %v3816, 56
  %v4518 = vpop.permute.xlu0 %4517
  %4519 = vrot.lane.b32.xlu0 %v3828, 56
  %v4520 = vpop.permute.xlu0 %4519
  %4521 = vrot.lane.b32.xlu0 %v3840, 56
  %v4522 = vpop.permute.xlu0 %4521
  %4523 = vrot.lane.b32.xlu0 %v3852, 56
  %v4524 = vpop.permute.xlu0 %4523
  %4525 = vrot.lane.b32.xlu0 %v3864, 56
  %v4526 = vpop.permute.xlu0 %4525
  %4527 = vrot.lane.b32.xlu0 %v3876, 56
  %v4528 = vpop.permute.xlu0 %4527
  %4529 = vrot.lane.b32.xlu0 %v3888, 56
  %v4530 = vpop.permute.xlu0 %4529
  %4531 = vrot.lane.b32.xlu0 %v3900, 56
  %v4532 = vpop.permute.xlu0 %4531
  %4533 = vrot.lane.b32.xlu0 %v3912, 56
  %v4534 = vpop.permute.xlu0 %4533
  %4535 = vrot.lane.b32.xlu0 %v4276, 56
  %v4536 = vpop.permute.xlu0 %4535
  %4537 = vrot.lane.b32.xlu0 %v4040, 64
  %v4538 = vpop.permute.xlu0 %4537
  %4539 = vrot.lane.b32.xlu0 %v4043, 64
  %v4540 = vpop.permute.xlu0 %4539
  %4541 = vrot.lane.b32.xlu0 %v4046, 64
  %v4542 = vpop.permute.xlu0 %4541
  %4543 = vrot.lane.b32.xlu0 %v4049, 64
  %v4544 = vpop.permute.xlu0 %4543
  %4545 = vrot.lane.b32.xlu0 %v4052, 64
  %v4546 = vpop.permute.xlu0 %4545
  %4547 = vrot.lane.b32.xlu0 %v4055, 64
  %v4548 = vpop.permute.xlu0 %4547
  %4549 = vrot.lane.b32.xlu0 %v4058, 64
  %v4550 = vpop.permute.xlu0 %4549
  %4551 = vrot.lane.b32.xlu0 %v4061, 64
  %v4552 = vpop.permute.xlu0 %4551
  %4553 = vrot.lane.b32.xlu0 %v4064, 64
  %v4554 = vpop.permute.xlu0 %4553
  %4555 = vrot.lane.b32.xlu0 %v4067, 64
  %v4556 = vpop.permute.xlu0 %4555
  %4557 = vrot.lane.b32.xlu0 %v4070, 64
  %v4558 = vpop.permute.xlu0 %4557
  %4559 = vrot.lane.b32.xlu0 %v4073, 64
  %v4560 = vpop.permute.xlu0 %4559
  %4561 = vrot.lane.b32.xlu0 %v4076, 64
  %v4562 = vpop.permute.xlu0 %4561
  %4563 = vrot.lane.b32.xlu0 %v4079, 64
  %v4564 = vpop.permute.xlu0 %4563
  %4565 = vrot.lane.b32.xlu0 %v4345, 64
  %v4566 = vpop.permute.xlu0 %4565
  %4567 = vrot.lane.b32.xlu0 %v1223, 64
  %v4568 = vpop.permute.xlu0 %4567
  %4569 = vrot.lane.b32.xlu0 %v4085, 64
  %v4570 = vpop.permute.xlu0 %4569
  %4571 = vrot.lane.b32.xlu0 %v4088, 64
  %v4572 = vpop.permute.xlu0 %4571
  %4573 = vrot.lane.b32.xlu0 %v4091, 64
  %v4574 = vpop.permute.xlu0 %4573
  %4575 = vrot.lane.b32.xlu0 %v4094, 64
  %v4576 = vpop.permute.xlu0 %4575
  %4577 = vrot.lane.b32.xlu0 %v4097, 64
  %v4578 = vpop.permute.xlu0 %4577
  %4579 = vrot.lane.b32.xlu0 %v4100, 64
  %v4580 = vpop.permute.xlu0 %4579
  %4581 = vrot.lane.b32.xlu0 %v4103, 64
  %v4582 = vpop.permute.xlu0 %4581
  %4583 = vrot.lane.b32.xlu0 %v4106, 64
  %v4584 = vpop.permute.xlu0 %4583
  %4585 = vrot.lane.b32.xlu0 %v4109, 64
  %v4586 = vpop.permute.xlu0 %4585
  %4587 = vrot.lane.b32.xlu0 %v4112, 64
  %v4588 = vpop.permute.xlu0 %4587
  %4589 = vrot.lane.b32.xlu0 %v4115, 64
  %v4590 = vpop.permute.xlu0 %4589
  %4591 = vrot.lane.b32.xlu0 %v4118, 64
  %v4592 = vpop.permute.xlu0 %4591
  %4593 = vrot.lane.b32.xlu0 %v4121, 64
  %v4594 = vpop.permute.xlu0 %4593
  %4595 = vrot.lane.b32.xlu0 %v4124, 64
  %v4596 = vpop.permute.xlu0 %4595
  %4597 = vrot.lane.b32.xlu0 %v4348, 64
  %v4598 = vpop.permute.xlu0 %4597
  %vm4599 = vcmask 64512
  %v4601 = vsel %vm4599, 0, %v3914
  %v4603 = vsel %vm4599, %v3489, %v3916
  %v4605 = vsel %vm4599, %v3490, %v3918
  %v4607 = vsel %vm4599, %v3491, %v3920
  %v4609 = vsel %vm4599, %v3492, %v3922
  %v4611 = vsel %vm4599, %v3493, %v3924
  %v4613 = vsel %vm4599, %v3494, %v3926
  %v4615 = vsel %vm4599, %v3495, %v3928
  %v4617 = vsel %vm4599, %v3496, %v3930
  %v4619 = vsel %vm4599, %v3497, %v3932
  %v4621 = vsel %vm4599, %v3498, %v3934
  %v4623 = vsel %vm4599, %v3499, %v3936
  %v4625 = vsel %vm4599, %v3500, %v3938
  %v4627 = vsel %vm4599, %v3501, %v3940
  %v4629 = vsel %vm4599, %v3502, %v3942
  %v4631 = vsel %vm4599, %v3503, %v3944
  %v4633 = vsel %vm4599, %v3505, %v3946
  %v4635 = vsel %vm4599, %v3506, %v3948
  %v4637 = vsel %vm4599, %v3507, %v3950
  %v4639 = vsel %vm4599, %v3508, %v3952
  %v4641 = vsel %vm4599, %v3509, %v3954
  %v4643 = vsel %vm4599, %v3510, %v3956
  %v4645 = vsel %vm4599, %v3511, %v3958
  %v4647 = vsel %vm4599, %v3512, %v3960
  %v4649 = vsel %vm4599, %v3513, %v3962
  %v4651 = vsel %vm4599, %v3514, %v3964
  %v4653 = vsel %vm4599, %v3515, %v3966
  %v4655 = vsel %vm4599, %v3516, %v3968
  %v4657 = vsel %vm4599, %v3517, %v3970
  %v4659 = vsel %vm4599, %v3518, %v3972
  %v4661 = vsel %vm4599, %v3519, %v3974
  %vm4662 = vcmask 130048
  %v4664 = vsel %vm4662, %v4601, %v4126
  %v4666 = vsel %vm4662, %v4603, %v4128
  %v4668 = vsel %vm4662, %v4605, %v4130
  %v4670 = vsel %vm4662, %v4607, %v4132
  %v4672 = vsel %vm4662, %v4609, %v4134
  %v4674 = vsel %vm4662, %v4611, %v4136
  %v4676 = vsel %vm4662, %v4613, %v4138
  %v4678 = vsel %vm4662, %v4615, %v4140
  %v4680 = vsel %vm4662, %v4617, %v4142
  %v4682 = vsel %vm4662, %v4619, %v4144
  %v4684 = vsel %vm4662, %v4621, %v4146
  %v4686 = vsel %vm4662, %v4623, %v4148
  %v4688 = vsel %vm4662, %v4625, %v4150
  %v4690 = vsel %vm4662, %v4627, %v4152
  %v4692 = vsel %vm4662, %v4629, %v4154
  %v4694 = vsel %vm4662, %v4631, %v4156
  %v4696 = vsel %vm4662, %v4633, %v4158
  %v4698 = vsel %vm4662, %v4635, %v4160
  %v4700 = vsel %vm4662, %v4637, %v4162
  %v4702 = vsel %vm4662, %v4639, %v4164
  %v4704 = vsel %vm4662, %v4641, %v4166
  %v4706 = vsel %vm4662, %v4643, %v4168
  %v4708 = vsel %vm4662, %v4645, %v4170
  %v4710 = vsel %vm4662, %v4647, %v4172
  %v4712 = vsel %vm4662, %v4649, %v4174
  %v4714 = vsel %vm4662, %v4651, %v4176
  %v4716 = vsel %vm4662, %v4653, %v4178
  %v4718 = vsel %vm4662, %v4655, %v4180
  %v4720 = vsel %vm4662, %v4657, %v4182
  %v4722 = vsel %vm4662, %v4659, %v4184
  %v4724 = vsel %vm4662, %v4661, %v4186
  %v4726 = vsel %vm1851, %v4664, %v4190
  %v4728 = vsel %vm1851, %v4666, %v4192
  %v4730 = vsel %vm1851, %v4668, %v4194
  %v4732 = vsel %vm1851, %v4670, %v4196
  %v4734 = vsel %vm1851, %v4672, %v4198
  %v4736 = vsel %vm1851, %v4674, %v4200
  %v4738 = vsel %vm1851, %v4676, %v4202
  %v4740 = vsel %vm1851, %v4678, %v4204
  %v4742 = vsel %vm1851, %v4680, %v4206
  %v4744 = vsel %vm1851, %v4682, %v4208
  %v4746 = vsel %vm1851, %v4684, %v4210
  %v4748 = vsel %vm1851, %v4686, %v4212
  %v4750 = vsel %vm1851, %v4688, %v4214
  %v4752 = vsel %vm1851, %v4690, %v4216
  %v4754 = vsel %vm1851, %v4692, %v4218
  %v4756 = vsel %vm1851, %v4694, %v4220
  %v4758 = vsel %vm1851, %v4664, %v4222
  %v4760 = vsel %vm1851, %v4696, %v4224
  %v4762 = vsel %vm1851, %v4698, %v4226
  %v4764 = vsel %vm1851, %v4700, %v4228
  %v4766 = vsel %vm1851, %v4702, %v4230
  %v4768 = vsel %vm1851, %v4704, %v4232
  %v4770 = vsel %vm1851, %v4706, %v4234
  %v4772 = vsel %vm1851, %v4708, %v4236
  %v4774 = vsel %vm1851, %v4710, %v4238
  %v4776 = vsel %vm1851, %v4712, %v4240
  %v4778 = vsel %vm1851, %v4714, %v4242
  %v4780 = vsel %vm1851, %v4716, %v4244
  %v4782 = vsel %vm1851, %v4718, %v4246
  %v4784 = vsel %vm1851, %v4720, %v4248
  %v4786 = vsel %vm1851, %v4722, %v4250
  %v4788 = vsel %vm1851, %v4724, %v4252
  %vm4789 = vcmask 261120
  %v4791 = vsel %vm4789, %v4726, %v4278
  %v4793 = vsel %vm4789, %v4728, %v4280
  %v4795 = vsel %vm4789, %v4730, %v4282
  %v4797 = vsel %vm4789, %v4732, %v4284
  %v4799 = vsel %vm4789, %v4734, %v4286
  %v4801 = vsel %vm4789, %v4736, %v4288
  %v4803 = vsel %vm4789, %v4738, %v4290
  %v4805 = vsel %vm4789, %v4740, %v4292
  %v4807 = vsel %vm4789, %v4742, %v4294
  %v4809 = vsel %vm4789, %v4744, %v4296
  %v4811 = vsel %vm4789, %v4746, %v4298
  %v4813 = vsel %vm4789, %v4748, %v4300
  %v4815 = vsel %vm4789, %v4750, %v4302
  %v4817 = vsel %vm4789, %v4752, %v4304
  %v4819 = vsel %vm4789, %v4754, %v4306
  %v4821 = vsel %vm4789, %v4756, %v4308
  %v4823 = vsel %vm4789, %v4758, %v4310
  %v4825 = vsel %vm4789, %v4760, %v4312
  %v4827 = vsel %vm4789, %v4762, %v4314
  %v4829 = vsel %vm4789, %v4764, %v4316
  %v4831 = vsel %vm4789, %v4766, %v4318
  %v4833 = vsel %vm4789, %v4768, %v4320
  %v4835 = vsel %vm4789, %v4770, %v4322
  %v4837 = vsel %vm4789, %v4772, %v4324
  %v4839 = vsel %vm4789, %v4774, %v4326
  %v4841 = vsel %vm4789, %v4776, %v4328
  %v4843 = vsel %vm4789, %v4778, %v4330
  %v4845 = vsel %vm4789, %v4780, %v4332
  %v4847 = vsel %vm4789, %v4782, %v4334
  %v4849 = vsel %vm4789, %v4784, %v4336
  %v4851 = vsel %vm4789, %v4786, %v4338
  %v4853 = vsel %vm4789, %v4788, %v4340
  %vm4854 = vcmask 326656
  %v4856 = vsel %vm4854, %v4791, %v4350
  %v4858 = vsel %vm4854, %v4793, %v4352
  %v4860 = vsel %vm4854, %v4795, %v4354
  %v4862 = vsel %vm4854, %v4797, %v4356
  %v4864 = vsel %vm4854, %v4799, %v4358
  %v4866 = vsel %vm4854, %v4801, %v4360
  %v4868 = vsel %vm4854, %v4803, %v4362
  %v4870 = vsel %vm4854, %v4805, %v4364
  %v4872 = vsel %vm4854, %v4807, %v4366
  %v4874 = vsel %vm4854, %v4809, %v4368
  %v4876 = vsel %vm4854, %v4811, %v4370
  %v4878 = vsel %vm4854, %v4813, %v4372
  %v4880 = vsel %vm4854, %v4815, %v4374
  %v4882 = vsel %vm4854, %v4817, %v4376
  %v4884 = vsel %vm4854, %v4819, %v4378
  %v4886 = vsel %vm4854, %v4821, %v4380
  %v4888 = vsel %vm4854, %v4823, %v4382
  %v4890 = vsel %vm4854, %v4825, %v4384
  %v4892 = vsel %vm4854, %v4827, %v4386
  %v4894 = vsel %vm4854, %v4829, %v4388
  %v4896 = vsel %vm4854, %v4831, %v4390
  %v4898 = vsel %vm4854, %v4833, %v4392
  %v4900 = vsel %vm4854, %v4835, %v4394
  %v4902 = vsel %vm4854, %v4837, %v4396
  %v4904 = vsel %vm4854, %v4839, %v4398
  %v4906 = vsel %vm4854, %v4841, %v4400
  %v4908 = vsel %vm4854, %v4843, %v4402
  %v4910 = vsel %vm4854, %v4845, %v4404
  %v4912 = vsel %vm4854, %v4847, %v4406
  %v4914 = vsel %vm4854, %v4849, %v4408
  %v4916 = vsel %vm4854, %v4851, %v4410
  %v4918 = vsel %vm4854, %v4853, %v4412
  %v4920 = vsel %vm1979, %v4856, %v4414
  %v4922 = vsel %vm1979, %v4858, %v4416
  %v4924 = vsel %vm1979, %v4860, %v4418
  %v4926 = vsel %vm1979, %v4862, %v4420
  %v4928 = vsel %vm1979, %v4864, %v4422
  %v4930 = vsel %vm1979, %v4866, %v4424
  %v4932 = vsel %vm1979, %v4868, %v4426
  %v4934 = vsel %vm1979, %v4870, %v4428
  %v4936 = vsel %vm1979, %v4872, %v4430
  %v4938 = vsel %vm1979, %v4874, %v4432
  %v4940 = vsel %vm1979, %v4876, %v4434
  %v4942 = vsel %vm1979, %v4878, %v4436
  %v4944 = vsel %vm1979, %v4880, %v4438
  %v4946 = vsel %vm1979, %v4882, %v4440
  %v4948 = vsel %vm1979, %v4884, %v4442
  %v4950 = vsel %vm1979, %v4886, %v4444
  %v4952 = vsel %vm1979, %v4888, %v4446
  %v4954 = vsel %vm1979, %v4890, %v4448
  %v4956 = vsel %vm1979, %v4892, %v4450
  %v4958 = vsel %vm1979, %v4894, %v4452
  %v4960 = vsel %vm1979, %v4896, %v4454
  %v4962 = vsel %vm1979, %v4898, %v4456
  %v4964 = vsel %vm1979, %v4900, %v4458
  %v4966 = vsel %vm1979, %v4902, %v4460
  %v4968 = vsel %vm1979, %v4904, %v4462
  %v4970 = vsel %vm1979, %v4906, %v4464
  %v4972 = vsel %vm1979, %v4908, %v4466
  %v4974 = vsel %vm1979, %v4910, %v4468
  %v4976 = vsel %vm1979, %v4912, %v4470
  %v4978 = vsel %vm1979, %v4914, %v4472
  %v4980 = vsel %vm1979, %v4916, %v4474
  %v4981 = vsel %vm1979, %v4918, %v4444
  %vm4982 = vcmask 457728
  %v4984 = vsel %vm4982, %v4920, %v4476
  %v4986 = vsel %vm4982, %v4922, %v4478
  %v4988 = vsel %vm4982, %v4924, %v4480
  %v4990 = vsel %vm4982, %v4926, %v4482
  %v4992 = vsel %vm4982, %v4928, %v4484
  %v4994 = vsel %vm4982, %v4930, %v4486
  %v4996 = vsel %vm4982, %v4932, %v4488
  %v4998 = vsel %vm4982, %v4934, %v4490
  %v5000 = vsel %vm4982, %v4936, %v4492
  %v5002 = vsel %vm4982, %v4938, %v4494
  %v5004 = vsel %vm4982, %v4940, %v4496
  %v5006 = vsel %vm4982, %v4942, %v4498
  %v5008 = vsel %vm4982, %v4944, %v4500
  %v5010 = vsel %vm4982, %v4946, %v4502
  %v5012 = vsel %vm4982, %v4948, %v4504
  %v5014 = vsel %vm4982, %v4950, %v4506
  %v5016 = vsel %vm4982, %v4952, %v4508
  %v5018 = vsel %vm4982, %v4954, %v4510
  %v5020 = vsel %vm4982, %v4956, %v4512
  %v5022 = vsel %vm4982, %v4958, %v4514
  %v5024 = vsel %vm4982, %v4960, %v4516
  %v5026 = vsel %vm4982, %v4962, %v4518
  %v5028 = vsel %vm4982, %v4964, %v4520
  %v5030 = vsel %vm4982, %v4966, %v4522
  %v5032 = vsel %vm4982, %v4968, %v4524
  %v5034 = vsel %vm4982, %v4970, %v4526
  %v5036 = vsel %vm4982, %v4972, %v4528
  %v5038 = vsel %vm4982, %v4974, %v4530
  %v5040 = vsel %vm4982, %v4976, %v4532
  %v5042 = vsel %vm4982, %v4978, %v4534
  %v5044 = vsel %vm4982, %v4980, %v4536
  %v5045 = vsel %vm4982, %v4981, %v4506
  %vm5046 = vcmask 523264
  %v5048 = vsel %vm5046, %v4984, %v4538
  %v5050 = vsel %vm5046, %v4986, %v4540
  %v5052 = vsel %vm5046, %v4988, %v4542
  %v5054 = vsel %vm5046, %v4990, %v4544
  %v5056 = vsel %vm5046, %v4992, %v4546
  %v5058 = vsel %vm5046, %v4994, %v4548
  %v5060 = vsel %vm5046, %v4996, %v4550
  %v5062 = vsel %vm5046, %v4998, %v4552
  %v5064 = vsel %vm5046, %v5000, %v4554
  %v5066 = vsel %vm5046, %v5002, %v4556
  %v5068 = vsel %vm5046, %v5004, %v4558
  %v5070 = vsel %vm5046, %v5006, %v4560
  %v5072 = vsel %vm5046, %v5008, %v4562
  %v5074 = vsel %vm5046, %v5010, %v4564
  %v5076 = vsel %vm5046, %v5012, %v4566
  %v5078 = vsel %vm5046, %v5014, %v4568
  %v5080 = vsel %vm5046, %v5016, %v4570
  %v5082 = vsel %vm5046, %v5018, %v4572
  %v5084 = vsel %vm5046, %v5020, %v4574
  %v5086 = vsel %vm5046, %v5022, %v4576
  %v5088 = vsel %vm5046, %v5024, %v4578
  %v5090 = vsel %vm5046, %v5026, %v4580
  %v5092 = vsel %vm5046, %v5028, %v4582
  %v5094 = vsel %vm5046, %v5030, %v4584
  %v5096 = vsel %vm5046, %v5032, %v4586
  %v5098 = vsel %vm5046, %v5034, %v4588
  %v5100 = vsel %vm5046, %v5036, %v4590
  %v5102 = vsel %vm5046, %v5038, %v4592
  %v5104 = vsel %vm5046, %v5040, %v4594
  %v5106 = vsel %vm5046, %v5042, %v4596
  %v5108 = vsel %vm5046, %v5044, %v4598
  %v5109 = vsel %vm5046, %v5045, %v4568
  %v5110 = vld [vmem:[%s3] sm:$0xf]
  %v5111 = vld [vmem:[%s3 + $0x4] sm:$0xf]
  %v5112 = vld [vmem:[%s3 + $0x8] sm:$0xf]
  %v5113 = vld [vmem:[%s3 + $0xc] sm:$0xf]
  %v5114 = vld [vmem:[%s3 + $0x10] sm:$0xf]
  %v5115 = vld [vmem:[%s3 + $0x14] sm:$0xf]
  %v5116 = vld [vmem:[%s3 + $0x18] sm:$0xf]
  %v5117 = vld [vmem:[%s3 + $0x1c] sm:$0xf]
  %v5118 = vld [vmem:[%s3 + $0x20] sm:$0xf]
  %v5128 = vunpack.c.l.b16 %v5110
  %v5129 = vunpack.c.l.b16 %v5111
  %v5130 = vunpack.c.l.b16 %v5112
  %v5131 = vunpack.c.l.b16 %v5113
  %v5132 = vunpack.c.l.b16 %v5114
  %v5133 = vunpack.c.l.b16 %v5115
  %v5134 = vunpack.c.l.b16 %v5116
  %v5135 = vunpack.c.l.b16 %v5117
  %v5136 = vunpack.c.l.b16 %v5118
  %v5137 = vpack.c.b16 %v5129, %v5128
  %v5138 = vpack.c.b16 %v5131, %v5130
  %v5139 = vpack.c.b16 %v5133, %v5132
  %v5140 = vpack.c.b16 %v5135, %v5134
  %v5141 = vpack.c.b16 %v5136, %v5136
  %v5146 = vsel %vm2109, %v5048, 0
  %v5148 = vsel %vm2109, %v5050, 0
  %v5150 = vsel %vm2109, %v5052, 0
  %v5152 = vsel %vm2109, %v5054, 0
  %v5154 = vsel %vm2109, %v5056, 0
  %v5156 = vsel %vm2109, %v5058, 0
  %v5158 = vsel %vm2109, %v5060, 0
  %v5160 = vsel %vm2109, %v5062, 0
  %v5162 = vsel %vm2109, %v5064, 0
  %v5164 = vsel %vm2109, %v5066, 0
  %v5166 = vsel %vm2109, %v5068, 0
  %v5168 = vsel %vm2109, %v5070, 0
  %v5170 = vsel %vm2109, %v5072, 0
  %v5172 = vsel %vm2109, %v5074, 0
  %v5174 = vsel %vm2109, %v5076, 0
  %v5176 = vsel %vm2109, %v5078, 0
  %v5178 = vsel %vm2109, %v5080, 0
  %v5180 = vsel %vm2109, %v5082, 0
  %v5182 = vsel %vm2109, %v5084, 0
  %v5184 = vsel %vm2109, %v5086, 0
  %v5186 = vsel %vm2109, %v5088, 0
  %v5188 = vsel %vm2109, %v5090, 0
  %v5190 = vsel %vm2109, %v5092, 0
  %v5192 = vsel %vm2109, %v5094, 0
  %v5194 = vsel %vm2109, %v5096, 0
  %v5196 = vsel %vm2109, %v5098, 0
  %v5198 = vsel %vm2109, %v5100, 0
  %v5200 = vsel %vm2109, %v5102, 0
  %v5202 = vsel %vm2109, %v5104, 0
  %v5204 = vsel %vm2109, %v5106, 0
  %v5206 = vsel %vm2109, %v5108, 0
  %v5208 = vsel %vm2109, %v5109, 0
  %vm5210 = vcmask 1043456
  %v5212 = vsel %vm5210, %v5141, 0
  %5214 = vmatprep.subr.bf16.mxu0 0
  %5215 = vmatpush1.bf16.msra.mxu0 %v5137
  %5216 = vmatprep.subr.bf16.mxu0 0
  %5217 = vmatpush1.bf16.msra.mxu0 %v5138
  %5218 = vmatprep.subr.bf16.mxu0 0
  %5219 = vmatpush1.bf16.msra.mxu0 %v5139
  %5220 = vmatprep.subr.bf16.mxu0 0
  %5221 = vmatpush1.bf16.msra.mxu0 %v5140
  %5222 = vmatprep.subr.bf16.mxu0 0
  %5223 = vmatpush1.bf16.msra.mxu0 %v5212
  %5224 = vmatprep.subr.bf16.mxu0 0
  %5225 = vmatpush1.bf16.msra.mxu0 0
  %5226 = vmatprep.subr.bf16.mxu0 0
  %5227 = vmatpush1.bf16.msra.mxu0 0
  %5228 = vmatprep.subr.bf16.mxu0 0
  %5229 = vmatpush1.bf16.msra.mxu0 0
  %5230 = vmatprep.subr.bf16.mxu0 0
  %5231 = vmatpush1.bf16.msra.mxu0 0
  %5232 = vmatprep.subr.bf16.mxu0 0
  %5233 = vmatpush1.bf16.msra.mxu0 0
  %5234 = vmatprep.subr.bf16.mxu0 0
  %5235 = vmatpush1.bf16.msra.mxu0 0
  %5236 = vmatprep.subr.bf16.mxu0 0
  %5237 = vmatpush1.bf16.msra.mxu0 0
  %5238 = vmatprep.subr.bf16.mxu0 0
  %5239 = vmatpush1.bf16.msra.mxu0 0
  %5240 = vmatprep.subr.bf16.mxu0 0
  %5241 = vmatpush1.bf16.msra.mxu0 0
  %5242 = vmatprep.subr.bf16.mxu0 0
  %5243 = vmatpush1.bf16.msra.mxu0 0
  %5244 = vmatprep.subr.bf16.mxu0 0
  %5245 = vmatpush1.bf16.msra.mxu0 0
  %5246 = vmatprep.mubr.bf16.mxu0 0
  %5247 = vmatmul.mubr.bf16.gmra.mrb[0].mxu0 %v5146
  %v5248 = vpop.f32.mrb[0].mxu0
  %v5249 = vadd.f32 0.0, %v5248
  %v5250 = vpop.f32.mrb[0].mxu0
  %v5251 = vpop.f32.mrb[0].mxu0
  %v5252 = vadd.f32 0.0, %v5251
  %v5253 = vpop.f32.mrb[0].mxu0
  %5254 = vmatprep.mubr.bf16.mxu0 0
  %5255 = vmatmul.mubr.bf16.gmra.mrb[0].mxu0 %v5148
  %v5256 = vpop.f32.mrb[0].mxu0
  %v5257 = vadd.f32 0.0, %v5256
  %v5258 = vpop.f32.mrb[0].mxu0
  %v5259 = vpop.f32.mrb[0].mxu0
  %v5260 = vadd.f32 0.0, %v5259
  %v5261 = vpop.f32.mrb[0].mxu0
  %5262 = vmatprep.mubr.bf16.mxu0 0
  %5263 = vmatmul.mubr.bf16.gmra.mrb[0].mxu0 %v5150
  %v5264 = vpop.f32.mrb[0].mxu0
  %v5265 = vadd.f32 0.0, %v5264
  %v5266 = vpop.f32.mrb[0].mxu0
  %v5267 = vpop.f32.mrb[0].mxu0
  %v5268 = vadd.f32 0.0, %v5267
  %v5269 = vpop.f32.mrb[0].mxu0
  %5270 = vmatprep.mubr.bf16.mxu0 0
  %5271 = vmatmul.mubr.bf16.gmra.mrb[0].mxu0 %v5152
  %v5272 = vpop.f32.mrb[0].mxu0
  %v5273 = vadd.f32 0.0, %v5272
  %v5274 = vpop.f32.mrb[0].mxu0
  %v5275 = vpop.f32.mrb[0].mxu0
  %v5276 = vadd.f32 0.0, %v5275
  %v5277 = vpop.f32.mrb[0].mxu0
  %5278 = vmatprep.mubr.bf16.mxu0 0
  %5279 = vmatmul.mubr.bf16.gmra.mrb[0].mxu0 %v5154
  %v5280 = vpop.f32.mrb[0].mxu0
  %v5281 = vadd.f32 0.0, %v5280
  %v5282 = vpop.f32.mrb[0].mxu0
  %v5283 = vpop.f32.mrb[0].mxu0
  %v5284 = vadd.f32 0.0, %v5283
  %v5285 = vpop.f32.mrb[0].mxu0
  %5286 = vmatprep.mubr.bf16.mxu0 0
  %5287 = vmatmul.mubr.bf16.gmra.mrb[0].mxu0 %v5156
  %v5288 = vpop.f32.mrb[0].mxu0
  %v5289 = vadd.f32 0.0, %v5288
  %v5290 = vpop.f32.mrb[0].mxu0
  %v5291 = vpop.f32.mrb[0].mxu0
  %v5292 = vadd.f32 0.0, %v5291
  %v5293 = vpop.f32.mrb[0].mxu0
  %5294 = vmatprep.mubr.bf16.mxu0 0
  %5295 = vmatmul.mubr.bf16.gmra.mrb[0].mxu0 %v5158
  %v5296 = vpop.f32.mrb[0].mxu0
  %v5297 = vadd.f32 0.0, %v5296
  %v5298 = vpop.f32.mrb[0].mxu0
  %v5299 = vpop.f32.mrb[0].mxu0
  %v5300 = vadd.f32 0.0, %v5299
  %v5301 = vpop.f32.mrb[0].mxu0
  %5302 = vmatprep.mubr.bf16.mxu0 0
  %5303 = vmatmul.mubr.bf16.gmra.mrb[0].mxu0 %v5160
  %v5304 = vpop.f32.mrb[0].mxu0
  %v5305 = vadd.f32 0.0, %v5304
  %v5306 = vpop.f32.mrb[0].mxu0
  %v5307 = vpop.f32.mrb[0].mxu0
  %v5308 = vadd.f32 0.0, %v5307
  %v5309 = vpop.f32.mrb[0].mxu0
  %5310 = vmatprep.mubr.bf16.mxu0 0
  %5311 = vmatmul.mubr.bf16.gmra.mrb[0].mxu0 %v5162
  %v5312 = vpop.f32.mrb[0].mxu0
  %v5313 = vadd.f32 0.0, %v5312
  %v5314 = vpop.f32.mrb[0].mxu0
  %v5315 = vpop.f32.mrb[0].mxu0
  %v5316 = vadd.f32 0.0, %v5315
  %v5317 = vpop.f32.mrb[0].mxu0
  %5318 = vmatprep.mubr.bf16.mxu0 0
  %5319 = vmatmul.mubr.bf16.gmra.mrb[0].mxu0 %v5164
  %v5320 = vpop.f32.mrb[0].mxu0
  %v5321 = vadd.f32 0.0, %v5320
  %v5322 = vpop.f32.mrb[0].mxu0
  %v5323 = vpop.f32.mrb[0].mxu0
  %v5324 = vadd.f32 0.0, %v5323
  %v5325 = vpop.f32.mrb[0].mxu0
  %5326 = vmatprep.mubr.bf16.mxu0 0
  %5327 = vmatmul.mubr.bf16.gmra.mrb[0].mxu0 %v5166
  %v5328 = vpop.f32.mrb[0].mxu0
  %v5329 = vadd.f32 0.0, %v5328
  %v5330 = vpop.f32.mrb[0].mxu0
  %v5331 = vpop.f32.mrb[0].mxu0
  %v5332 = vadd.f32 0.0, %v5331
  %v5333 = vpop.f32.mrb[0].mxu0
  %5334 = vmatprep.mubr.bf16.mxu0 0
  %5335 = vmatmul.mubr.bf16.gmra.mrb[0].mxu0 %v5168
  %v5336 = vpop.f32.mrb[0].mxu0
  %v5337 = vadd.f32 0.0, %v5336
  %v5338 = vpop.f32.mrb[0].mxu0
  %v5339 = vpop.f32.mrb[0].mxu0
  %v5340 = vadd.f32 0.0, %v5339
  %v5341 = vpop.f32.mrb[0].mxu0
  %5342 = vmatprep.mubr.bf16.mxu0 0
  %5343 = vmatmul.mubr.bf16.gmra.mrb[0].mxu0 %v5170
  %v5344 = vpop.f32.mrb[0].mxu0
  %v5345 = vadd.f32 0.0, %v5344
  %v5346 = vpop.f32.mrb[0].mxu0
  %v5347 = vpop.f32.mrb[0].mxu0
  %v5348 = vadd.f32 0.0, %v5347
  %v5349 = vpop.f32.mrb[0].mxu0
  %5350 = vmatprep.mubr.bf16.mxu0 0
  %5351 = vmatmul.mubr.bf16.gmra.mrb[0].mxu0 %v5172
  %v5352 = vpop.f32.mrb[0].mxu0
  %v5353 = vadd.f32 0.0, %v5352
  %v5354 = vpop.f32.mrb[0].mxu0
  %v5355 = vpop.f32.mrb[0].mxu0
  %v5356 = vadd.f32 0.0, %v5355
  %v5357 = vpop.f32.mrb[0].mxu0
  %5358 = vmatprep.mubr.bf16.mxu0 0
  %5359 = vmatmul.mubr.bf16.gmra.mrb[0].mxu0 %v5174
  %v5360 = vpop.f32.mrb[0].mxu0
  %v5361 = vadd.f32 0.0, %v5360
  %v5362 = vpop.f32.mrb[0].mxu0
  %v5363 = vpop.f32.mrb[0].mxu0
  %v5364 = vadd.f32 0.0, %v5363
  %v5365 = vpop.f32.mrb[0].mxu0
  %5366 = vmatprep.mubr.bf16.mxu0 0
  %5367 = vmatmul.mubr.bf16.gmra.mrb[0].mxu0 %v5176
  %v5368 = vpop.f32.mrb[0].mxu0
  %v5369 = vadd.f32 0.0, %v5368
  %v5370 = vpop.f32.mrb[0].mxu0
  %v5371 = vpop.f32.mrb[0].mxu0
  %v5372 = vadd.f32 0.0, %v5371
  %v5373 = vpop.f32.mrb[0].mxu0
  %5374 = vmatprep.mubr.bf16.mxu0 0
  %5375 = vmatmul.mubr.bf16.gmra.mrb[0].mxu0 %v5178
  %v5376 = vpop.f32.mrb[0].mxu0
  %v5377 = vadd.f32 0.0, %v5376
  %v5378 = vpop.f32.mrb[0].mxu0
  %v5379 = vpop.f32.mrb[0].mxu0
  %v5380 = vadd.f32 0.0, %v5379
  %v5381 = vpop.f32.mrb[0].mxu0
  %5382 = vmatprep.mubr.bf16.mxu0 0
  %5383 = vmatmul.mubr.bf16.gmra.mrb[0].mxu0 %v5180
  %v5384 = vpop.f32.mrb[0].mxu0
  %v5385 = vadd.f32 0.0, %v5384
  %v5386 = vpop.f32.mrb[0].mxu0
  %v5387 = vpop.f32.mrb[0].mxu0
  %v5388 = vadd.f32 0.0, %v5387
  %v5389 = vpop.f32.mrb[0].mxu0
  %5390 = vmatprep.mubr.bf16.mxu0 0
  %5391 = vmatmul.mubr.bf16.gmra.mrb[0].mxu0 %v5182
  %v5392 = vpop.f32.mrb[0].mxu0
  %v5393 = vadd.f32 0.0, %v5392
  %v5394 = vpop.f32.mrb[0].mxu0
  %v5395 = vpop.f32.mrb[0].mxu0
  %v5396 = vadd.f32 0.0, %v5395
  %v5397 = vpop.f32.mrb[0].mxu0
  %5398 = vmatprep.mubr.bf16.mxu0 0
  %5399 = vmatmul.mubr.bf16.gmra.mrb[0].mxu0 %v5184
  %v5400 = vpop.f32.mrb[0].mxu0
  %v5401 = vadd.f32 0.0, %v5400
  %v5402 = vpop.f32.mrb[0].mxu0
  %v5403 = vpop.f32.mrb[0].mxu0
  %v5404 = vadd.f32 0.0, %v5403
  %v5405 = vpop.f32.mrb[0].mxu0
  %5406 = vmatprep.mubr.bf16.mxu0 0
  %5407 = vmatmul.mubr.bf16.gmra.mrb[0].mxu0 %v5186
  %v5408 = vpop.f32.mrb[0].mxu0
  %v5409 = vadd.f32 0.0, %v5408
  %v5410 = vpop.f32.mrb[0].mxu0
  %v5411 = vpop.f32.mrb[0].mxu0
  %v5412 = vadd.f32 0.0, %v5411
  %v5413 = vpop.f32.mrb[0].mxu0
  %5414 = vmatprep.mubr.bf16.mxu0 0
  %5415 = vmatmul.mubr.bf16.gmra.mrb[0].mxu0 %v5188
  %v5416 = vpop.f32.mrb[0].mxu0
  %v5417 = vadd.f32 0.0, %v5416
  %v5418 = vpop.f32.mrb[0].mxu0
  %v5419 = vpop.f32.mrb[0].mxu0
  %v5420 = vadd.f32 0.0, %v5419
  %v5421 = vpop.f32.mrb[0].mxu0
  %5422 = vmatprep.mubr.bf16.mxu0 0
  %5423 = vmatmul.mubr.bf16.gmra.mrb[0].mxu0 %v5190
  %v5424 = vpop.f32.mrb[0].mxu0
  %v5425 = vadd.f32 0.0, %v5424
  %v5426 = vpop.f32.mrb[0].mxu0
  %v5427 = vpop.f32.mrb[0].mxu0
  %v5428 = vadd.f32 0.0, %v5427
  %v5429 = vpop.f32.mrb[0].mxu0
  %5430 = vmatprep.mubr.bf16.mxu0 0
  %5431 = vmatmul.mubr.bf16.gmra.mrb[0].mxu0 %v5192
  %v5432 = vpop.f32.mrb[0].mxu0
  %v5433 = vadd.f32 0.0, %v5432
  %v5434 = vpop.f32.mrb[0].mxu0
  %v5435 = vpop.f32.mrb[0].mxu0
  %v5436 = vadd.f32 0.0, %v5435
  %v5437 = vpop.f32.mrb[0].mxu0
  %5438 = vmatprep.mubr.bf16.mxu0 0
  %5439 = vmatmul.mubr.bf16.gmra.mrb[0].mxu0 %v5194
  %v5440 = vpop.f32.mrb[0].mxu0
  %v5441 = vadd.f32 0.0, %v5440
  %v5442 = vpop.f32.mrb[0].mxu0
  %v5443 = vpop.f32.mrb[0].mxu0
  %v5444 = vadd.f32 0.0, %v5443
  %v5445 = vpop.f32.mrb[0].mxu0
  %5446 = vmatprep.mubr.bf16.mxu0 0
  %5447 = vmatmul.mubr.bf16.gmra.mrb[0].mxu0 %v5196
  %v5448 = vpop.f32.mrb[0].mxu0
  %v5449 = vadd.f32 0.0, %v5448
  %v5450 = vpop.f32.mrb[0].mxu0
  %v5451 = vpop.f32.mrb[0].mxu0
  %v5452 = vadd.f32 0.0, %v5451
  %v5453 = vpop.f32.mrb[0].mxu0
  %5454 = vmatprep.mubr.bf16.mxu0 0
  %5455 = vmatmul.mubr.bf16.gmra.mrb[0].mxu0 %v5198
  %v5456 = vpop.f32.mrb[0].mxu0
  %v5457 = vadd.f32 0.0, %v5456
  %v5458 = vpop.f32.mrb[0].mxu0
  %v5459 = vpop.f32.mrb[0].mxu0
  %v5460 = vadd.f32 0.0, %v5459
  %v5461 = vpop.f32.mrb[0].mxu0
  %5462 = vmatprep.mubr.bf16.mxu0 0
  %5463 = vmatmul.mubr.bf16.gmra.mrb[0].mxu0 %v5200
  %v5464 = vpop.f32.mrb[0].mxu0
  %v5465 = vadd.f32 0.0, %v5464
  %v5466 = vpop.f32.mrb[0].mxu0
  %v5467 = vpop.f32.mrb[0].mxu0
  %v5468 = vadd.f32 0.0, %v5467
  %v5469 = vpop.f32.mrb[0].mxu0
  %5470 = vmatprep.mubr.bf16.mxu0 0
  %5471 = vmatmul.mubr.bf16.gmra.mrb[0].mxu0 %v5202
  %v5472 = vpop.f32.mrb[0].mxu0
  %v5473 = vadd.f32 0.0, %v5472
  %v5474 = vpop.f32.mrb[0].mxu0
  %v5475 = vpop.f32.mrb[0].mxu0
  %v5476 = vadd.f32 0.0, %v5475
  %v5477 = vpop.f32.mrb[0].mxu0
  %5478 = vmatprep.mubr.bf16.mxu0 0
  %5479 = vmatmul.mubr.bf16.gmra.mrb[0].mxu0 %v5204
  %v5480 = vpop.f32.mrb[0].mxu0
  %v5481 = vadd.f32 0.0, %v5480
  %v5482 = vpop.f32.mrb[0].mxu0
  %v5483 = vpop.f32.mrb[0].mxu0
  %v5484 = vadd.f32 0.0, %v5483
  %v5485 = vpop.f32.mrb[0].mxu0
  %5486 = vmatprep.mubr.bf16.mxu0 0
  %5487 = vmatmul.mubr.bf16.gmra.mrb[0].mxu0 %v5206
  %v5488 = vpop.f32.mrb[0].mxu0
  %v5489 = vadd.f32 0.0, %v5488
  %v5490 = vpop.f32.mrb[0].mxu0
  %v5491 = vpop.f32.mrb[0].mxu0
  %v5492 = vadd.f32 0.0, %v5491
  %v5493 = vpop.f32.mrb[0].mxu0
  %5494 = vmatprep.mubr.bf16.mxu0 0
  %5495 = vmatmul.mubr.bf16.gmra.mrb[0].mxu0 %v5208
  %v5496 = vpop.f32.mrb[0].mxu0
  %v5497 = vadd.f32 0.0, %v5496
  %v5498 = vpop.f32.mrb[0].mxu0
  %v5499 = vpop.f32.mrb[0].mxu0
  %v5500 = vadd.f32 0.0, %v5499
  %v5501 = vpop.f32.mrb[0].mxu0
  %5502 = vdwg.mxu0
  %5567 = vrot.lane.b32.xlu0 %v5249, 16
  %v5568 = vpop.permute.xlu0 %5567
  %5569 = vrot.lane.b32.xlu0 %v5252, 16
  %v5570 = vpop.permute.xlu0 %5569
  %5571 = vrot.lane.b32.xlu0 %v5257, 16
  %v5572 = vpop.permute.xlu0 %5571
  %5573 = vrot.lane.b32.xlu0 %v5260, 16
  %v5574 = vpop.permute.xlu0 %5573
  %5575 = vrot.lane.b32.xlu0 %v5265, 16
  %v5576 = vpop.permute.xlu0 %5575
  %5577 = vrot.lane.b32.xlu0 %v5268, 16
  %v5578 = vpop.permute.xlu0 %5577
  %5579 = vrot.lane.b32.xlu0 %v5273, 16
  %v5580 = vpop.permute.xlu0 %5579
  %5581 = vrot.lane.b32.xlu0 %v5276, 16
  %v5582 = vpop.permute.xlu0 %5581
  %5583 = vrot.lane.b32.xlu0 %v5281, 16
  %v5584 = vpop.permute.xlu0 %5583
  %5585 = vrot.lane.b32.xlu0 %v5284, 16
  %v5586 = vpop.permute.xlu0 %5585
  %5587 = vrot.lane.b32.xlu0 %v5289, 16
  %v5588 = vpop.permute.xlu0 %5587
  %5589 = vrot.lane.b32.xlu0 %v5292, 16
  %v5590 = vpop.permute.xlu0 %5589
  %5591 = vrot.lane.b32.xlu0 %v5297, 16
  %v5592 = vpop.permute.xlu0 %5591
  %5593 = vrot.lane.b32.xlu0 %v5300, 16
  %v5594 = vpop.permute.xlu0 %5593
  %5595 = vrot.lane.b32.xlu0 %v5305, 16
  %v5596 = vpop.permute.xlu0 %5595
  %5597 = vrot.lane.b32.xlu0 %v5308, 16
  %v5598 = vpop.permute.xlu0 %5597
  %5599 = vrot.lane.b32.xlu0 %v5313, 16
  %v5600 = vpop.permute.xlu0 %5599
  %5601 = vrot.lane.b32.xlu0 %v5316, 16
  %v5602 = vpop.permute.xlu0 %5601
  %5603 = vrot.lane.b32.xlu0 %v5321, 16
  %v5604 = vpop.permute.xlu0 %5603
  %5605 = vrot.lane.b32.xlu0 %v5324, 16
  %v5606 = vpop.permute.xlu0 %5605
  %5607 = vrot.lane.b32.xlu0 %v5329, 16
  %v5608 = vpop.permute.xlu0 %5607
  %5609 = vrot.lane.b32.xlu0 %v5332, 16
  %v5610 = vpop.permute.xlu0 %5609
  %5611 = vrot.lane.b32.xlu0 %v5337, 16
  %v5612 = vpop.permute.xlu0 %5611
  %5613 = vrot.lane.b32.xlu0 %v5340, 16
  %v5614 = vpop.permute.xlu0 %5613
  %5615 = vrot.lane.b32.xlu0 %v5345, 16
  %v5616 = vpop.permute.xlu0 %5615
  %5617 = vrot.lane.b32.xlu0 %v5348, 16
  %v5618 = vpop.permute.xlu0 %5617
  %5619 = vrot.lane.b32.xlu0 %v5353, 16
  %v5620 = vpop.permute.xlu0 %5619
  %5621 = vrot.lane.b32.xlu0 %v5356, 16
  %v5622 = vpop.permute.xlu0 %5621
  %5623 = vrot.lane.b32.xlu0 %v5361, 16
  %v5624 = vpop.permute.xlu0 %5623
  %5625 = vrot.lane.b32.xlu0 %v5364, 16
  %v5626 = vpop.permute.xlu0 %5625
  %5627 = vrot.lane.b32.xlu0 %v5369, 16
  %v5628 = vpop.permute.xlu0 %5627
  %5629 = vrot.lane.b32.xlu0 %v5372, 16
  %v5630 = vpop.permute.xlu0 %5629
  %5631 = vrot.lane.b32.xlu0 %v5377, 16
  %v5632 = vpop.permute.xlu0 %5631
  %5633 = vrot.lane.b32.xlu0 %v5380, 16
  %v5634 = vpop.permute.xlu0 %5633
  %5635 = vrot.lane.b32.xlu0 %v5385, 16
  %v5636 = vpop.permute.xlu0 %5635
  %5637 = vrot.lane.b32.xlu0 %v5388, 16
  %v5638 = vpop.permute.xlu0 %5637
  %5639 = vrot.lane.b32.xlu0 %v5393, 16
  %v5640 = vpop.permute.xlu0 %5639
  %5641 = vrot.lane.b32.xlu0 %v5396, 16
  %v5642 = vpop.permute.xlu0 %5641
  %5643 = vrot.lane.b32.xlu0 %v5401, 16
  %v5644 = vpop.permute.xlu0 %5643
  %5645 = vrot.lane.b32.xlu0 %v5404, 16
  %v5646 = vpop.permute.xlu0 %5645
  %5647 = vrot.lane.b32.xlu0 %v5409, 16
  %v5648 = vpop.permute.xlu0 %5647
  %5649 = vrot.lane.b32.xlu0 %v5412, 16
  %v5650 = vpop.permute.xlu0 %5649
  %5651 = vrot.lane.b32.xlu0 %v5417, 16
  %v5652 = vpop.permute.xlu0 %5651
  %5653 = vrot.lane.b32.xlu0 %v5420, 16
  %v5654 = vpop.permute.xlu0 %5653
  %5655 = vrot.lane.b32.xlu0 %v5425, 16
  %v5656 = vpop.permute.xlu0 %5655
  %5657 = vrot.lane.b32.xlu0 %v5428, 16
  %v5658 = vpop.permute.xlu0 %5657
  %5659 = vrot.lane.b32.xlu0 %v5433, 16
  %v5660 = vpop.permute.xlu0 %5659
  %5661 = vrot.lane.b32.xlu0 %v5436, 16
  %v5662 = vpop.permute.xlu0 %5661
  %5663 = vrot.lane.b32.xlu0 %v5441, 16
  %v5664 = vpop.permute.xlu0 %5663
  %5665 = vrot.lane.b32.xlu0 %v5444, 16
  %v5666 = vpop.permute.xlu0 %5665
  %5667 = vrot.lane.b32.xlu0 %v5449, 16
  %v5668 = vpop.permute.xlu0 %5667
  %5669 = vrot.lane.b32.xlu0 %v5452, 16
  %v5670 = vpop.permute.xlu0 %5669
  %5671 = vrot.lane.b32.xlu0 %v5457, 16
  %v5672 = vpop.permute.xlu0 %5671
  %5673 = vrot.lane.b32.xlu0 %v5460, 16
  %v5674 = vpop.permute.xlu0 %5673
  %5675 = vrot.lane.b32.xlu0 %v5465, 16
  %v5676 = vpop.permute.xlu0 %5675
  %5677 = vrot.lane.b32.xlu0 %v5468, 16
  %v5678 = vpop.permute.xlu0 %5677
  %5679 = vrot.lane.b32.xlu0 %v5473, 16
  %v5680 = vpop.permute.xlu0 %5679
  %5681 = vrot.lane.b32.xlu0 %v5476, 16
  %v5682 = vpop.permute.xlu0 %5681
  %5683 = vrot.lane.b32.xlu0 %v5481, 16
  %v5684 = vpop.permute.xlu0 %5683
  %5685 = vrot.lane.b32.xlu0 %v5484, 16
  %v5686 = vpop.permute.xlu0 %5685
  %5687 = vrot.lane.b32.xlu0 %v5489, 16
  %v5688 = vpop.permute.xlu0 %5687
  %5689 = vrot.lane.b32.xlu0 %v5492, 16
  %v5690 = vpop.permute.xlu0 %5689
  %5691 = vrot.lane.b32.xlu0 %v5497, 16
  %v5692 = vpop.permute.xlu0 %5691
  %5693 = vrot.lane.b32.xlu0 %v5500, 16
  %v5694 = vpop.permute.xlu0 %5693
  %v5759 = vadd.f32 %v2467, %v5568
  %v5760 = vadd.f32 %v2470, %v5570
  %v5761 = vadd.f32 %v2475, %v5572
  %v5762 = vadd.f32 %v2478, %v5574
  %v5763 = vadd.f32 %v2483, %v5576
  %v5764 = vadd.f32 %v2486, %v5578
  %v5765 = vadd.f32 %v2491, %v5580
  %v5766 = vadd.f32 %v2494, %v5582
  %v5767 = vadd.f32 %v2499, %v5584
  %v5768 = vadd.f32 %v2502, %v5586
  %v5769 = vadd.f32 %v2507, %v5588
  %v5770 = vadd.f32 %v2510, %v5590
  %v5771 = vadd.f32 %v2515, %v5592
  %v5772 = vadd.f32 %v2518, %v5594
  %v5773 = vadd.f32 %v2523, %v5596
  %v5774 = vadd.f32 %v2526, %v5598
  %v5775 = vadd.f32 %v2531, %v5600
  %v5776 = vadd.f32 %v2534, %v5602
  %v5777 = vadd.f32 %v2539, %v5604
  %v5778 = vadd.f32 %v2542, %v5606
  %v5779 = vadd.f32 %v2547, %v5608
  %v5780 = vadd.f32 %v2550, %v5610
  %v5781 = vadd.f32 %v2555, %v5612
  %v5782 = vadd.f32 %v2558, %v5614
  %v5783 = vadd.f32 %v2563, %v5616
  %v5784 = vadd.f32 %v2566, %v5618
  %v5785 = vadd.f32 %v2571, %v5620
  %v5786 = vadd.f32 %v2574, %v5622
  %v5787 = vadd.f32 %v2579, %v5624
  %v5788 = vadd.f32 %v2582, %v5626
  %v5789 = vadd.f32 %v2587, %v5628
  %v5790 = vadd.f32 %v2590, %v5630
  %v5791 = vadd.f32 %v2595, %v5632
  %v5792 = vadd.f32 %v2598, %v5634
  %v5793 = vadd.f32 %v2603, %v5636
  %v5794 = vadd.f32 %v2606, %v5638
  %v5795 = vadd.f32 %v2611, %v5640
  %v5796 = vadd.f32 %v2614, %v5642
  %v5797 = vadd.f32 %v2619, %v5644
  %v5798 = vadd.f32 %v2622, %v5646
  %v5799 = vadd.f32 %v2627, %v5648
  %v5800 = vadd.f32 %v2630, %v5650
  %v5801 = vadd.f32 %v2635, %v5652
  %v5802 = vadd.f32 %v2638, %v5654
  %v5803 = vadd.f32 %v2643, %v5656
  %v5804 = vadd.f32 %v2646, %v5658
  %v5805 = vadd.f32 %v2651, %v5660
  %v5806 = vadd.f32 %v2654, %v5662
  %v5807 = vadd.f32 %v2659, %v5664
  %v5808 = vadd.f32 %v2662, %v5666
  %v5809 = vadd.f32 %v2667, %v5668
  %v5810 = vadd.f32 %v2670, %v5670
  %v5811 = vadd.f32 %v2675, %v5672
  %v5812 = vadd.f32 %v2678, %v5674
  %v5813 = vadd.f32 %v2683, %v5676
  %v5814 = vadd.f32 %v2686, %v5678
  %v5815 = vadd.f32 %v2691, %v5680
  %v5816 = vadd.f32 %v2694, %v5682
  %v5817 = vadd.f32 %v2699, %v5684
  %v5818 = vadd.f32 %v2702, %v5686
  %v5819 = vadd.f32 %v2707, %v5688
  %v5820 = vadd.f32 %v2710, %v5690
  %v5821 = vadd.f32 %v2715, %v5692
  %v5822 = vadd.f32 %v2718, %v5694
  %v5823 = vtanh.pop %v5759
  %v5824 = vtanh.pop %v5760
  %v5825 = vtanh.pop %v5761
  %v5826 = vtanh.pop %v5762
  %v5827 = vtanh.pop %v5763
  %v5828 = vtanh.pop %v5764
  %v5829 = vtanh.pop %v5765
  %v5830 = vtanh.pop %v5766
  %v5831 = vtanh.pop %v5767
  %v5832 = vtanh.pop %v5768
  %v5833 = vtanh.pop %v5769
  %v5834 = vtanh.pop %v5770
  %v5835 = vtanh.pop %v5771
  %v5836 = vtanh.pop %v5772
  %v5837 = vtanh.pop %v5773
  %v5838 = vtanh.pop %v5774
  %v5839 = vtanh.pop %v5775
  %v5840 = vtanh.pop %v5776
  %v5841 = vtanh.pop %v5777
  %v5842 = vtanh.pop %v5778
  %v5843 = vtanh.pop %v5779
  %v5844 = vtanh.pop %v5780
  %v5845 = vtanh.pop %v5781
  %v5846 = vtanh.pop %v5782
  %v5847 = vtanh.pop %v5783
  %v5848 = vtanh.pop %v5784
  %v5849 = vtanh.pop %v5785
  %v5850 = vtanh.pop %v5786
  %v5851 = vtanh.pop %v5787
  %v5852 = vtanh.pop %v5788
  %v5853 = vtanh.pop %v5789
  %v5854 = vtanh.pop %v5790
  %v5855 = vtanh.pop %v5791
  %v5856 = vtanh.pop %v5792
  %v5857 = vtanh.pop %v5793
  %v5858 = vtanh.pop %v5794
  %v5859 = vtanh.pop %v5795
  %v5860 = vtanh.pop %v5796
  %v5861 = vtanh.pop %v5797
  %v5862 = vtanh.pop %v5798
  %v5863 = vtanh.pop %v5799
  %v5864 = vtanh.pop %v5800
  %v5865 = vtanh.pop %v5801
  %v5866 = vtanh.pop %v5802
  %v5867 = vtanh.pop %v5803
  %v5868 = vtanh.pop %v5804
  %v5869 = vtanh.pop %v5805
  %v5870 = vtanh.pop %v5806
  %v5871 = vtanh.pop %v5807
  %v5872 = vtanh.pop %v5808
  %v5873 = vtanh.pop %v5809
  %v5874 = vtanh.pop %v5810
  %v5875 = vtanh.pop %v5811
  %v5876 = vtanh.pop %v5812
  %v5877 = vtanh.pop %v5813
  %v5878 = vtanh.pop %v5814
  %v5879 = vtanh.pop %v5815
  %v5880 = vtanh.pop %v5816
  %v5881 = vtanh.pop %v5817
  %v5882 = vtanh.pop %v5818
  %v5883 = vtanh.pop %v5819
  %v5884 = vtanh.pop %v5820
  %v5885 = vtanh.pop %v5821
  %v5886 = vtanh.pop %v5822
  %5951 = vrot.lane.b32.xlu0 %v85, 16
  %v5952 = vpop.permute.xlu0 %5951
  %5953 = vrot.lane.b32.xlu0 %v86, 16
  %v5954 = vpop.permute.xlu0 %5953
  %5955 = vrot.lane.b32.xlu0 %v87, 16
  %v5956 = vpop.permute.xlu0 %5955
  %5957 = vrot.lane.b32.xlu0 %v88, 16
  %v5958 = vpop.permute.xlu0 %5957
  %5959 = vrot.lane.b32.xlu0 %v89, 16
  %v5960 = vpop.permute.xlu0 %5959
  %5961 = vrot.lane.b32.xlu0 %v90, 16
  %v5962 = vpop.permute.xlu0 %5961
  %5963 = vrot.lane.b32.xlu0 %v91, 16
  %v5964 = vpop.permute.xlu0 %5963
  %5965 = vrot.lane.b32.xlu0 %v92, 16
  %v5966 = vpop.permute.xlu0 %5965
  %5967 = vrot.lane.b32.xlu0 %v93, 16
  %v5968 = vpop.permute.xlu0 %5967
  %5969 = vrot.lane.b32.xlu0 %v94, 16
  %v5970 = vpop.permute.xlu0 %5969
  %5971 = vrot.lane.b32.xlu0 %v95, 16
  %v5972 = vpop.permute.xlu0 %5971
  %5973 = vrot.lane.b32.xlu0 %v96, 16
  %v5974 = vpop.permute.xlu0 %5973
  %5975 = vrot.lane.b32.xlu0 %v97, 16
  %v5976 = vpop.permute.xlu0 %5975
  %5977 = vrot.lane.b32.xlu0 %v98, 16
  %v5978 = vpop.permute.xlu0 %5977
  %5979 = vrot.lane.b32.xlu0 %v99, 16
  %v5980 = vpop.permute.xlu0 %5979
  %5981 = vrot.lane.b32.xlu0 %v100, 16
  %v5982 = vpop.permute.xlu0 %5981
  %5983 = vrot.lane.b32.xlu0 %v101, 16
  %v5984 = vpop.permute.xlu0 %5983
  %5985 = vrot.lane.b32.xlu0 %v102, 16
  %v5986 = vpop.permute.xlu0 %5985
  %5987 = vrot.lane.b32.xlu0 %v103, 16
  %v5988 = vpop.permute.xlu0 %5987
  %5989 = vrot.lane.b32.xlu0 %v104, 16
  %v5990 = vpop.permute.xlu0 %5989
  %5991 = vrot.lane.b32.xlu0 %v105, 16
  %v5992 = vpop.permute.xlu0 %5991
  %5993 = vrot.lane.b32.xlu0 %v106, 16
  %v5994 = vpop.permute.xlu0 %5993
  %5995 = vrot.lane.b32.xlu0 %v107, 16
  %v5996 = vpop.permute.xlu0 %5995
  %5997 = vrot.lane.b32.xlu0 %v108, 16
  %v5998 = vpop.permute.xlu0 %5997
  %5999 = vrot.lane.b32.xlu0 %v109, 16
  %v6000 = vpop.permute.xlu0 %5999
  %6001 = vrot.lane.b32.xlu0 %v110, 16
  %v6002 = vpop.permute.xlu0 %6001
  %6003 = vrot.lane.b32.xlu0 %v111, 16
  %v6004 = vpop.permute.xlu0 %6003
  %6005 = vrot.lane.b32.xlu0 %v112, 16
  %v6006 = vpop.permute.xlu0 %6005
  %6007 = vrot.lane.b32.xlu0 %v113, 16
  %v6008 = vpop.permute.xlu0 %6007
  %6009 = vrot.lane.b32.xlu0 %v114, 16
  %v6010 = vpop.permute.xlu0 %6009
  %6011 = vrot.lane.b32.xlu0 %v115, 16
  %v6012 = vpop.permute.xlu0 %6011
  %6013 = vrot.lane.b32.xlu0 %v116, 16
  %v6014 = vpop.permute.xlu0 %6013
  %6015 = vrot.lane.b32.xlu0 %v117, 16
  %v6016 = vpop.permute.xlu0 %6015
  %6017 = vrot.lane.b32.xlu0 %v118, 16
  %v6018 = vpop.permute.xlu0 %6017
  %6019 = vrot.lane.b32.xlu0 %v119, 16
  %v6020 = vpop.permute.xlu0 %6019
  %6021 = vrot.lane.b32.xlu0 %v120, 16
  %v6022 = vpop.permute.xlu0 %6021
  %6023 = vrot.lane.b32.xlu0 %v121, 16
  %v6024 = vpop.permute.xlu0 %6023
  %6025 = vrot.lane.b32.xlu0 %v122, 16
  %v6026 = vpop.permute.xlu0 %6025
  %6027 = vrot.lane.b32.xlu0 %v123, 16
  %v6028 = vpop.permute.xlu0 %6027
  %6029 = vrot.lane.b32.xlu0 %v124, 16
  %v6030 = vpop.permute.xlu0 %6029
  %6031 = vrot.lane.b32.xlu0 %v125, 16
  %v6032 = vpop.permute.xlu0 %6031
  %6033 = vrot.lane.b32.xlu0 %v126, 16
  %v6034 = vpop.permute.xlu0 %6033
  %6035 = vrot.lane.b32.xlu0 %v127, 16
  %v6036 = vpop.permute.xlu0 %6035
  %6037 = vrot.lane.b32.xlu0 %v128, 16
  %v6038 = vpop.permute.xlu0 %6037
  %6039 = vrot.lane.b32.xlu0 %v129, 16
  %v6040 = vpop.permute.xlu0 %6039
  %6041 = vrot.lane.b32.xlu0 %v130, 16
  %v6042 = vpop.permute.xlu0 %6041
  %6043 = vrot.lane.b32.xlu0 %v131, 16
  %v6044 = vpop.permute.xlu0 %6043
  %6045 = vrot.lane.b32.xlu0 %v132, 16
  %v6046 = vpop.permute.xlu0 %6045
  %6047 = vrot.lane.b32.xlu0 %v133, 16
  %v6048 = vpop.permute.xlu0 %6047
  %6049 = vrot.lane.b32.xlu0 %v134, 16
  %v6050 = vpop.permute.xlu0 %6049
  %6051 = vrot.lane.b32.xlu0 %v135, 16
  %v6052 = vpop.permute.xlu0 %6051
  %6053 = vrot.lane.b32.xlu0 %v136, 16
  %v6054 = vpop.permute.xlu0 %6053
  %6055 = vrot.lane.b32.xlu0 %v137, 16
  %v6056 = vpop.permute.xlu0 %6055
  %6057 = vrot.lane.b32.xlu0 %v138, 16
  %v6058 = vpop.permute.xlu0 %6057
  %6059 = vrot.lane.b32.xlu0 %v139, 16
  %v6060 = vpop.permute.xlu0 %6059
  %6061 = vrot.lane.b32.xlu0 %v140, 16
  %v6062 = vpop.permute.xlu0 %6061
  %6063 = vrot.lane.b32.xlu0 %v141, 16
  %v6064 = vpop.permute.xlu0 %6063
  %6065 = vrot.lane.b32.xlu0 %v142, 16
  %v6066 = vpop.permute.xlu0 %6065
  %6067 = vrot.lane.b32.xlu0 %v143, 16
  %v6068 = vpop.permute.xlu0 %6067
  %6069 = vrot.lane.b32.xlu0 %v144, 16
  %v6070 = vpop.permute.xlu0 %6069
  %6071 = vrot.lane.b32.xlu0 %v145, 16
  %v6072 = vpop.permute.xlu0 %6071
  %6073 = vrot.lane.b32.xlu0 %v146, 16
  %v6074 = vpop.permute.xlu0 %6073
  %6075 = vrot.lane.b32.xlu0 %v147, 16
  %v6076 = vpop.permute.xlu0 %6075
  %6077 = vrot.lane.b32.xlu0 %v148, 16
  %v6078 = vpop.permute.xlu0 %6077
  %v6143 = vsub.f32 %v5823, %v5952
  %v6144 = vsub.f32 %v5824, %v5954
  %v6145 = vsub.f32 %v5825, %v5956
  %v6146 = vsub.f32 %v5826, %v5958
  %v6147 = vsub.f32 %v5827, %v5960
  %v6148 = vsub.f32 %v5828, %v5962
  %v6149 = vsub.f32 %v5829, %v5964
  %v6150 = vsub.f32 %v5830, %v5966
  %v6151 = vsub.f32 %v5831, %v5968
  %v6152 = vsub.f32 %v5832, %v5970
  %v6153 = vsub.f32 %v5833, %v5972
  %v6154 = vsub.f32 %v5834, %v5974
  %v6155 = vsub.f32 %v5835, %v5976
  %v6156 = vsub.f32 %v5836, %v5978
  %v6157 = vsub.f32 %v5837, %v5980
  %v6158 = vsub.f32 %v5838, %v5982
  %v6159 = vsub.f32 %v5839, %v5984
  %v6160 = vsub.f32 %v5840, %v5986
  %v6161 = vsub.f32 %v5841, %v5988
  %v6162 = vsub.f32 %v5842, %v5990
  %v6163 = vsub.f32 %v5843, %v5992
  %v6164 = vsub.f32 %v5844, %v5994
  %v6165 = vsub.f32 %v5845, %v5996
  %v6166 = vsub.f32 %v5846, %v5998
  %v6167 = vsub.f32 %v5847, %v6000
  %v6168 = vsub.f32 %v5848, %v6002
  %v6169 = vsub.f32 %v5849, %v6004
  %v6170 = vsub.f32 %v5850, %v6006
  %v6171 = vsub.f32 %v5851, %v6008
  %v6172 = vsub.f32 %v5852, %v6010
  %v6173 = vsub.f32 %v5853, %v6012
  %v6174 = vsub.f32 %v5854, %v6014
  %v6175 = vsub.f32 %v5855, %v6016
  %v6176 = vsub.f32 %v5856, %v6018
  %v6177 = vsub.f32 %v5857, %v6020
  %v6178 = vsub.f32 %v5858, %v6022
  %v6179 = vsub.f32 %v5859, %v6024
  %v6180 = vsub.f32 %v5860, %v6026
  %v6181 = vsub.f32 %v5861, %v6028
  %v6182 = vsub.f32 %v5862, %v6030
  %v6183 = vsub.f32 %v5863, %v6032
  %v6184 = vsub.f32 %v5864, %v6034
  %v6185 = vsub.f32 %v5865, %v6036
  %v6186 = vsub.f32 %v5866, %v6038
  %v6187 = vsub.f32 %v5867, %v6040
  %v6188 = vsub.f32 %v5868, %v6042
  %v6189 = vsub.f32 %v5869, %v6044
  %v6190 = vsub.f32 %v5870, %v6046
  %v6191 = vsub.f32 %v5871, %v6048
  %v6192 = vsub.f32 %v5872, %v6050
  %v6193 = vsub.f32 %v5873, %v6052
  %v6194 = vsub.f32 %v5874, %v6054
  %v6195 = vsub.f32 %v5875, %v6056
  %v6196 = vsub.f32 %v5876, %v6058
  %v6197 = vsub.f32 %v5877, %v6060
  %v6198 = vsub.f32 %v5878, %v6062
  %v6199 = vsub.f32 %v5879, %v6064
  %v6200 = vsub.f32 %v5880, %v6066
  %v6201 = vsub.f32 %v5881, %v6068
  %v6202 = vsub.f32 %v5882, %v6070
  %v6203 = vsub.f32 %v5883, %v6072
  %v6204 = vsub.f32 %v5884, %v6074
  %v6205 = vsub.f32 %v5885, %v6076
  %v6206 = vsub.f32 %v5886, %v6078
  %6271 = vrot.lane.b32.xlu0 %v6143, 120
  %v6272 = vpop.permute.xlu0 %6271
  %6273 = vrot.lane.b32.xlu0 %v6144, 120
  %v6274 = vpop.permute.xlu0 %6273
  %6275 = vrot.lane.b32.xlu0 %v6145, 120
  %v6276 = vpop.permute.xlu0 %6275
  %6277 = vrot.lane.b32.xlu0 %v6146, 120
  %v6278 = vpop.permute.xlu0 %6277
  %6279 = vrot.lane.b32.xlu0 %v6147, 120
  %v6280 = vpop.permute.xlu0 %6279
  %6281 = vrot.lane.b32.xlu0 %v6148, 120
  %v6282 = vpop.permute.xlu0 %6281
  %6283 = vrot.lane.b32.xlu0 %v6149, 120
  %v6284 = vpop.permute.xlu0 %6283
  %6285 = vrot.lane.b32.xlu0 %v6150, 120
  %v6286 = vpop.permute.xlu0 %6285
  %6287 = vrot.lane.b32.xlu0 %v6151, 120
  %v6288 = vpop.permute.xlu0 %6287
  %6289 = vrot.lane.b32.xlu0 %v6152, 120
  %v6290 = vpop.permute.xlu0 %6289
  %6291 = vrot.lane.b32.xlu0 %v6153, 120
  %v6292 = vpop.permute.xlu0 %6291
  %6293 = vrot.lane.b32.xlu0 %v6154, 120
  %v6294 = vpop.permute.xlu0 %6293
  %6295 = vrot.lane.b32.xlu0 %v6155, 120
  %v6296 = vpop.permute.xlu0 %6295
  %6297 = vrot.lane.b32.xlu0 %v6156, 120
  %v6298 = vpop.permute.xlu0 %6297
  %6299 = vrot.lane.b32.xlu0 %v6157, 120
  %v6300 = vpop.permute.xlu0 %6299
  %6301 = vrot.lane.b32.xlu0 %v6158, 120
  %v6302 = vpop.permute.xlu0 %6301
  %6303 = vrot.lane.b32.xlu0 %v6159, 120
  %v6304 = vpop.permute.xlu0 %6303
  %6305 = vrot.lane.b32.xlu0 %v6160, 120
  %v6306 = vpop.permute.xlu0 %6305
  %6307 = vrot.lane.b32.xlu0 %v6161, 120
  %v6308 = vpop.permute.xlu0 %6307
  %6309 = vrot.lane.b32.xlu0 %v6162, 120
  %v6310 = vpop.permute.xlu0 %6309
  %6311 = vrot.lane.b32.xlu0 %v6163, 120
  %v6312 = vpop.permute.xlu0 %6311
  %6313 = vrot.lane.b32.xlu0 %v6164, 120
  %v6314 = vpop.permute.xlu0 %6313
  %6315 = vrot.lane.b32.xlu0 %v6165, 120
  %v6316 = vpop.permute.xlu0 %6315
  %6317 = vrot.lane.b32.xlu0 %v6166, 120
  %v6318 = vpop.permute.xlu0 %6317
  %6319 = vrot.lane.b32.xlu0 %v6167, 120
  %v6320 = vpop.permute.xlu0 %6319
  %6321 = vrot.lane.b32.xlu0 %v6168, 120
  %v6322 = vpop.permute.xlu0 %6321
  %6323 = vrot.lane.b32.xlu0 %v6169, 120
  %v6324 = vpop.permute.xlu0 %6323
  %6325 = vrot.lane.b32.xlu0 %v6170, 120
  %v6326 = vpop.permute.xlu0 %6325
  %6327 = vrot.lane.b32.xlu0 %v6171, 120
  %v6328 = vpop.permute.xlu0 %6327
  %6329 = vrot.lane.b32.xlu0 %v6172, 120
  %v6330 = vpop.permute.xlu0 %6329
  %6331 = vrot.lane.b32.xlu0 %v6173, 120
  %v6332 = vpop.permute.xlu0 %6331
  %6333 = vrot.lane.b32.xlu0 %v6174, 120
  %v6334 = vpop.permute.xlu0 %6333
  %6335 = vrot.lane.b32.xlu0 %v6175, 120
  %v6336 = vpop.permute.xlu0 %6335
  %6337 = vrot.lane.b32.xlu0 %v6176, 120
  %v6338 = vpop.permute.xlu0 %6337
  %6339 = vrot.lane.b32.xlu0 %v6177, 120
  %v6340 = vpop.permute.xlu0 %6339
  %6341 = vrot.lane.b32.xlu0 %v6178, 120
  %v6342 = vpop.permute.xlu0 %6341
  %6343 = vrot.lane.b32.xlu0 %v6179, 120
  %v6344 = vpop.permute.xlu0 %6343
  %6345 = vrot.lane.b32.xlu0 %v6180, 120
  %v6346 = vpop.permute.xlu0 %6345
  %6347 = vrot.lane.b32.xlu0 %v6181, 120
  %v6348 = vpop.permute.xlu0 %6347
  %6349 = vrot.lane.b32.xlu0 %v6182, 120
  %v6350 = vpop.permute.xlu0 %6349
  %6351 = vrot.lane.b32.xlu0 %v6183, 120
  %v6352 = vpop.permute.xlu0 %6351
  %6353 = vrot.lane.b32.xlu0 %v6184, 120
  %v6354 = vpop.permute.xlu0 %6353
  %6355 = vrot.lane.b32.xlu0 %v6185, 120
  %v6356 = vpop.permute.xlu0 %6355
  %6357 = vrot.lane.b32.xlu0 %v6186, 120
  %v6358 = vpop.permute.xlu0 %6357
  %6359 = vrot.lane.b32.xlu0 %v6187, 120
  %v6360 = vpop.permute.xlu0 %6359
  %6361 = vrot.lane.b32.xlu0 %v6188, 120
  %v6362 = vpop.permute.xlu0 %6361
  %6363 = vrot.lane.b32.xlu0 %v6189, 120
  %v6364 = vpop.permute.xlu0 %6363
  %6365 = vrot.lane.b32.xlu0 %v6190, 120
  %v6366 = vpop.permute.xlu0 %6365
  %6367 = vrot.lane.b32.xlu0 %v6191, 120
  %v6368 = vpop.permute.xlu0 %6367
  %6369 = vrot.lane.b32.xlu0 %v6192, 120
  %v6370 = vpop.permute.xlu0 %6369
  %6371 = vrot.lane.b32.xlu0 %v6193, 120
  %v6372 = vpop.permute.xlu0 %6371
  %6373 = vrot.lane.b32.xlu0 %v6194, 120
  %v6374 = vpop.permute.xlu0 %6373
  %6375 = vrot.lane.b32.xlu0 %v6195, 120
  %v6376 = vpop.permute.xlu0 %6375
  %6377 = vrot.lane.b32.xlu0 %v6196, 120
  %v6378 = vpop.permute.xlu0 %6377
  %6379 = vrot.lane.b32.xlu0 %v6197, 120
  %v6380 = vpop.permute.xlu0 %6379
  %6381 = vrot.lane.b32.xlu0 %v6198, 120
  %v6382 = vpop.permute.xlu0 %6381
  %6383 = vrot.lane.b32.xlu0 %v6199, 120
  %v6384 = vpop.permute.xlu0 %6383
  %6385 = vrot.lane.b32.xlu0 %v6200, 120
  %v6386 = vpop.permute.xlu0 %6385
  %6387 = vrot.lane.b32.xlu0 %v6201, 120
  %v6388 = vpop.permute.xlu0 %6387
  %6389 = vrot.lane.b32.xlu0 %v6202, 120
  %v6390 = vpop.permute.xlu0 %6389
  %6391 = vrot.lane.b32.xlu0 %v6203, 120
  %v6392 = vpop.permute.xlu0 %6391
  %6393 = vrot.lane.b32.xlu0 %v6204, 120
  %v6394 = vpop.permute.xlu0 %6393
  %6395 = vrot.lane.b32.xlu0 %v6205, 120
  %v6396 = vpop.permute.xlu0 %6395
  %6397 = vrot.lane.b32.xlu0 %v6206, 120
  %v6398 = vpop.permute.xlu0 %6397
  %v6463 = vmul.f32 %v2978, %v6272
  %v6464 = vmul.f32 %v2980, %v6274
  %v6465 = vmul.f32 %v2982, %v6276
  %v6466 = vmul.f32 %v2984, %v6278
  %v6467 = vmul.f32 %v2986, %v6280
  %v6468 = vmul.f32 %v2988, %v6282
  %v6469 = vmul.f32 %v2990, %v6284
  %v6470 = vmul.f32 %v2992, %v6286
  %v6471 = vmul.f32 %v2994, %v6288
  %v6472 = vmul.f32 %v2996, %v6290
  %v6473 = vmul.f32 %v2998, %v6292
  %v6474 = vmul.f32 %v3000, %v6294
  %v6475 = vmul.f32 %v3002, %v6296
  %v6476 = vmul.f32 %v3004, %v6298
  %v6477 = vmul.f32 %v3006, %v6300
  %v6478 = vmul.f32 %v3008, %v6302
  %v6479 = vmul.f32 %v3010, %v6304
  %v6480 = vmul.f32 %v3012, %v6306
  %v6481 = vmul.f32 %v3014, %v6308
  %v6482 = vmul.f32 %v3016, %v6310
  %v6483 = vmul.f32 %v3018, %v6312
  %v6484 = vmul.f32 %v3020, %v6314
  %v6485 = vmul.f32 %v3022, %v6316
  %v6486 = vmul.f32 %v3024, %v6318
  %v6487 = vmul.f32 %v3026, %v6320
  %v6488 = vmul.f32 %v3028, %v6322
  %v6489 = vmul.f32 %v3030, %v6324
  %v6490 = vmul.f32 %v3032, %v6326
  %v6491 = vmul.f32 %v3034, %v6328
  %v6492 = vmul.f32 %v3036, %v6330
  %v6493 = vmul.f32 %v3038, %v6332
  %v6494 = vmul.f32 %v3040, %v6334
  %v6495 = vmul.f32 %v3042, %v6336
  %v6496 = vmul.f32 %v3044, %v6338
  %v6497 = vmul.f32 %v3046, %v6340
  %v6498 = vmul.f32 %v3048, %v6342
  %v6499 = vmul.f32 %v3050, %v6344
  %v6500 = vmul.f32 %v3052, %v6346
  %v6501 = vmul.f32 %v3054, %v6348
  %v6502 = vmul.f32 %v3056, %v6350
  %v6503 = vmul.f32 %v3058, %v6352
  %v6504 = vmul.f32 %v3060, %v6354
  %v6505 = vmul.f32 %v3062, %v6356
  %v6506 = vmul.f32 %v3064, %v6358
  %v6507 = vmul.f32 %v3066, %v6360
  %v6508 = vmul.f32 %v3068, %v6362
  %v6509 = vmul.f32 %v3070, %v6364
  %v6510 = vmul.f32 %v3072, %v6366
  %v6511 = vmul.f32 %v3074, %v6368
  %v6512 = vmul.f32 %v3076, %v6370
  %v6513 = vmul.f32 %v3078, %v6372
  %v6514 = vmul.f32 %v3080, %v6374
  %v6515 = vmul.f32 %v3082, %v6376
  %v6516 = vmul.f32 %v3084, %v6378
  %v6517 = vmul.f32 %v3086, %v6380
  %v6518 = vmul.f32 %v3088, %v6382
  %v6519 = vmul.f32 %v3090, %v6384
  %v6520 = vmul.f32 %v3092, %v6386
  %v6521 = vmul.f32 %v3094, %v6388
  %v6522 = vmul.f32 %v3096, %v6390
  %v6523 = vmul.f32 %v3098, %v6392
  %v6524 = vmul.f32 %v3100, %v6394
  %v6525 = vmul.f32 %v3102, %v6396
  %v6526 = vmul.f32 %v3104, %v6398
  %6591 = vrot.lane.b32.xlu0 %v6463, 120
  %v6592 = vpop.permute.xlu0 %6591
  %6593 = vrot.lane.b32.xlu0 %v6464, 120
  %v6594 = vpop.permute.xlu0 %6593
  %6595 = vrot.lane.b32.xlu0 %v6465, 120
  %v6596 = vpop.permute.xlu0 %6595
  %6597 = vrot.lane.b32.xlu0 %v6466, 120
  %v6598 = vpop.permute.xlu0 %6597
  %6599 = vrot.lane.b32.xlu0 %v6467, 120
  %v6600 = vpop.permute.xlu0 %6599
  %6601 = vrot.lane.b32.xlu0 %v6468, 120
  %v6602 = vpop.permute.xlu0 %6601
  %6603 = vrot.lane.b32.xlu0 %v6469, 120
  %v6604 = vpop.permute.xlu0 %6603
  %6605 = vrot.lane.b32.xlu0 %v6470, 120
  %v6606 = vpop.permute.xlu0 %6605
  %6607 = vrot.lane.b32.xlu0 %v6471, 120
  %v6608 = vpop.permute.xlu0 %6607
  %6609 = vrot.lane.b32.xlu0 %v6472, 120
  %v6610 = vpop.permute.xlu0 %6609
  %6611 = vrot.lane.b32.xlu0 %v6473, 120
  %v6612 = vpop.permute.xlu0 %6611
  %6613 = vrot.lane.b32.xlu0 %v6474, 120
  %v6614 = vpop.permute.xlu0 %6613
  %6615 = vrot.lane.b32.xlu0 %v6475, 120
  %v6616 = vpop.permute.xlu0 %6615
  %6617 = vrot.lane.b32.xlu0 %v6476, 120
  %v6618 = vpop.permute.xlu0 %6617
  %6619 = vrot.lane.b32.xlu0 %v6477, 120
  %v6620 = vpop.permute.xlu0 %6619
  %6621 = vrot.lane.b32.xlu0 %v6478, 120
  %v6622 = vpop.permute.xlu0 %6621
  %6623 = vrot.lane.b32.xlu0 %v6479, 120
  %v6624 = vpop.permute.xlu0 %6623
  %6625 = vrot.lane.b32.xlu0 %v6480, 120
  %v6626 = vpop.permute.xlu0 %6625
  %6627 = vrot.lane.b32.xlu0 %v6481, 120
  %v6628 = vpop.permute.xlu0 %6627
  %6629 = vrot.lane.b32.xlu0 %v6482, 120
  %v6630 = vpop.permute.xlu0 %6629
  %6631 = vrot.lane.b32.xlu0 %v6483, 120
  %v6632 = vpop.permute.xlu0 %6631
  %6633 = vrot.lane.b32.xlu0 %v6484, 120
  %v6634 = vpop.permute.xlu0 %6633
  %6635 = vrot.lane.b32.xlu0 %v6485, 120
  %v6636 = vpop.permute.xlu0 %6635
  %6637 = vrot.lane.b32.xlu0 %v6486, 120
  %v6638 = vpop.permute.xlu0 %6637
  %6639 = vrot.lane.b32.xlu0 %v6487, 120
  %v6640 = vpop.permute.xlu0 %6639
  %6641 = vrot.lane.b32.xlu0 %v6488, 120
  %v6642 = vpop.permute.xlu0 %6641
  %6643 = vrot.lane.b32.xlu0 %v6489, 120
  %v6644 = vpop.permute.xlu0 %6643
  %6645 = vrot.lane.b32.xlu0 %v6490, 120
  %v6646 = vpop.permute.xlu0 %6645
  %6647 = vrot.lane.b32.xlu0 %v6491, 120
  %v6648 = vpop.permute.xlu0 %6647
  %6649 = vrot.lane.b32.xlu0 %v6492, 120
  %v6650 = vpop.permute.xlu0 %6649
  %6651 = vrot.lane.b32.xlu0 %v6493, 120
  %v6652 = vpop.permute.xlu0 %6651
  %6653 = vrot.lane.b32.xlu0 %v6494, 120
  %v6654 = vpop.permute.xlu0 %6653
  %6655 = vrot.lane.b32.xlu0 %v6495, 120
  %v6656 = vpop.permute.xlu0 %6655
  %6657 = vrot.lane.b32.xlu0 %v6496, 120
  %v6658 = vpop.permute.xlu0 %6657
  %6659 = vrot.lane.b32.xlu0 %v6497, 120
  %v6660 = vpop.permute.xlu0 %6659
  %6661 = vrot.lane.b32.xlu0 %v6498, 120
  %v6662 = vpop.permute.xlu0 %6661
  %6663 = vrot.lane.b32.xlu0 %v6499, 120
  %v6664 = vpop.permute.xlu0 %6663
  %6665 = vrot.lane.b32.xlu0 %v6500, 120
  %v6666 = vpop.permute.xlu0 %6665
  %6667 = vrot.lane.b32.xlu0 %v6501, 120
  %v6668 = vpop.permute.xlu0 %6667
  %6669 = vrot.lane.b32.xlu0 %v6502, 120
  %v6670 = vpop.permute.xlu0 %6669
  %6671 = vrot.lane.b32.xlu0 %v6503, 120
  %v6672 = vpop.permute.xlu0 %6671
  %6673 = vrot.lane.b32.xlu0 %v6504, 120
  %v6674 = vpop.permute.xlu0 %6673
  %6675 = vrot.lane.b32.xlu0 %v6505, 120
  %v6676 = vpop.permute.xlu0 %6675
  %6677 = vrot.lane.b32.xlu0 %v6506, 120
  %v6678 = vpop.permute.xlu0 %6677
  %6679 = vrot.lane.b32.xlu0 %v6507, 120
  %v6680 = vpop.permute.xlu0 %6679
  %6681 = vrot.lane.b32.xlu0 %v6508, 120
  %v6682 = vpop.permute.xlu0 %6681
  %6683 = vrot.lane.b32.xlu0 %v6509, 120
  %v6684 = vpop.permute.xlu0 %6683
  %6685 = vrot.lane.b32.xlu0 %v6510, 120
  %v6686 = vpop.permute.xlu0 %6685
  %6687 = vrot.lane.b32.xlu0 %v6511, 120
  %v6688 = vpop.permute.xlu0 %6687
  %6689 = vrot.lane.b32.xlu0 %v6512, 120
  %v6690 = vpop.permute.xlu0 %6689
  %6691 = vrot.lane.b32.xlu0 %v6513, 120
  %v6692 = vpop.permute.xlu0 %6691
  %6693 = vrot.lane.b32.xlu0 %v6514, 120
  %v6694 = vpop.permute.xlu0 %6693
  %6695 = vrot.lane.b32.xlu0 %v6515, 120
  %v6696 = vpop.permute.xlu0 %6695
  %6697 = vrot.lane.b32.xlu0 %v6516, 120
  %v6698 = vpop.permute.xlu0 %6697
  %6699 = vrot.lane.b32.xlu0 %v6517, 120
  %v6700 = vpop.permute.xlu0 %6699
  %6701 = vrot.lane.b32.xlu0 %v6518, 120
  %v6702 = vpop.permute.xlu0 %6701
  %6703 = vrot.lane.b32.xlu0 %v6519, 120
  %v6704 = vpop.permute.xlu0 %6703
  %6705 = vrot.lane.b32.xlu0 %v6520, 120
  %v6706 = vpop.permute.xlu0 %6705
  %6707 = vrot.lane.b32.xlu0 %v6521, 120
  %v6708 = vpop.permute.xlu0 %6707
  %6709 = vrot.lane.b32.xlu0 %v6522, 120
  %v6710 = vpop.permute.xlu0 %6709
  %6711 = vrot.lane.b32.xlu0 %v6523, 120
  %v6712 = vpop.permute.xlu0 %6711
  %6713 = vrot.lane.b32.xlu0 %v6524, 120
  %v6714 = vpop.permute.xlu0 %6713
  %6715 = vrot.lane.b32.xlu0 %v6525, 120
  %v6716 = vpop.permute.xlu0 %6715
  %6717 = vrot.lane.b32.xlu0 %v6526, 120
  %v6718 = vpop.permute.xlu0 %6717
  %v6783 = vadd.f32 %v85, %v6592
  %v6784 = vadd.f32 %v86, %v6594
  %v6785 = vadd.f32 %v87, %v6596
  %v6786 = vadd.f32 %v88, %v6598
  %v6787 = vadd.f32 %v89, %v6600
  %v6788 = vadd.f32 %v90, %v6602
  %v6789 = vadd.f32 %v91, %v6604
  %v6790 = vadd.f32 %v92, %v6606
  %v6791 = vadd.f32 %v93, %v6608
  %v6792 = vadd.f32 %v94, %v6610
  %v6793 = vadd.f32 %v95, %v6612
  %v6794 = vadd.f32 %v96, %v6614
  %v6795 = vadd.f32 %v97, %v6616
  %v6796 = vadd.f32 %v98, %v6618
  %v6797 = vadd.f32 %v99, %v6620
  %v6798 = vadd.f32 %v100, %v6622
  %v6799 = vadd.f32 %v101, %v6624
  %v6800 = vadd.f32 %v102, %v6626
  %v6801 = vadd.f32 %v103, %v6628
  %v6802 = vadd.f32 %v104, %v6630
  %v6803 = vadd.f32 %v105, %v6632
  %v6804 = vadd.f32 %v106, %v6634
  %v6805 = vadd.f32 %v107, %v6636
  %v6806 = vadd.f32 %v108, %v6638
  %v6807 = vadd.f32 %v109, %v6640
  %v6808 = vadd.f32 %v110, %v6642
  %v6809 = vadd.f32 %v111, %v6644
  %v6810 = vadd.f32 %v112, %v6646
  %v6811 = vadd.f32 %v113, %v6648
  %v6812 = vadd.f32 %v114, %v6650
  %v6813 = vadd.f32 %v115, %v6652
  %v6814 = vadd.f32 %v116, %v6654
  %v6815 = vadd.f32 %v117, %v6656
  %v6816 = vadd.f32 %v118, %v6658
  %v6817 = vadd.f32 %v119, %v6660
  %v6818 = vadd.f32 %v120, %v6662
  %v6819 = vadd.f32 %v121, %v6664
  %v6820 = vadd.f32 %v122, %v6666
  %v6821 = vadd.f32 %v123, %v6668
  %v6822 = vadd.f32 %v124, %v6670
  %v6823 = vadd.f32 %v125, %v6672
  %v6824 = vadd.f32 %v126, %v6674
  %v6825 = vadd.f32 %v127, %v6676
  %v6826 = vadd.f32 %v128, %v6678
  %v6827 = vadd.f32 %v129, %v6680
  %v6828 = vadd.f32 %v130, %v6682
  %v6829 = vadd.f32 %v131, %v6684
  %v6830 = vadd.f32 %v132, %v6686
  %v6831 = vadd.f32 %v133, %v6688
  %v6832 = vadd.f32 %v134, %v6690
  %v6833 = vadd.f32 %v135, %v6692
  %v6834 = vadd.f32 %v136, %v6694
  %v6835 = vadd.f32 %v137, %v6696
  %v6836 = vadd.f32 %v138, %v6698
  %v6837 = vadd.f32 %v139, %v6700
  %v6838 = vadd.f32 %v140, %v6702
  %v6839 = vadd.f32 %v141, %v6704
  %v6840 = vadd.f32 %v142, %v6706
  %v6841 = vadd.f32 %v143, %v6708
  %v6842 = vadd.f32 %v144, %v6710
  %v6843 = vadd.f32 %v145, %v6712
  %v6844 = vadd.f32 %v146, %v6714
  %v6845 = vadd.f32 %v147, %v6716
  %v6846 = vadd.f32 %v148, %v6718
  %6847 = vst.msk [vmem:[%s5] sm:$0xff] %vm4599, %v6783
  %6848 = vst.msk [vmem:[%s5 + $0x8] sm:$0xff] %vm4599, %v6784
  %6849 = vst.msk [vmem:[%s5 + $0x10] sm:$0xff] %vm4599, %v6785
  %6850 = vst.msk [vmem:[%s5 + $0x18] sm:$0xff] %vm4599, %v6786
  %6851 = vst.msk [vmem:[%s5 + $0x20] sm:$0xff] %vm4599, %v6787
  %6852 = vst.msk [vmem:[%s5 + $0x28] sm:$0xff] %vm4599, %v6788
  %6853 = vst.msk [vmem:[%s5 + $0x30] sm:$0xff] %vm4599, %v6789
  %6854 = vst.msk [vmem:[%s5 + $0x38] sm:$0xff] %vm4599, %v6790
  %6855 = vst.msk [vmem:[%s5 + $0x40] sm:$0xff] %vm4599, %v6791
  %6856 = vst.msk [vmem:[%s5 + $0x48] sm:$0xff] %vm4599, %v6792
  %6857 = vst.msk [vmem:[%s5 + $0x50] sm:$0xff] %vm4599, %v6793
  %6858 = vst.msk [vmem:[%s5 + $0x58] sm:$0xff] %vm4599, %v6794
  %6859 = vst.msk [vmem:[%s5 + $0x60] sm:$0xff] %vm4599, %v6795
  %6860 = vst.msk [vmem:[%s5 + $0x68] sm:$0xff] %vm4599, %v6796
  %6861 = vst.msk [vmem:[%s5 + $0x70] sm:$0xff] %vm4599, %v6797
  %6862 = vst.msk [vmem:[%s5 + $0x78] sm:$0xff] %vm4599, %v6798
  %6863 = vst.msk [vmem:[%s5 + $0x80] sm:$0xff] %vm4599, %v6799
  %6864 = vst.msk [vmem:[%s5 + $0x88] sm:$0xff] %vm4599, %v6800
  %6865 = vst.msk [vmem:[%s5 + $0x90] sm:$0xff] %vm4599, %v6801
  %6866 = vst.msk [vmem:[%s5 + $0x98] sm:$0xff] %vm4599, %v6802
  %6867 = vst.msk [vmem:[%s5 + $0xa0] sm:$0xff] %vm4599, %v6803
  %6868 = vst.msk [vmem:[%s5 + $0xa8] sm:$0xff] %vm4599, %v6804
  %6869 = vst.msk [vmem:[%s5 + $0xb0] sm:$0xff] %vm4599, %v6805
  %6870 = vst.msk [vmem:[%s5 + $0xb8] sm:$0xff] %vm4599, %v6806
  %6871 = vst.msk [vmem:[%s5 + $0xc0] sm:$0xff] %vm4599, %v6807
  %6872 = vst.msk [vmem:[%s5 + $0xc8] sm:$0xff] %vm4599, %v6808
  %6873 = vst.msk [vmem:[%s5 + $0xd0] sm:$0xff] %vm4599, %v6809
  %6874 = vst.msk [vmem:[%s5 + $0xd8] sm:$0xff] %vm4599, %v6810
  %6875 = vst.msk [vmem:[%s5 + $0xe0] sm:$0xff] %vm4599, %v6811
  %6876 = vst.msk [vmem:[%s5 + $0xe8] sm:$0xff] %vm4599, %v6812
  %6877 = vst.msk [vmem:[%s5 + $0xf0] sm:$0xff] %vm4599, %v6813
  %6878 = vst.msk [vmem:[%s5 + $0xf8] sm:$0xff] %vm4599, %v6814
  %6879 = vst.msk [vmem:[%s5 + $0x100] sm:$0xff] %vm4599, %v6815
  %6880 = vst.msk [vmem:[%s5 + $0x108] sm:$0xff] %vm4599, %v6816
  %6881 = vst.msk [vmem:[%s5 + $0x110] sm:$0xff] %vm4599, %v6817
  %6882 = vst.msk [vmem:[%s5 + $0x118] sm:$0xff] %vm4599, %v6818
  %6883 = vst.msk [vmem:[%s5 + $0x120] sm:$0xff] %vm4599, %v6819
  %6884 = vst.msk [vmem:[%s5 + $0x128] sm:$0xff] %vm4599, %v6820
  %6885 = vst.msk [vmem:[%s5 + $0x130] sm:$0xff] %vm4599, %v6821
  %6886 = vst.msk [vmem:[%s5 + $0x138] sm:$0xff] %vm4599, %v6822
  %6887 = vst.msk [vmem:[%s5 + $0x140] sm:$0xff] %vm4599, %v6823
  %6888 = vst.msk [vmem:[%s5 + $0x148] sm:$0xff] %vm4599, %v6824
  %6889 = vst.msk [vmem:[%s5 + $0x150] sm:$0xff] %vm4599, %v6825
  %6890 = vst.msk [vmem:[%s5 + $0x158] sm:$0xff] %vm4599, %v6826
  %6891 = vst.msk [vmem:[%s5 + $0x160] sm:$0xff] %vm4599, %v6827
  %6892 = vst.msk [vmem:[%s5 + $0x168] sm:$0xff] %vm4599, %v6828
  %6893 = vst.msk [vmem:[%s5 + $0x170] sm:$0xff] %vm4599, %v6829
  %6894 = vst.msk [vmem:[%s5 + $0x178] sm:$0xff] %vm4599, %v6830
  %6895 = vst.msk [vmem:[%s5 + $0x180] sm:$0xff] %vm4599, %v6831
  %6896 = vst.msk [vmem:[%s5 + $0x188] sm:$0xff] %vm4599, %v6832
  %6897 = vst.msk [vmem:[%s5 + $0x190] sm:$0xff] %vm4599, %v6833
  %6898 = vst.msk [vmem:[%s5 + $0x198] sm:$0xff] %vm4599, %v6834
  %6899 = vst.msk [vmem:[%s5 + $0x1a0] sm:$0xff] %vm4599, %v6835
  %6900 = vst.msk [vmem:[%s5 + $0x1a8] sm:$0xff] %vm4599, %v6836
  %6901 = vst.msk [vmem:[%s5 + $0x1b0] sm:$0xff] %vm4599, %v6837
  %6902 = vst.msk [vmem:[%s5 + $0x1b8] sm:$0xff] %vm4599, %v6838
  %6903 = vst.msk [vmem:[%s5 + $0x1c0] sm:$0xff] %vm4599, %v6839
  %6904 = vst.msk [vmem:[%s5 + $0x1c8] sm:$0xff] %vm4599, %v6840
  %6905 = vst.msk [vmem:[%s5 + $0x1d0] sm:$0xff] %vm4599, %v6841
  %6906 = vst.msk [vmem:[%s5 + $0x1d8] sm:$0xff] %vm4599, %v6842
  %6907 = vst.msk [vmem:[%s5 + $0x1e0] sm:$0xff] %vm4599, %v6843
  %6908 = vst.msk [vmem:[%s5 + $0x1e8] sm:$0xff] %vm4599, %v6844
  %6909 = vst.msk [vmem:[%s5 + $0x1f0] sm:$0xff] %vm4599, %v6845
  %6910 = vst.msk [vmem:[%s5 + $0x1f8] sm:$0xff] %vm4599, %v6846
  // Predicated region
  $region22: #{tpu_custom_call.1} parent=0 // pred_check
    _
  $region23: #{tpu_custom_call.1} parent=0 // pred_check_branch
    %6912 = sbr.rel (0) target = $region25
  $region24: #{tpu_custom_call.1} parent=0 // pred_region
    _
  $region25: #{tpu_custom_call.1} parent=0 // pred_fallthru
    _
  // Predicated region
  $region26: #{tpu_custom_call.1} parent=0 // pred_check
    _
  $region27: #{tpu_custom_call.1} parent=0 // pred_check_branch
    %6914 = sbr.rel (0) target = $region29
  $region28: #{tpu_custom_call.1} parent=0 // pred_region
    _
  $region29: #{tpu_custom_call.1} parent=0 // pred_fallthru
    _

</llo_original>
